<compile_context>
chip_gen: v5e
topology: v5e:2x2
jax: 0.10.0
libtpu: 0.0.40
codegen_flags: <defaults>
</compile_context>

<pallas_src>
import numpy as np
import jax
import jax.numpy as jnp
from jax import lax
from jax.experimental import pallas as pl
from jax.experimental.pallas import tpu as pltpu


# ----------------------------------------------------------------------------
# Pallas kernel: one grid step == Bt images of the batch.
# ----------------------------------------------------------------------------
def _downsample_kernel(xps_ref, ring_ref,
                       w_sc1_ref,                 # (9*Cin_p, Cin_p)  im2col weights
                       w_b1_ref, b_b1_ref,        # conv1 1x1
                       w_dw_ref,                  # depthwise 3x3 (bias folded away)
                       w_tail_ref, b_tail_ref,    # fused trailing 1x1s + shuffle
                       out_ref, pad_scr):
    Bt, Ho, Wo, Cout_p = out_ref.shape
    _, _, Hp2, Wp2a, Cin_p = xps_ref.shape
    mid_p = pad_scr.shape[-1]
    M = Bt * Ho * Wo
    f32, bf16 = jnp.float32, jnp.bfloat16

    def pick(ref, kh, kw):
        # Stride-2 3x3 tap (kh, kw): rows 2i+kh, cols 2j+kw of the padded map,
        # which in phase-split layout is a contiguous static slice.
        p = 2 * (kh % 2) + (kw % 2)
        return ref[:, p, kh // 2:kh // 2 + Ho, kw // 2:kw // 2 + Wo, :]

    # ---------------- main branch ----------------
    # conv1: 1x1 + folded BN + ReLU at every (padded) position; the padding
    # ring (and the sublane-alignment columns) is re-zeroed with a single mask
    # multiply, then stored to the bf16 scratch.
    xf = xps_ref[...].reshape(Bt * 4 * Hp2 * Wp2a, Cin_p)
    a = jnp.maximum(
        jnp.dot(xf, w_b1_ref[...], preferred_element_type=f32) + b_b1_ref[...],
        0.0)
    pad_scr[...] = (a.reshape(Bt, 4, Hp2, Wp2a, mid_p) * ring_ref[...]).astype(bf16)

    # conv2: 3x3 depthwise (groups = mid), stride 2, pad 1.  Elementwise per
    # tap, accumulated in f32; b_dw is folded into the tail bias.
    acc2 = jnp.zeros((Bt, Ho, Wo, mid_p), f32)
    for kh in range(3):
        for kw in range(3):
            acc2 = acc2 + pick(pad_scr, kh, kw).astype(f32) * w_dw_ref[kh, kw]
    x2 = acc2.reshape(M, mid_p).astype(bf16)       # drop f32 live range early

    # ---------------- shortcut branch ----------------
    # 3x3 conv (groups=1), stride 2, pad 1 as a single im2col matmul
    # (K = 9*Cin_p); b_sc1 is folded (through the 1x1) into the tail bias.
    patches = jnp.concatenate(
        [pick(xps_ref, kh, kw).reshape(M, Cin_p)
         for kh in range(3) for kw in range(3)], axis=-1)
    x1 = jnp.dot(patches, w_sc1_ref[...], preferred_element_type=f32).astype(bf16)

    # ---- trailing 1x1 convs + ChannelShuffle(groups=2), fused to ONE matmul.
    # w_tail = vstack([w_sc2 -> even cols, w_b3 -> odd cols]); columns are
    # disjoint (zero bias elsewhere) so one ReLU after the fused dot is exact.
    y = jnp.maximum(
        jnp.dot(jnp.concatenate([x1, x2], axis=-1), w_tail_ref[...],
                preferred_element_type=f32) + b_tail_ref[...], 0.0)
    out_ref[...] = y.reshape(Bt, Ho, Wo, Cout_p).astype(out_ref.dtype)


# ----------------------------------------------------------------------------
# Wrapper: layout plumbing (NCHW <-> NHWC, padding, phase split, weight prep).
# ----------------------------------------------------------------------------
def _round_up(n, m):
    return (n + m - 1) // m * m


def _nbytes(a):
    return int(np.prod(a.shape)) * int(a.dtype.itemsize)


def shufflenet_downsample_block(x_nchw, p, batch_block=None):
    B, Cin, H, W = x_nchw.shape
    assert H % 2 == 0 and W % 2 == 0
    mid = p["w_b3"].shape[0]
    Cout = 2 * mid
    Ho, Wo = H // 2, W // 2
    Hp, Wp = H + 2, W + 2
    Hp2, Wp2 = Hp // 2, Wp // 2
    Wp2a = _round_up(Wp2, 8)        # sublane-align the phase-split width

    LANE = 128
    Cin_p = _round_up(Cin, LANE)
    mid_p = _round_up(mid, LANE)
    Cout_p = _round_up(Cout, LANE)

    bf16, f32 = jnp.bfloat16, jnp.float32

    # Accurate per-image VMEM footprint (bytes), incl. default double-buffering
    # of the pipelined input/output blocks and the big f32 temporaries.
    per_img = (
        2 * (2 * 4 * Hp2 * Wp2a * Cin_p)        # input block (bf16) x2 buffers
        + 2 * 4 * Hp2 * Wp2a * mid_p            # pad_scr scratch (bf16)
        + 4 * 4 * Hp2 * Wp2a * mid_p            # conv1 f32 temp before masking
        + 2 * (2 * Ho * Wo * Cout_p)            # output block (bf16) x2 buffers
        + Ho * Wo * (4 * mid_p                  # acc2 (f32)
                     + 2 * 9 * Cin_p            # im2col patches (bf16)
                     + 2 * (Cin_p + mid_p)      # fused-tail operand (bf16)
                     + 4 * Cout_p)              # tail f32 result
    )

    if batch_block is None:
        # Fold several images into the matmul M dimension, but:
        #  - keep at least min(B, 4) grid steps so the "parallel" axis can
        #    shard across 2 TensorCores (v7x) and DMA(i+1) overlaps compute(i);
        #  - never exceed a conservative slice of the 32 MiB scoped VMEM.
        m_target_bt = max(1, 256 // (Ho * Wo))
        grid_cap_bt = max(1, B // min(B, 4))
        vmem_cap_bt = max(1, (24 << 20) // per_img)
        batch_block = max(1, min(B, m_target_bt, grid_cap_bt, vmem_cap_bt))
    Bt = batch_block
    B_pad = _round_up(B, Bt)

    # NCHW -> NHWC in bf16; zero-pad batch to B_pad, spatial by a 1-pixel ring,
    # channels to the 128-lane width; then split into the 4 stride-2 phases
    # and pad the phase width to a multiple of 8 sublanes (never read).
    x = jnp.transpose(x_nchw, (0, 2, 3, 1)).astype(bf16)
    x = jnp.pad(x, ((0, B_pad - B), (1, 1), (1, 1), (0, Cin_p - Cin)))
    xps = (x.reshape(B_pad, Hp2, 2, Wp2, 2, Cin_p)
            .transpose(0, 2, 4, 1, 3, 5)
            .reshape(B_pad, 4, Hp2, Wp2, Cin_p))
    xps = jnp.pad(xps, ((0, 0), (0, 0), (0, 0), (0, Wp2a - Wp2), (0, 0)))

    # 0/1 mask that re-zeroes the padding ring (and alignment columns) after
    # conv1 in the phase-split layout.
    ring = np.ones((4, Hp2, Wp2, 1), np.float32)
    ring[0:2, 0, :, :] = 0.0             # padded row 0       -> phases 0,1 row 0
    ring[2:4, Hp2 - 1, :, :] = 0.0       # padded row Hp-1    -> phases 2,3 last row
    ring[0, :, 0, :] = 0.0               # padded col 0       -> phases 0,2 col 0
    ring[2, :, 0, :] = 0.0
    ring[1, :, Wp2 - 1, :] = 0.0         # padded col Wp-1    -> phases 1,3 last col
    ring[3, :, Wp2 - 1, :] = 0.0
    ring = np.pad(ring, ((0, 0), (0, 0), (0, Wp2a - Wp2), (0, 0)))
    ring = jnp.asarray(ring)

    def pad_to(a, shape):
        return jnp.pad(a, [(0, s - d) for d, s in zip(a.shape, shape)])

    # Conv + folded-BN weights, zero-padded to lane width; bf16 for the MXU,
    # biases kept in f32 (added to f32 accumulators).
    # Shortcut 3x3 weights flattened to im2col layout (tap-major, K=9*Cin_p).
    w_sc1 = pad_to(p["w_sc1"], (3, 3, Cin_p, Cin_p)).reshape(9 * Cin_p, Cin_p).astype(bf16)
    w_b1 = pad_to(p["w_b1"], (Cin_p, mid_p)).astype(bf16)
    b_b1 = pad_to(p["b_b1"], (1, mid_p)).astype(f32)
    w_dw = pad_to(p["w_dw"], (3, 3, 1, mid_p)).astype(f32)

    # ChannelShuffle(groups=2) after concat([x1, x2]) interleaves channels:
    #   out[:, 2k] = x1[:, k],  out[:, 2k+1] = x2[:, k]
    # Fold that 0/1 column selector into the trailing 1x1 weights (it commutes
    # with ReLU), vstack the two weight halves into one K=(Cin_p+mid_p) matmul,
    # and fold b_sc1 / b_dw / b_sc2 / b_b3 into a single fused bias (exact
    # pre-ReLU algebra: the two column groups are disjoint).
    w_sc2p = jnp.zeros((Cin_p, Cout_p), f32).at[:Cin, 0:2 * mid:2].set(p["w_sc2"])
    w_b3p = jnp.zeros((mid_p, Cout_p), f32).at[:mid, 1:2 * mid:2].set(p["w_b3"])
    w_tail = jnp.concatenate([w_sc2p, w_b3p], axis=0).astype(bf16)

    b_even = p["b_sc1"] @ p["w_sc2"] + p["b_sc2"]      # (1, mid): shortcut path
    b_odd = p["b_dw"] @ p["w_b3"] + p["b_b3"]          # (1, mid): main path
    b_tail = (jnp.zeros((1, Cout_p), f32)
              .at[:, 0:2 * mid:2].set(b_even)
              .at[:, 1:2 * mid:2].set(b_odd))

    def full_spec(shape):
        return pl.BlockSpec(shape, lambda b, n=len(shape): (0,) * n)

    in_specs = [
        pl.BlockSpec((Bt, 4, Hp2, Wp2a, Cin_p), lambda b: (b, 0, 0, 0, 0)),
        full_spec(ring.shape),
        full_spec(w_sc1.shape),
        full_spec(w_b1.shape), full_spec(b_b1.shape),
        full_spec(w_dw.shape),
        full_spec(w_tail.shape), full_spec(b_tail.shape),
    ]
    out_specs = pl.BlockSpec((Bt, Ho, Wo, Cout_p), lambda b: (b, 0, 0, 0))

    # Explicit scoped-VMEM limit (kept <= 48 MiB so it is valid on v7x's
    # 64 MiB physical VMEM as well as v5e/v6e).
    const_bytes = 2 * sum(_nbytes(a) for a in
                          (ring, w_sc1, w_b1, b_b1, w_dw, w_tail, b_tail))
    vmem_limit = int(min(48 << 20, max(32 << 20, 2 * (Bt * per_img + const_bytes))))

    out = pl.pallas_call(
        _downsample_kernel,
        out_shape=jax.ShapeDtypeStruct((B_pad, Ho, Wo, Cout_p), jnp.bfloat16),
        grid=(B_pad // Bt,),
        in_specs=in_specs,
        out_specs=out_specs,
        scratch_shapes=[pltpu.VMEM((Bt, 4, Hp2, Wp2a, mid_p), jnp.bfloat16)],
        compiler_params=pltpu.CompilerParams(
            # Each grid step writes a distinct output block -> shard across the
            # two TensorCores on v7x; no effect (and no harm) on v5e/v6e.
            dimension_semantics=("parallel",),
            vmem_limit_bytes=vmem_limit),
    )(xps, ring, w_sc1, w_b1, b_b1, w_dw, w_tail, b_tail)

    out = out[:B, :, :, :Cout].astype(jnp.float32)   # drop padding, back to f32
    return jnp.transpose(out, (0, 3, 1, 2))          # back to NCHW


# ----------------------------------------------------------------------------
# Deterministic parameter init (Conv + BN folded to scale/shift, eval mode).
# ----------------------------------------------------------------------------
def init_params(key, cin, cout, eps=1e-5):
    mid = cout // 2
    ks = jax.random.split(key, 5)

    def conv_bn(k, w_shape):
        co = w_shape[-1]
        k1, k2, k3, k4, k5, k6 = jax.random.split(k, 6)
        w = 0.2 * jax.random.normal(k1, w_shape, jnp.float32)
        b = 0.1 * jax.random.normal(k2, (co,), jnp.float32)
        gamma = 1.0 + 0.1 * jax.random.normal(k3, (co,), jnp.float32)
        beta = 0.1 * jax.random.normal(k4, (co,), jnp.float32)
        mean = 0.1 * jax.random.normal(k5, (co,), jnp.float32)
        var = 1.0 + 0.5 * jax.random.uniform(k6, (co,), jnp.float32)
        s = gamma * lax.rsqrt(var + eps)
        return ((w * s).astype(jnp.float32),
                ((b - mean) * s + beta).reshape(1, co).astype(jnp.float32))

    w_sc1, b_sc1 = conv_bn(ks[0], (3, 3, cin, cin))   # shortcut: 3x3 s2, groups=1
    w_sc2, b_sc2 = conv_bn(ks[1], (cin, mid))         # shortcut: 1x1 (+ReLU)
    w_b1,  b_b1  = conv_bn(ks[2], (cin, mid))         # conv1:    1x1 (+ReLU)
    w_dw,  b_dw  = conv_bn(ks[3], (3, 3, 1, mid))     # conv2:    3x3 depthwise s2
    w_b3,  b_b3  = conv_bn(ks[4], (mid, mid))         # conv3:    1x1 (+ReLU)
    return dict(w_sc1=w_sc1, b_sc1=b_sc1, w_sc2=w_sc2, b_sc2=b_sc2,
                w_b1=w_b1, b_b1=b_b1, w_dw=w_dw, b_dw=b_dw,
                w_b3=w_b3, b_b3=b_b3)


# ----------------------------------------------------------------------------
# Pure-JAX reference (same folded-BN params) for a correctness cross-check.
# Models the kernel's bf16 intermediate precision (conv1 scratch, final output)
# so the comparison only measures the kernel's own accumulation path.
# ----------------------------------------------------------------------------
def _reference(x_nchw, p):
    x = jnp.transpose(x_nchw, (0, 2, 3, 1)).astype(jnp.float32)
    cin = x.shape[-1]
    mid = p["w_b3"].shape[0]

    def conv(inp, w, stride, pad, groups=1):
        return lax.conv_general_dilated(
            inp, w, (stride, stride), [(pad, pad), (pad, pad)],
            dimension_numbers=("NHWC", "HWIO", "NHWC"),
            feature_group_count=groups, precision=lax.Precision.HIGHEST)

    x1 = conv(x, p["w_sc1"], 2, 1) + p["b_sc1"]
    x1 = jax.nn.relu(conv(x1, p["w_sc2"].reshape(1, 1, cin, mid), 1, 0) + p["b_sc2"])
    x2 = jax.nn.relu(conv(x, p["w_b1"].reshape(1, 1, cin, mid), 1, 0) + p["b_b1"])
    x2 = x2.astype(jnp.bfloat16).astype(jnp.float32)   # kernel's bf16 conv1 scratch
    x2 = conv(x2, p["w_dw"], 2, 1, groups=mid) + p["b_dw"]
    x2 = jax.nn.relu(conv(x2, p["w_b3"].reshape(1, 1, mid, mid), 1, 0) + p["b_b3"])
    y = jnp.concatenate([x1, x2], axis=-1)
    B, Ho, Wo, C = y.shape
    y = y.reshape(B, Ho, Wo, 2, C // 2).transpose(0, 1, 2, 4, 3).reshape(B, Ho, Wo, C)
    y = jnp.transpose(y, (0, 3, 1, 2))
    return y.astype(jnp.bfloat16).astype(jnp.float32)  # kernel emits bf16 output


if __name__ == "__main__":
    B, Cin, H, W = 2, 4, 16, 16
    Cout = 8                      # block out_channels -> mid = 4
    key = jax.random.PRNGKey(0)
    kx, kp = jax.random.split(key)
    x = jax.random.normal(kx, (B, Cin, H, W), dtype=jnp.float32)
    params = init_params(kp, Cin, Cout)

    y = shufflenet_downsample_block(x, params)
    y = jax.block_until_ready(y)
    assert y.shape == (B, Cout, H // 2, W // 2), y.shape

    # Reference is fed the same bf16-quantized operands the kernel consumes
    # (weights/inputs rounded to bf16; biases stay f32).
    xq = x.astype(jnp.bfloat16).astype(jnp.float32)
    pq = dict(params)
    for k in ("w_sc1", "w_sc2", "w_b1", "w_b3"):
        pq[k] = params[k].astype(jnp.bfloat16).astype(jnp.float32)
    y_ref = _reference(xq, pq)

    if not np.allclose(np.asarray(y), np.asarray(y_ref), rtol=2e-2, atol=2e-2):
        max_err = float(np.max(np.abs(np.asarray(y) - np.asarray(y_ref))))
        raise AssertionError(f"kernel mismatch vs reference, max abs err={max_err}")

    print("KERNEL_OK")
</pallas_src>

<mosaic_0001>
module attributes {stable_mosaic.version = 11 : i64} {
  func.func @_downsample_kernel(%arg0: i32, %arg1: memref<1x4x9x16x128xbf16, #tpu.memory_space<vmem>>, %arg2: memref<4x9x16x1xf32, #tpu.memory_space<vmem>>, %arg3: memref<1152x128xbf16, #tpu.memory_space<vmem>>, %arg4: memref<128x128xbf16, #tpu.memory_space<vmem>>, %arg5: memref<1x128xf32, #tpu.memory_space<vmem>>, %arg6: memref<3x3x1x128xf32, #tpu.memory_space<vmem>>, %arg7: memref<256x128xbf16, #tpu.memory_space<vmem>>, %arg8: memref<1x128xf32, #tpu.memory_space<vmem>>, %arg9: memref<1x8x8x128xbf16, #tpu.memory_space<vmem>>, %arg10: memref<1x4x9x16x128xbf16, #tpu.memory_space<vmem>>) attributes {dimension_semantics = [#tpu.dimension_semantics<parallel>], iteration_bounds = array<i64: 2>, scalar_prefetch = 0 : i64, scratch_operands = 1 : i64, tpu.core_type = #tpu.core_type<tc>, window_params = [{transform_indices = @transform_0, window_bounds = array<i64: 1, 4, 9, 16, 128>}, {pipeline_mode = #tpu.pipeline_mode<synchronous>, transform_indices = @transform_1, window_bounds = array<i64: 4, 9, 16, 1>}, {pipeline_mode = #tpu.pipeline_mode<synchronous>, transform_indices = @transform_2, window_bounds = array<i64: 1152, 128>}, {pipeline_mode = #tpu.pipeline_mode<synchronous>, transform_indices = @transform_3, window_bounds = array<i64: 128, 128>}, {pipeline_mode = #tpu.pipeline_mode<synchronous>, transform_indices = @transform_4, window_bounds = array<i64: 1, 128>}, {pipeline_mode = #tpu.pipeline_mode<synchronous>, transform_indices = @transform_5, window_bounds = array<i64: 3, 3, 1, 128>}, {pipeline_mode = #tpu.pipeline_mode<synchronous>, transform_indices = @transform_6, window_bounds = array<i64: 256, 128>}, {pipeline_mode = #tpu.pipeline_mode<synchronous>, transform_indices = @transform_7, window_bounds = array<i64: 1, 128>}, {transform_indices = @transform_8, window_bounds = array<i64: 1, 8, 8, 128>}]} {
    %c0 = arith.constant 0 : index
    %c0_0 = arith.constant 0 : index
    %c0_1 = arith.constant 0 : index
    %c0_2 = arith.constant 0 : index
    %c0_3 = arith.constant 0 : index
    %0 = vector.load %arg1[%c0, %c0_0, %c0_1, %c0_2, %c0_3] : memref<1x4x9x16x128xbf16, #tpu.memory_space<vmem>>, vector<1x4x9x16x128xbf16>
    %1 = vector.shape_cast %0 : vector<1x4x9x16x128xbf16> to vector<576x128xbf16>
    %c0_4 = arith.constant 0 : index
    %c0_5 = arith.constant 0 : index
    %2 = vector.load %arg4[%c0_4, %c0_5] : memref<128x128xbf16, #tpu.memory_space<vmem>>, vector<128x128xbf16>
    %cst = arith.constant dense<0.000000e+00> : vector<576x128xf32>
    %3 = tpu.matmul %1, %2, %cst {dimension_numbers = #tpu.dot_dimension_numbers<[1], [0], [0], [1], [0, 0, 1, 1], [], []>} : vector<576x128xbf16>, vector<128x128xbf16>, vector<576x128xf32> -> vector<576x128xf32>
    %c0_6 = arith.constant 0 : index
    %c0_7 = arith.constant 0 : index
    %4 = vector.load %arg5[%c0_6, %c0_7] : memref<1x128xf32, #tpu.memory_space<vmem>>, vector<1x128xf32>
    %5 = vector.broadcast %4 : vector<1x128xf32> to vector<576x128xf32>
    %6 = arith.addf %3, %5 : vector<576x128xf32>
    %cst_8 = arith.constant 0.000000e+00 : f32
    %7 = vector.broadcast %cst_8 : f32 to vector<576x128xf32>
    %8 = arith.maximumf %6, %7 : vector<576x128xf32>
    %9 = vector.shape_cast %8 : vector<576x128xf32> to vector<1x4x9x16x128xf32>
    %c0_9 = arith.constant 0 : index
    %c0_10 = arith.constant 0 : index
    %c0_11 = arith.constant 0 : index
    %c0_12 = arith.constant 0 : index
    %10 = vector.load %arg2[%c0_9, %c0_10, %c0_11, %c0_12] : memref<4x9x16x1xf32, #tpu.memory_space<vmem>>, vector<4x9x16x1xf32>
    %11 = vector.shape_cast %10 : vector<4x9x16x1xf32> to vector<1x4x9x16x1xf32>
    %12 = vector.broadcast %11 : vector<1x4x9x16x1xf32> to vector<1x4x9x16x128xf32>
    %13 = arith.mulf %9, %12 : vector<1x4x9x16x128xf32>
    %14 = arith.truncf %13 : vector<1x4x9x16x128xf32> to vector<1x4x9x16x128xbf16>
    %c0_13 = arith.constant 0 : index
    %c0_14 = arith.constant 0 : index
    %c0_15 = arith.constant 0 : index
    %c0_16 = arith.constant 0 : index
    %c0_17 = arith.constant 0 : index
    %15 = vector.load %arg10[%c0_13, %c0_14, %c0_15, %c0_16, %c0_17] : memref<1x4x9x16x128xbf16, #tpu.memory_space<vmem>>, vector<1x4x9x16x128xbf16>
    tpu.vector_store %arg10[%c0_13, %c0_14, %c0_15, %c0_16, %c0_17], %14 {strides = array<i32>} : memref<1x4x9x16x128xbf16, #tpu.memory_space<vmem>>, vector<1x4x9x16x128xbf16>,
    %cst_18 = arith.constant 0.000000e+00 : f32
    %16 = vector.broadcast %cst_18 : f32 to vector<1x8x8x128xf32>
    %c0_19 = arith.constant 0 : index
    %c0_20 = arith.constant 0 : index
    %c0_21 = arith.constant 0 : index
    %c0_22 = arith.constant 0 : index
    %c0_23 = arith.constant 0 : index
    %17 = vector.load %arg10[%c0_19, %c0_20, %c0_21, %c0_22, %c0_23] : memref<1x4x9x16x128xbf16, #tpu.memory_space<vmem>>, vector<1x1x8x8x128xbf16>
    %18 = vector.shape_cast %17 : vector<1x1x8x8x128xbf16> to vector<1x8x8x128xbf16>
    %19 = arith.extf %18 : vector<1x8x8x128xbf16> to vector<1x8x8x128xf32>
    %c0_24 = arith.constant 0 : index
    %c0_25 = arith.constant 0 : index
    %c0_26 = arith.constant 0 : index
    %c0_27 = arith.constant 0 : index
    %20 = vector.load %arg6[%c0_24, %c0_25, %c0_26, %c0_27] : memref<3x3x1x128xf32, #tpu.memory_space<vmem>>, vector<1x1x1x128xf32>
    %21 = vector.shape_cast %20 : vector<1x1x1x128xf32> to vector<1x128xf32>
    %22 = vector.shape_cast %21 : vector<1x128xf32> to vector<1x1x1x128xf32>
    %23 = vector.broadcast %22 : vector<1x1x1x128xf32> to vector<1x8x8x128xf32>
    %24 = arith.mulf %19, %23 : vector<1x8x8x128xf32>
    %25 = arith.addf %16, %24 : vector<1x8x8x128xf32>
    %c0_28 = arith.constant 0 : index
    %c1 = arith.constant 1 : index
    %c0_29 = arith.constant 0 : index
    %c0_30 = arith.constant 0 : index
    %c0_31 = arith.constant 0 : index
    %26 = vector.load %arg10[%c0_28, %c1, %c0_29, %c0_30, %c0_31] : memref<1x4x9x16x128xbf16, #tpu.memory_space<vmem>>, vector<1x1x8x8x128xbf16>
    %27 = vector.shape_cast %26 : vector<1x1x8x8x128xbf16> to vector<1x8x8x128xbf16>
    %28 = arith.extf %27 : vector<1x8x8x128xbf16> to vector<1x8x8x128xf32>
    %c0_32 = arith.constant 0 : index
    %c1_33 = arith.constant 1 : index
    %c0_34 = arith.constant 0 : index
    %c0_35 = arith.constant 0 : index
    %29 = vector.load %arg6[%c0_32, %c1_33, %c0_34, %c0_35] : memref<3x3x1x128xf32, #tpu.memory_space<vmem>>, vector<1x1x1x128xf32>
    %30 = vector.shape_cast %29 : vector<1x1x1x128xf32> to vector<1x128xf32>
    %31 = vector.shape_cast %30 : vector<1x128xf32> to vector<1x1x1x128xf32>
    %32 = vector.broadcast %31 : vector<1x1x1x128xf32> to vector<1x8x8x128xf32>
    %33 = arith.mulf %28, %32 : vector<1x8x8x128xf32>
    %34 = arith.addf %25, %33 : vector<1x8x8x128xf32>
    %c0_36 = arith.constant 0 : index
    %c0_37 = arith.constant 0 : index
    %c0_38 = arith.constant 0 : index
    %c1_39 = arith.constant 1 : index
    %c0_40 = arith.constant 0 : index
    %35 = vector.load %arg10[%c0_36, %c0_37, %c0_38, %c1_39, %c0_40] : memref<1x4x9x16x128xbf16, #tpu.memory_space<vmem>>, vector<1x1x8x8x128xbf16>
    %36 = vector.shape_cast %35 : vector<1x1x8x8x128xbf16> to vector<1x8x8x128xbf16>
    %37 = arith.extf %36 : vector<1x8x8x128xbf16> to vector<1x8x8x128xf32>
    %c0_41 = arith.constant 0 : index
    %c2 = arith.constant 2 : index
    %c0_42 = arith.constant 0 : index
    %c0_43 = arith.constant 0 : index
    %38 = vector.load %arg6[%c0_41, %c2, %c0_42, %c0_43] : memref<3x3x1x128xf32, #tpu.memory_space<vmem>>, vector<1x1x1x128xf32>
    %39 = vector.shape_cast %38 : vector<1x1x1x128xf32> to vector<1x128xf32>
    %40 = vector.shape_cast %39 : vector<1x128xf32> to vector<1x1x1x128xf32>
    %41 = vector.broadcast %40 : vector<1x1x1x128xf32> to vector<1x8x8x128xf32>
    %42 = arith.mulf %37, %41 : vector<1x8x8x128xf32>
    %43 = arith.addf %34, %42 : vector<1x8x8x128xf32>
    %c0_44 = arith.constant 0 : index
    %c2_45 = arith.constant 2 : index
    %c0_46 = arith.constant 0 : index
    %c0_47 = arith.constant 0 : index
    %c0_48 = arith.constant 0 : index
    %44 = vector.load %arg10[%c0_44, %c2_45, %c0_46, %c0_47, %c0_48] : memref<1x4x9x16x128xbf16, #tpu.memory_space<vmem>>, vector<1x1x8x8x128xbf16>
    %45 = vector.shape_cast %44 : vector<1x1x8x8x128xbf16> to vector<1x8x8x128xbf16>
    %46 = arith.extf %45 : vector<1x8x8x128xbf16> to vector<1x8x8x128xf32>
    %c1_49 = arith.constant 1 : index
    %c0_50 = arith.constant 0 : index
    %c0_51 = arith.constant 0 : index
    %c0_52 = arith.constant 0 : index
    %47 = vector.load %arg6[%c1_49, %c0_50, %c0_51, %c0_52] : memref<3x3x1x128xf32, #tpu.memory_space<vmem>>, vector<1x1x1x128xf32>
    %48 = vector.shape_cast %47 : vector<1x1x1x128xf32> to vector<1x128xf32>
    %49 = vector.shape_cast %48 : vector<1x128xf32> to vector<1x1x1x128xf32>
    %50 = vector.broadcast %49 : vector<1x1x1x128xf32> to vector<1x8x8x128xf32>
    %51 = arith.mulf %46, %50 : vector<1x8x8x128xf32>
    %52 = arith.addf %43, %51 : vector<1x8x8x128xf32>
    %c0_53 = arith.constant 0 : index
    %c3 = arith.constant 3 : index
    %c0_54 = arith.constant 0 : index
    %c0_55 = arith.constant 0 : index
    %c0_56 = arith.constant 0 : index
    %53 = vector.load %arg10[%c0_53, %c3, %c0_54, %c0_55, %c0_56] : memref<1x4x9x16x128xbf16, #tpu.memory_space<vmem>>, vector<1x1x8x8x128xbf16>
    %54 = vector.shape_cast %53 : vector<1x1x8x8x128xbf16> to vector<1x8x8x128xbf16>
    %55 = arith.extf %54 : vector<1x8x8x128xbf16> to vector<1x8x8x128xf32>
    %c1_57 = arith.constant 1 : index
    %c1_58 = arith.constant 1 : index
    %c0_59 = arith.constant 0 : index
    %c0_60 = arith.constant 0 : index
    %56 = vector.load %arg6[%c1_57, %c1_58, %c0_59, %c0_60] : memref<3x3x1x128xf32, #tpu.memory_space<vmem>>, vector<1x1x1x128xf32>
    %57 = vector.shape_cast %56 : vector<1x1x1x128xf32> to vector<1x128xf32>
    %58 = vector.shape_cast %57 : vector<1x128xf32> to vector<1x1x1x128xf32>
    %59 = vector.broadcast %58 : vector<1x1x1x128xf32> to vector<1x8x8x128xf32>
    %60 = arith.mulf %55, %59 : vector<1x8x8x128xf32>
    %61 = arith.addf %52, %60 : vector<1x8x8x128xf32>
    %c0_61 = arith.constant 0 : index
    %c2_62 = arith.constant 2 : index
    %c0_63 = arith.constant 0 : index
    %c1_64 = arith.constant 1 : index
    %c0_65 = arith.constant 0 : index
    %62 = vector.load %arg10[%c0_61, %c2_62, %c0_63, %c1_64, %c0_65] : memref<1x4x9x16x128xbf16, #tpu.memory_space<vmem>>, vector<1x1x8x8x128xbf16>
    %63 = vector.shape_cast %62 : vector<1x1x8x8x128xbf16> to vector<1x8x8x128xbf16>
    %64 = arith.extf %63 : vector<1x8x8x128xbf16> to vector<1x8x8x128xf32>
    %c1_66 = arith.constant 1 : index
    %c2_67 = arith.constant 2 : index
    %c0_68 = arith.constant 0 : index
    %c0_69 = arith.constant 0 : index
    %65 = vector.load %arg6[%c1_66, %c2_67, %c0_68, %c0_69] : memref<3x3x1x128xf32, #tpu.memory_space<vmem>>, vector<1x1x1x128xf32>
    %66 = vector.shape_cast %65 : vector<1x1x1x128xf32> to vector<1x128xf32>
    %67 = vector.shape_cast %66 : vector<1x128xf32> to vector<1x1x1x128xf32>
    %68 = vector.broadcast %67 : vector<1x1x1x128xf32> to vector<1x8x8x128xf32>
    %69 = arith.mulf %64, %68 : vector<1x8x8x128xf32>
    %70 = arith.addf %61, %69 : vector<1x8x8x128xf32>
    %c0_70 = arith.constant 0 : index
    %c0_71 = arith.constant 0 : index
    %c1_72 = arith.constant 1 : index
    %c0_73 = arith.constant 0 : index
    %c0_74 = arith.constant 0 : index
    %71 = vector.load %arg10[%c0_70, %c0_71, %c1_72, %c0_73, %c0_74] : memref<1x4x9x16x128xbf16, #tpu.memory_space<vmem>>, vector<1x1x8x8x128xbf16>
    %72 = vector.shape_cast %71 : vector<1x1x8x8x128xbf16> to vector<1x8x8x128xbf16>
    %73 = arith.extf %72 : vector<1x8x8x128xbf16> to vector<1x8x8x128xf32>
    %c2_75 = arith.constant 2 : index
    %c0_76 = arith.constant 0 : index
    %c0_77 = arith.constant 0 : index
    %c0_78 = arith.constant 0 : index
    %74 = vector.load %arg6[%c2_75, %c0_76, %c0_77, %c0_78] : memref<3x3x1x128xf32, #tpu.memory_space<vmem>>, vector<1x1x1x128xf32>
    %75 = vector.shape_cast %74 : vector<1x1x1x128xf32> to vector<1x128xf32>
    %76 = vector.shape_cast %75 : vector<1x128xf32> to vector<1x1x1x128xf32>
    %77 = vector.broadcast %76 : vector<1x1x1x128xf32> to vector<1x8x8x128xf32>
    %78 = arith.mulf %73, %77 : vector<1x8x8x128xf32>
    %79 = arith.addf %70, %78 : vector<1x8x8x128xf32>
    %c0_79 = arith.constant 0 : index
    %c1_80 = arith.constant 1 : index
    %c1_81 = arith.constant 1 : index
    %c0_82 = arith.constant 0 : index
    %c0_83 = arith.constant 0 : index
    %80 = vector.load %arg10[%c0_79, %c1_80, %c1_81, %c0_82, %c0_83] : memref<1x4x9x16x128xbf16, #tpu.memory_space<vmem>>, vector<1x1x8x8x128xbf16>
    %81 = vector.shape_cast %80 : vector<1x1x8x8x128xbf16> to vector<1x8x8x128xbf16>
    %82 = arith.extf %81 : vector<1x8x8x128xbf16> to vector<1x8x8x128xf32>
    %c2_84 = arith.constant 2 : index
    %c1_85 = arith.constant 1 : index
    %c0_86 = arith.constant 0 : index
    %c0_87 = arith.constant 0 : index
    %83 = vector.load %arg6[%c2_84, %c1_85, %c0_86, %c0_87] : memref<3x3x1x128xf32, #tpu.memory_space<vmem>>, vector<1x1x1x128xf32>
    %84 = vector.shape_cast %83 : vector<1x1x1x128xf32> to vector<1x128xf32>
    %85 = vector.shape_cast %84 : vector<1x128xf32> to vector<1x1x1x128xf32>
    %86 = vector.broadcast %85 : vector<1x1x1x128xf32> to vector<1x8x8x128xf32>
    %87 = arith.mulf %82, %86 : vector<1x8x8x128xf32>
    %88 = arith.addf %79, %87 : vector<1x8x8x128xf32>
    %c0_88 = arith.constant 0 : index
    %c0_89 = arith.constant 0 : index
    %c1_90 = arith.constant 1 : index
    %c1_91 = arith.constant 1 : index
    %c0_92 = arith.constant 0 : index
    %89 = vector.load %arg10[%c0_88, %c0_89, %c1_90, %c1_91, %c0_92] : memref<1x4x9x16x128xbf16, #tpu.memory_space<vmem>>, vector<1x1x8x8x128xbf16>
    %90 = vector.shape_cast %89 : vector<1x1x8x8x128xbf16> to vector<1x8x8x128xbf16>
    %91 = arith.extf %90 : vector<1x8x8x128xbf16> to vector<1x8x8x128xf32>
    %c2_93 = arith.constant 2 : index
    %c2_94 = arith.constant 2 : index
    %c0_95 = arith.constant 0 : index
    %c0_96 = arith.constant 0 : index
    %92 = vector.load %arg6[%c2_93, %c2_94, %c0_95, %c0_96] : memref<3x3x1x128xf32, #tpu.memory_space<vmem>>, vector<1x1x1x128xf32>
    %93 = vector.shape_cast %92 : vector<1x1x1x128xf32> to vector<1x128xf32>
    %94 = vector.shape_cast %93 : vector<1x128xf32> to vector<1x1x1x128xf32>
    %95 = vector.broadcast %94 : vector<1x1x1x128xf32> to vector<1x8x8x128xf32>
    %96 = arith.mulf %91, %95 : vector<1x8x8x128xf32>
    %97 = arith.addf %88, %96 : vector<1x8x8x128xf32>
    %98 = vector.shape_cast %97 : vector<1x8x8x128xf32> to vector<64x128xf32>
    %99 = arith.truncf %98 : vector<64x128xf32> to vector<64x128xbf16>
    %c0_97 = arith.constant 0 : index
    %c0_98 = arith.constant 0 : index
    %c0_99 = arith.constant 0 : index
    %c0_100 = arith.constant 0 : index
    %c0_101 = arith.constant 0 : index
    %100 = vector.load %arg1[%c0_97, %c0_98, %c0_99, %c0_100, %c0_101] : memref<1x4x9x16x128xbf16, #tpu.memory_space<vmem>>, vector<1x1x8x8x128xbf16>
    %101 = vector.shape_cast %100 : vector<1x1x8x8x128xbf16> to vector<1x8x8x128xbf16>
    %102 = vector.shape_cast %101 : vector<1x8x8x128xbf16> to vector<64x128xbf16>
    %c0_102 = arith.constant 0 : index
    %c1_103 = arith.constant 1 : index
    %c0_104 = arith.constant 0 : index
    %c0_105 = arith.constant 0 : index
    %c0_106 = arith.constant 0 : index
    %103 = vector.load %arg1[%c0_102, %c1_103, %c0_104, %c0_105, %c0_106] : memref<1x4x9x16x128xbf16, #tpu.memory_space<vmem>>, vector<1x1x8x8x128xbf16>
    %104 = vector.shape_cast %103 : vector<1x1x8x8x128xbf16> to vector<1x8x8x128xbf16>
    %105 = vector.shape_cast %104 : vector<1x8x8x128xbf16> to vector<64x128xbf16>
    %c0_107 = arith.constant 0 : index
    %c0_108 = arith.constant 0 : index
    %c0_109 = arith.constant 0 : index
    %c1_110 = arith.constant 1 : index
    %c0_111 = arith.constant 0 : index
    %106 = vector.load %arg1[%c0_107, %c0_108, %c0_109, %c1_110, %c0_111] : memref<1x4x9x16x128xbf16, #tpu.memory_space<vmem>>, vector<1x1x8x8x128xbf16>
    %107 = vector.shape_cast %106 : vector<1x1x8x8x128xbf16> to vector<1x8x8x128xbf16>
    %108 = vector.shape_cast %107 : vector<1x8x8x128xbf16> to vector<64x128xbf16>
    %c0_112 = arith.constant 0 : index
    %c2_113 = arith.constant 2 : index
    %c0_114 = arith.constant 0 : index
    %c0_115 = arith.constant 0 : index
    %c0_116 = arith.constant 0 : index
    %109 = vector.load %arg1[%c0_112, %c2_113, %c0_114, %c0_115, %c0_116] : memref<1x4x9x16x128xbf16, #tpu.memory_space<vmem>>, vector<1x1x8x8x128xbf16>
    %110 = vector.shape_cast %109 : vector<1x1x8x8x128xbf16> to vector<1x8x8x128xbf16>
    %111 = vector.shape_cast %110 : vector<1x8x8x128xbf16> to vector<64x128xbf16>
    %c0_117 = arith.constant 0 : index
    %c3_118 = arith.constant 3 : index
    %c0_119 = arith.constant 0 : index
    %c0_120 = arith.constant 0 : index
    %c0_121 = arith.constant 0 : index
    %112 = vector.load %arg1[%c0_117, %c3_118, %c0_119, %c0_120, %c0_121] : memref<1x4x9x16x128xbf16, #tpu.memory_space<vmem>>, vector<1x1x8x8x128xbf16>
    %113 = vector.shape_cast %112 : vector<1x1x8x8x128xbf16> to vector<1x8x8x128xbf16>
    %114 = vector.shape_cast %113 : vector<1x8x8x128xbf16> to vector<64x128xbf16>
    %c0_122 = arith.constant 0 : index
    %c2_123 = arith.constant 2 : index
    %c0_124 = arith.constant 0 : index
    %c1_125 = arith.constant 1 : index
    %c0_126 = arith.constant 0 : index
    %115 = vector.load %arg1[%c0_122, %c2_123, %c0_124, %c1_125, %c0_126] : memref<1x4x9x16x128xbf16, #tpu.memory_space<vmem>>, vector<1x1x8x8x128xbf16>
    %116 = vector.shape_cast %115 : vector<1x1x8x8x128xbf16> to vector<1x8x8x128xbf16>
    %117 = vector.shape_cast %116 : vector<1x8x8x128xbf16> to vector<64x128xbf16>
    %c0_127 = arith.constant 0 : index
    %c0_128 = arith.constant 0 : index
    %c1_129 = arith.constant 1 : index
    %c0_130 = arith.constant 0 : index
    %c0_131 = arith.constant 0 : index
    %118 = vector.load %arg1[%c0_127, %c0_128, %c1_129, %c0_130, %c0_131] : memref<1x4x9x16x128xbf16, #tpu.memory_space<vmem>>, vector<1x1x8x8x128xbf16>
    %119 = vector.shape_cast %118 : vector<1x1x8x8x128xbf16> to vector<1x8x8x128xbf16>
    %120 = vector.shape_cast %119 : vector<1x8x8x128xbf16> to vector<64x128xbf16>
    %c0_132 = arith.constant 0 : index
    %c1_133 = arith.constant 1 : index
    %c1_134 = arith.constant 1 : index
    %c0_135 = arith.constant 0 : index
    %c0_136 = arith.constant 0 : index
    %121 = vector.load %arg1[%c0_132, %c1_133, %c1_134, %c0_135, %c0_136] : memref<1x4x9x16x128xbf16, #tpu.memory_space<vmem>>, vector<1x1x8x8x128xbf16>
    %122 = vector.shape_cast %121 : vector<1x1x8x8x128xbf16> to vector<1x8x8x128xbf16>
    %123 = vector.shape_cast %122 : vector<1x8x8x128xbf16> to vector<64x128xbf16>
    %c0_137 = arith.constant 0 : index
    %c0_138 = arith.constant 0 : index
    %c1_139 = arith.constant 1 : index
    %c1_140 = arith.constant 1 : index
    %c0_141 = arith.constant 0 : index
    %124 = vector.load %arg1[%c0_137, %c0_138, %c1_139, %c1_140, %c0_141] : memref<1x4x9x16x128xbf16, #tpu.memory_space<vmem>>, vector<1x1x8x8x128xbf16>
    %125 = vector.shape_cast %124 : vector<1x1x8x8x128xbf16> to vector<1x8x8x128xbf16>
    %126 = vector.shape_cast %125 : vector<1x8x8x128xbf16> to vector<64x128xbf16>
    %127 = tpu.concatenate %102, %105, %108, %111, %114, %117, %120, %123, %126 in 1 : vector<64x128xbf16>, vector<64x128xbf16>, vector<64x128xbf16>, vector<64x128xbf16>, vector<64x128xbf16>, vector<64x128xbf16>, vector<64x128xbf16>, vector<64x128xbf16>, vector<64x128xbf16> -> vector<64x1152xbf16>
    %c0_142 = arith.constant 0 : index
    %c0_143 = arith.constant 0 : index
    %128 = vector.load %arg3[%c0_142, %c0_143] : memref<1152x128xbf16, #tpu.memory_space<vmem>>, vector<1152x128xbf16>
    %cst_144 = arith.constant dense<0.000000e+00> : vector<64x128xf32>
    %129 = tpu.matmul %127, %128, %cst_144 {dimension_numbers = #tpu.dot_dimension_numbers<[1], [0], [0], [1], [0, 0, 1, 1], [], []>} : vector<64x1152xbf16>, vector<1152x128xbf16>, vector<64x128xf32> -> vector<64x128xf32>
    %130 = arith.truncf %129 : vector<64x128xf32> to vector<64x128xbf16>
    %131 = tpu.concatenate %130, %99 in 1 : vector<64x128xbf16>, vector<64x128xbf16> -> vector<64x256xbf16>
    %c0_145 = arith.constant 0 : index
    %c0_146 = arith.constant 0 : index
    %132 = vector.load %arg7[%c0_145, %c0_146] : memref<256x128xbf16, #tpu.memory_space<vmem>>, vector<256x128xbf16>
    %cst_147 = arith.constant dense<0.000000e+00> : vector<64x128xf32>
    %133 = tpu.matmul %131, %132, %cst_147 {dimension_numbers = #tpu.dot_dimension_numbers<[1], [0], [0], [1], [0, 0, 1, 1], [], []>} : vector<64x256xbf16>, vector<256x128xbf16>, vector<64x128xf32> -> vector<64x128xf32>
    %c0_148 = arith.constant 0 : index
    %c0_149 = arith.constant 0 : index
    %134 = vector.load %arg8[%c0_148, %c0_149] : memref<1x128xf32, #tpu.memory_space<vmem>>, vector<1x128xf32>
    %135 = vector.broadcast %134 : vector<1x128xf32> to vector<64x128xf32>
    %136 = arith.addf %133, %135 : vector<64x128xf32>
    %cst_150 = arith.constant 0.000000e+00 : f32
    %137 = vector.broadcast %cst_150 : f32 to vector<64x128xf32>
    %138 = arith.maximumf %136, %137 : vector<64x128xf32>
    %139 = vector.shape_cast %138 : vector<64x128xf32> to vector<1x8x8x128xf32>
    %140 = arith.truncf %139 : vector<1x8x8x128xf32> to vector<1x8x8x128xbf16>
    %c0_151 = arith.constant 0 : index
    %c0_152 = arith.constant 0 : index
    %c0_153 = arith.constant 0 : index
    %c0_154 = arith.constant 0 : index
    %141 = vector.load %arg9[%c0_151, %c0_152, %c0_153, %c0_154] : memref<1x8x8x128xbf16, #tpu.memory_space<vmem>>, vector<1x8x8x128xbf16>
    tpu.vector_store %arg9[%c0_151, %c0_152, %c0_153, %c0_154], %140 {strides = array<i32>} : memref<1x8x8x128xbf16, #tpu.memory_space<vmem>>, vector<1x8x8x128xbf16>,
    return
  }
  func.func @transform_0(%arg0: i32) -> (i32, i32, i32, i32, i32) {
    %c0_i32 = arith.constant 0 : i32
    %c0_i32_0 = arith.constant 0 : i32
    %c0_i32_1 = arith.constant 0 : i32
    %c0_i32_2 = arith.constant 0 : i32
    %c0_i32_3 = arith.constant 0 : i32
    return %arg0, %c0_i32, %c0_i32_0, %c0_i32_1, %c0_i32_2 : i32, i32, i32, i32, i32
  }
  func.func @transform_1(%arg0: i32) -> (i32, i32, i32, i32) {
    %c0_i32 = arith.constant 0 : i32
    %c0_i32_0 = arith.constant 0 : i32
    %c0_i32_1 = arith.constant 0 : i32
    %c0_i32_2 = arith.constant 0 : i32
    %c0_i32_3 = arith.constant 0 : i32
    return %c0_i32, %c0_i32_0, %c0_i32_1, %c0_i32_2 : i32, i32, i32, i32
  }
  func.func @transform_2(%arg0: i32) -> (i32, i32) {
    %c0_i32 = arith.constant 0 : i32
    %c0_i32_0 = arith.constant 0 : i32
    %c0_i32_1 = arith.constant 0 : i32
    return %c0_i32, %c0_i32_0 : i32, i32
  }
  func.func @transform_3(%arg0: i32) -> (i32, i32) {
    %c0_i32 = arith.constant 0 : i32
    %c0_i32_0 = arith.constant 0 : i32
    %c0_i32_1 = arith.constant 0 : i32
    return %c0_i32, %c0_i32_0 : i32, i32
  }
  func.func @transform_4(%arg0: i32) -> (i32, i32) {
    %c0_i32 = arith.constant 0 : i32
    %c0_i32_0 = arith.constant 0 : i32
    %c0_i32_1 = arith.constant 0 : i32
    return %c0_i32, %c0_i32_0 : i32, i32
  }
  func.func @transform_5(%arg0: i32) -> (i32, i32, i32, i32) {
    %c0_i32 = arith.constant 0 : i32
    %c0_i32_0 = arith.constant 0 : i32
    %c0_i32_1 = arith.constant 0 : i32
    %c0_i32_2 = arith.constant 0 : i32
    %c0_i32_3 = arith.constant 0 : i32
    return %c0_i32, %c0_i32_0, %c0_i32_1, %c0_i32_2 : i32, i32, i32, i32
  }
  func.func @transform_6(%arg0: i32) -> (i32, i32) {
    %c0_i32 = arith.constant 0 : i32
    %c0_i32_0 = arith.constant 0 : i32
    %c0_i32_1 = arith.constant 0 : i32
    return %c0_i32, %c0_i32_0 : i32, i32
  }
  func.func @transform_7(%arg0: i32) -> (i32, i32) {
    %c0_i32 = arith.constant 0 : i32
    %c0_i32_0 = arith.constant 0 : i32
    %c0_i32_1 = arith.constant 0 : i32
    return %c0_i32, %c0_i32_0 : i32, i32
  }
  func.func @transform_8(%arg0: i32) -> (i32, i32, i32, i32) {
    %c0_i32 = arith.constant 0 : i32
    %c0_i32_0 = arith.constant 0 : i32
    %c0_i32_1 = arith.constant 0 : i32
    %c0_i32_2 = arith.constant 0 : i32
    return %arg0, %c0_i32, %c0_i32_0, %c0_i32_1 : i32, i32, i32, i32
  }
}

</mosaic_0001>

<llo_original>
// kernel: tpu_custom_call.1
$region0: #{tpu_custom_call.1}
  #allocation0 [shape = 'u32[]', space=smem, size = 0x4, offset = 0x4, fixed_abs, tag = 'smem constant byte address 0x4 - core index']
  #allocation1 [shape = 'u32[72,128]{1,0:T(1,128)}', space=vmem, size = 0x9000, scoped, tag = 'internal scratch']
  #allocation2 [shape = 'bf16[1,4,9,16,128]{4,3,2,1,0:T(8,128)(2,1)}', space=vmem, size = 0x24000, scoped, tag = 'scratch operand']
  %s0 = inlined_call_operand.vmem [shape: bf16[2,4,9,16,128], index: 0, kind: input, shape index: {}]
  %s1 = inlined_call_operand.vmem [shape: f32[4,9,16,1], index: 1, kind: input, shape index: {}]
  %s2 = inlined_call_operand.hbm [shape: bf16[1152,128], index: 2, kind: input, shape index: {}]
  %s3 = inlined_call_operand.hbm [shape: bf16[128,128], index: 3, kind: input, shape index: {}]
  %s4 = inlined_call_operand.vmem [shape: f32[1,128], index: 4, kind: input, shape index: {}]
  %s5 = inlined_call_operand.vmem [shape: f32[3,3,1,128], index: 5, kind: input, shape index: {}]
  %s6 = inlined_call_operand.hbm [shape: bf16[256,128], index: 6, kind: input, shape index: {}]
  %s7 = inlined_call_operand.vmem [shape: f32[1,128], index: 7, kind: input, shape index: {}]
  %s8 = inlined_call_operand.hbm [shape: bf16[2,8,8,128], index: 8, kind: output, shape index: {}]
  %s9 = sld [smem:[#allocation0]]
  $region77: #{tpu_custom_call.1} parent=0
    _
  %s11 = ssub.s32 1, %s9
  %s12 = scalar_select 0, %s11, %s9
  $region1: #{tpu_custom_call.1} parent=0
    #allocation3 [shape = 'u8[294912]{0}', space=vmem, size = 0x48000, scoped, tag = 'input window, operand 2, single buffered']
    #allocation4 [shape = 's32[2]{0}', space=sflag, size = 0x8, scoped, tag = 'scoped memory for tpu_custom_call.1']
    #allocation5 [shape = 's32[2]{0}', space=sflag, size = 0x8, scoped, tag = 'scoped memory for tpu_custom_call.1']
    #allocation6 [shape = 'u8[32768]{0}', space=vmem, size = 0x8000, scoped, tag = 'input window, operand 3, single buffered']
    #allocation7 [shape = 's32[1]{0}', space=sflag, size = 0x4, scoped, tag = 'scoped memory for tpu_custom_call.1']
    #allocation8 [shape = 'u8[65536]{0}', space=vmem, size = 0x10000, scoped, tag = 'input window, operand 6, single buffered']
    #allocation9 [shape = 'u8[32768]{0}', space=vmem, size = 0x8000, scoped, tag = 'output window, operand 0']
    %13 = vsyncpa [#allocation4], 0
    %14 = vsyncpa [#allocation7], 0
    %15 = vsyncpa [#allocation5], 0
    %s16 = scalar_lea.sflag [#allocation5], 1
    %17 = vsyncpa %s16, 0
    loop: start=0, step=1, limit=4
    $region2: #{tpu_custom_call.1} parent=1 // loop_pre_header
      _
    $region3: #{tpu_custom_call.1} parent=1 // loop_header
      %s19 = sphi 0, %s23
      %p20 = scmp.ge.s32.totalorder %s19, 4
      %s29 = sphi 0, %s31
      %s32 = sphi 0, %s29
      %s33 = sphi 0, %s32
      %s49 = sphi 0, %s33
      %s53 = sphi 0, %s53
      %s55 = sphi 0, %s53
      %s56 = sphi 0, %s55
      %s70 = sphi 0, %s56
      %s74 = sphi 0, %s74
      %s76 = sphi 0, %s74
      %s77 = sphi 0, %s76
      %s91 = sphi 0, %s77
      %s95 = sphi 0, %s95
      %s97 = sphi 0, %s95
      %s98 = sphi 0, %s97
      %s112 = sphi 0, %s98
      %s116 = sphi 0, %s116
      %s118 = sphi 0, %s116
      %s119 = sphi 0, %s118
      %s133 = sphi 0, %s119
      %s137 = sphi 0, %s137
      %s139 = sphi 0, %s137
      %s140 = sphi 0, %s139
      %s154 = sphi 0, %s140
      %s158 = sphi 0, %s158
      %s160 = sphi 0, %s158
      %s161 = sphi 0, %s160
      %s175 = sphi 0, %s161
      %s179 = sphi 0, %s179
      %s181 = sphi 0, %s179
      %s182 = sphi 0, %s181
      %s196 = sphi 0, %s182
      %s202 = sphi 0, %s204
      %s205 = sphi 0, %s202
      %s206 = sphi 0, %s205
      %s222 = sphi 0, %s206
    $region4: #{tpu_custom_call.1} parent=1 // loop_header_branch
      %22 = sbr.rel (%p20) target = $region8
    $region5: #{tpu_custom_call.1} parent=1 // loop_body
      %s24 = ssub.s32 %s19, 1
      %s25 = ssub.s32 %s19, 2
      %s26 = sadd.s32 %s19, 1
      %s27 = ssub.s32 %s19, %s26
      %p28 = scmp.eq.s32.totalorder %s27, 0
      %s30 = sadd.s32 %s29, 1
      %s31 = scalar_select %p28, %s29, %s30
      %p34 = pneg %p28
      %p35 = scmp.eq.s32.totalorder %s19, 1
      %p36 = por %p34, %p35
      %p37 = scmp.ne.s32.totalorder %s29, %s32
      %p38 = scmp.eq.s32.totalorder %s19, 0
      %p39 = por %p37, %p38
      %p40 = scmp.ne.s32.totalorder %s29, %s32
      %p41 = scmp.eq.s32.totalorder %s24, 1
      %p42 = por %p40, %p41
      %p43 = scmp.ne.s32.totalorder %s32, %s33
      %p44 = scmp.eq.s32.totalorder %s24, 0
      %p45 = por %p43, %p44
      %p46 = scmp.ne.s32.totalorder %s32, %s33
      %p47 = scmp.eq.s32.totalorder %s25, 1
      %p48 = por %p46, %p47
      %p50 = scmp.ne.s32.totalorder %s33, %s49
      %p51 = scmp.eq.s32.totalorder %s25, 0
      %p52 = por %p50, %p51
      %s54 = sadd.s32 %s53, 1
      %p57 = scmp.eq.s32.totalorder %s19, 1
      %p58 = scmp.ne.s32.totalorder %s53, %s55
      %p59 = scmp.eq.s32.totalorder %s19, 0
      %p60 = por %p58, %p59
      %p61 = scmp.ne.s32.totalorder %s53, %s55
      %p62 = scmp.eq.s32.totalorder %s24, 1
      %p63 = por %p61, %p62
      %p64 = scmp.ne.s32.totalorder %s55, %s56
      %p65 = scmp.eq.s32.totalorder %s24, 0
      %p66 = por %p64, %p65
      %p67 = scmp.ne.s32.totalorder %s55, %s56
      %p68 = scmp.eq.s32.totalorder %s25, 1
      %p69 = por %p67, %p68
      %p71 = scmp.ne.s32.totalorder %s56, %s70
      %p72 = scmp.eq.s32.totalorder %s25, 0
      %p73 = por %p71, %p72
      %s75 = sadd.s32 %s74, 1
      %p78 = scmp.eq.s32.totalorder %s19, 1
      %p79 = scmp.ne.s32.totalorder %s74, %s76
      %p80 = scmp.eq.s32.totalorder %s19, 0
      %p81 = por %p79, %p80
      %p82 = scmp.ne.s32.totalorder %s74, %s76
      %p83 = scmp.eq.s32.totalorder %s24, 1
      %p84 = por %p82, %p83
      %p85 = scmp.ne.s32.totalorder %s76, %s77
      %p86 = scmp.eq.s32.totalorder %s24, 0
      %p87 = por %p85, %p86
      %p88 = scmp.ne.s32.totalorder %s76, %s77
      %p89 = scmp.eq.s32.totalorder %s25, 1
      %p90 = por %p88, %p89
      %p92 = scmp.ne.s32.totalorder %s77, %s91
      %p93 = scmp.eq.s32.totalorder %s25, 0
      %p94 = por %p92, %p93
      %s96 = sadd.s32 %s95, 1
      %p99 = scmp.eq.s32.totalorder %s19, 1
      %p100 = scmp.ne.s32.totalorder %s95, %s97
      %p101 = scmp.eq.s32.totalorder %s19, 0
      %p102 = por %p100, %p101
      %p103 = scmp.ne.s32.totalorder %s95, %s97
      %p104 = scmp.eq.s32.totalorder %s24, 1
      %p105 = por %p103, %p104
      %p106 = scmp.ne.s32.totalorder %s97, %s98
      %p107 = scmp.eq.s32.totalorder %s24, 0
      %p108 = por %p106, %p107
      %p109 = scmp.ne.s32.totalorder %s97, %s98
      %p110 = scmp.eq.s32.totalorder %s25, 1
      %p111 = por %p109, %p110
      %p113 = scmp.ne.s32.totalorder %s98, %s112
      %p114 = scmp.eq.s32.totalorder %s25, 0
      %p115 = por %p113, %p114
      %s117 = sadd.s32 %s116, 1
      %p120 = scmp.eq.s32.totalorder %s19, 1
      %p121 = scmp.ne.s32.totalorder %s116, %s118
      %p122 = scmp.eq.s32.totalorder %s19, 0
      %p123 = por %p121, %p122
      %p124 = scmp.ne.s32.totalorder %s116, %s118
      %p125 = scmp.eq.s32.totalorder %s24, 1
      %p126 = por %p124, %p125
      %p127 = scmp.ne.s32.totalorder %s118, %s119
      %p128 = scmp.eq.s32.totalorder %s24, 0
      %p129 = por %p127, %p128
      %p130 = scmp.ne.s32.totalorder %s118, %s119
      %p131 = scmp.eq.s32.totalorder %s25, 1
      %p132 = por %p130, %p131
      %p134 = scmp.ne.s32.totalorder %s119, %s133
      %p135 = scmp.eq.s32.totalorder %s25, 0
      %p136 = por %p134, %p135
      %s138 = sadd.s32 %s137, 1
      %p141 = scmp.eq.s32.totalorder %s19, 1
      %p142 = scmp.ne.s32.totalorder %s137, %s139
      %p143 = scmp.eq.s32.totalorder %s19, 0
      %p144 = por %p142, %p143
      %p145 = scmp.ne.s32.totalorder %s137, %s139
      %p146 = scmp.eq.s32.totalorder %s24, 1
      %p147 = por %p145, %p146
      %p148 = scmp.ne.s32.totalorder %s139, %s140
      %p149 = scmp.eq.s32.totalorder %s24, 0
      %p150 = por %p148, %p149
      %p151 = scmp.ne.s32.totalorder %s139, %s140
      %p152 = scmp.eq.s32.totalorder %s25, 1
      %p153 = por %p151, %p152
      %p155 = scmp.ne.s32.totalorder %s140, %s154
      %p156 = scmp.eq.s32.totalorder %s25, 0
      %p157 = por %p155, %p156
      %s159 = sadd.s32 %s158, 1
      %p162 = scmp.eq.s32.totalorder %s19, 1
      %p163 = scmp.ne.s32.totalorder %s158, %s160
      %p164 = scmp.eq.s32.totalorder %s19, 0
      %p165 = por %p163, %p164
      %p166 = scmp.ne.s32.totalorder %s158, %s160
      %p167 = scmp.eq.s32.totalorder %s24, 1
      %p168 = por %p166, %p167
      %p169 = scmp.ne.s32.totalorder %s160, %s161
      %p170 = scmp.eq.s32.totalorder %s24, 0
      %p171 = por %p169, %p170
      %p172 = scmp.ne.s32.totalorder %s160, %s161
      %p173 = scmp.eq.s32.totalorder %s25, 1
      %p174 = por %p172, %p173
      %p176 = scmp.ne.s32.totalorder %s161, %s175
      %p177 = scmp.eq.s32.totalorder %s25, 0
      %p178 = por %p176, %p177
      %s180 = sadd.s32 %s179, 1
      %p183 = scmp.eq.s32.totalorder %s19, 1
      %p184 = scmp.ne.s32.totalorder %s179, %s181
      %p185 = scmp.eq.s32.totalorder %s19, 0
      %p186 = por %p184, %p185
      %p187 = scmp.ne.s32.totalorder %s179, %s181
      %p188 = scmp.eq.s32.totalorder %s24, 1
      %p189 = por %p187, %p188
      %p190 = scmp.ne.s32.totalorder %s181, %s182
      %p191 = scmp.eq.s32.totalorder %s24, 0
      %p192 = por %p190, %p191
      %p193 = scmp.ne.s32.totalorder %s181, %s182
      %p194 = scmp.eq.s32.totalorder %s25, 1
      %p195 = por %p193, %p194
      %p197 = scmp.ne.s32.totalorder %s182, %s196
      %p198 = scmp.eq.s32.totalorder %s25, 0
      %p199 = por %p197, %p198
      %s200 = ssub.s32 %s19, %s26
      %p201 = scmp.eq.s32.totalorder %s200, 0
      %s203 = sadd.s32 %s202, 1
      %s204 = scalar_select %p201, %s202, %s203
      %p207 = pneg %p201
      %p208 = scmp.eq.s32.totalorder %s19, 1
      %p209 = por %p207, %p208
      %p210 = scmp.ne.s32.totalorder %s202, %s205
      %p211 = scmp.eq.s32.totalorder %s19, 0
      %p212 = por %p210, %p211
      %p213 = scmp.ne.s32.totalorder %s202, %s205
      %p214 = scmp.eq.s32.totalorder %s24, 1
      %p215 = por %p213, %p214
      %p216 = scmp.ne.s32.totalorder %s205, %s206
      %p217 = scmp.eq.s32.totalorder %s24, 0
      %p218 = por %p216, %p217
      %p219 = scmp.ne.s32.totalorder %s205, %s206
      %p220 = scmp.eq.s32.totalorder %s25, 1
      %p221 = por %p219, %p220
      %p223 = scmp.ne.s32.totalorder %s206, %s222
      %p224 = scmp.eq.s32.totalorder %s25, 0
      %p225 = por %p223, %p224
      %p226 = scmp.le.s32.totalorder 1, %s19
      %p227 = scmp.lt.s32.totalorder %s19, 3
      %p228 = pnand %p226, %p227
      %p229 = pneg %p228
      // Predicated region
      $region9: #{tpu_custom_call.1} parent=5 // pred_check
        _
      $region10: #{tpu_custom_call.1} parent=5 // pred_check_branch
        %231 = sbr.rel (%p228) target = $region12
      $region11: #{tpu_custom_call.1} parent=5 // pred_region
        %s232 = ssub.s32 %s19, 1
        // Predicated region
        $region13: #{tpu_custom_call.1} parent=11 // pred_check
          %p233 = pneg %p66
        $region14: #{tpu_custom_call.1} parent=11 // pred_check_branch
          %235 = sbr.rel (%p233) target = $region16
        $region15: #{tpu_custom_call.1} parent=11 // pred_region
          _
        $region16: #{tpu_custom_call.1} parent=11 // pred_fallthru
          _
        // Predicated region
        $region17: #{tpu_custom_call.1} parent=11 // pred_check
          %p236 = pneg %p87
        $region18: #{tpu_custom_call.1} parent=11 // pred_check_branch
          %238 = sbr.rel (%p236) target = $region20
        $region19: #{tpu_custom_call.1} parent=11 // pred_region
          %240 = vsyncadd [#allocation4], 0
          %s241 = sshll.u32 %s2, 4
          %s242 = int_to_ptr.hbm [resolvable:$true] %s241
          %s243 = sshll.u32 [#allocation3], 4
          %s244 = int_to_ptr.vmem [resolvable:$true] %s243
          %249 = dma.hbm_to_vmem [thread:$0]  %s242, 9216, %s244, [#allocation4], 64, 64, 4
        $region20: #{tpu_custom_call.1} parent=11 // pred_fallthru
          _
        // Predicated region
        $region21: #{tpu_custom_call.1} parent=11 // pred_check
          %p250 = pneg %p108
        $region22: #{tpu_custom_call.1} parent=11 // pred_check_branch
          %252 = sbr.rel (%p250) target = $region24
        $region23: #{tpu_custom_call.1} parent=11 // pred_region
          %254 = vsyncadd [#allocation7], 0
          %s255 = sshll.u32 %s3, 4
          %s256 = int_to_ptr.hbm [resolvable:$true] %s255
          %s257 = sshll.u32 [#allocation6], 4
          %s258 = int_to_ptr.vmem [resolvable:$true] %s257
          %263 = dma.hbm_to_vmem [thread:$0]  %s256, 1024, %s258, [#allocation7], 64, 64, 4
        $region24: #{tpu_custom_call.1} parent=11 // pred_fallthru
          _
        // Predicated region
        $region25: #{tpu_custom_call.1} parent=11 // pred_check
          %p264 = pneg %p129
        $region26: #{tpu_custom_call.1} parent=11 // pred_check_branch
          %266 = sbr.rel (%p264) target = $region28
        $region27: #{tpu_custom_call.1} parent=11 // pred_region
          _
        $region28: #{tpu_custom_call.1} parent=11 // pred_fallthru
          _
        // Predicated region
        $region29: #{tpu_custom_call.1} parent=11 // pred_check
          %p267 = pneg %p150
        $region30: #{tpu_custom_call.1} parent=11 // pred_check_branch
          %269 = sbr.rel (%p267) target = $region32
        $region31: #{tpu_custom_call.1} parent=11 // pred_region
          _
        $region32: #{tpu_custom_call.1} parent=11 // pred_fallthru
          _
        // Predicated region
        $region33: #{tpu_custom_call.1} parent=11 // pred_check
          %p270 = pneg %p171
        $region34: #{tpu_custom_call.1} parent=11 // pred_check_branch
          %272 = sbr.rel (%p270) target = $region36
        $region35: #{tpu_custom_call.1} parent=11 // pred_region
          %274 = vsyncadd [#allocation7], 0
          %s275 = sshll.u32 %s6, 4
          %s276 = int_to_ptr.hbm [resolvable:$true] %s275
          %s277 = sshll.u32 [#allocation8], 4
          %s278 = int_to_ptr.vmem [resolvable:$true] %s277
          %283 = dma.hbm_to_vmem [thread:$0]  %s276, 2048, %s278, [#allocation7], 64, 64, 4
        $region36: #{tpu_custom_call.1} parent=11 // pred_fallthru
          _
        // Predicated region
        $region37: #{tpu_custom_call.1} parent=11 // pred_check
          %p284 = pneg %p192
        $region38: #{tpu_custom_call.1} parent=11 // pred_check_branch
          %286 = sbr.rel (%p284) target = $region40
        $region39: #{tpu_custom_call.1} parent=11 // pred_region
          _
        $region40: #{tpu_custom_call.1} parent=11 // pred_fallthru
          _
      $region12: #{tpu_custom_call.1} parent=5 // pred_fallthru
        _
      %p287 = scmp.lt.s32.totalorder %s19, 2
      // Predicated region
      $region41: #{tpu_custom_call.1} parent=5 // pred_check
        %p288 = pneg %p287
      $region42: #{tpu_custom_call.1} parent=5 // pred_check_branch
        %290 = sbr.rel (%p288) target = $region44
      $region43: #{tpu_custom_call.1} parent=5 // pred_region
        // Predicated region
        $region45: #{tpu_custom_call.1} parent=43 // pred_check
          %p291 = pneg %p39
        $region46: #{tpu_custom_call.1} parent=43 // pred_check_branch
          %293 = sbr.rel (%p291) target = $region48
        $region47: #{tpu_custom_call.1} parent=43 // pred_region
          %p294 = scmp.lt.s32.totalorder %s19, 1
          %s295 = scalar_select %p294, %s19, 1
          %s296 = smul.addr %s295, 72
          %s297 = smul.addr %s296, 4
          %s298 = scalar_lea.vmem %s0, %s297
        $region48: #{tpu_custom_call.1} parent=43 // pred_fallthru
          _
      $region44: #{tpu_custom_call.1} parent=5 // pred_fallthru
        _
      %p299 = scmp.le.s32.totalorder 1, %s19
      %p300 = scmp.lt.s32.totalorder %s19, 3
      %p301 = pnand %p299, %p300
      %p302 = pneg %p301
      // Predicated region
      $region49: #{tpu_custom_call.1} parent=5 // pred_check
        _
      $region50: #{tpu_custom_call.1} parent=5 // pred_check_branch
        %304 = sbr.rel (%p301) target = $region52
      $region51: #{tpu_custom_call.1} parent=5 // pred_region
        %s305 = ssub.s32 %s19, 1
        // Predicated region
        $region53: #{tpu_custom_call.1} parent=51 // pred_check
          %p306 = pneg %p87
        $region54: #{tpu_custom_call.1} parent=51 // pred_check_branch
          %308 = sbr.rel (%p306) target = $region56
        $region55: #{tpu_custom_call.1} parent=51 // pred_region
          %310 = dma.done [#allocation4], 9216
        $region56: #{tpu_custom_call.1} parent=51 // pred_fallthru
          _
        // Predicated region
        $region57: #{tpu_custom_call.1} parent=51 // pred_check
          %p311 = pneg %p108
        $region58: #{tpu_custom_call.1} parent=51 // pred_check_branch
          %313 = sbr.rel (%p311) target = $region60
        $region59: #{tpu_custom_call.1} parent=51 // pred_region
          %315 = dma.done [#allocation7], 1024
        $region60: #{tpu_custom_call.1} parent=51 // pred_fallthru
          _
        // Predicated region
        $region61: #{tpu_custom_call.1} parent=51 // pred_check
          %p316 = pneg %p171
        $region62: #{tpu_custom_call.1} parent=51 // pred_check_branch
          %318 = sbr.rel (%p316) target = $region64
        $region63: #{tpu_custom_call.1} parent=51 // pred_region
          %320 = dma.done [#allocation7], 2048
        $region64: #{tpu_custom_call.1} parent=51 // pred_fallthru
          _
        %p321 = scmp.lt.s32.totalorder %s24, 1
        %s322 = scalar_select %p321, %s24, 1
        %s323 = smul.addr %s322, 72
        %s324 = smul.addr %s323, 4
        %s325 = scalar_lea.vmem %s0, %s324
        %p326 = pneg %p45
        %p327 = pneg %p42
        %p328 = pneg %p66
        %p329 = pneg %p63
        %p330 = pneg %p87
        %p331 = pneg %p84
        %p332 = pneg %p108
        %p333 = pneg %p105
        %p334 = pneg %p129
        %p335 = pneg %p126
        %p336 = pneg %p150
        %p337 = pneg %p147
        %p338 = pneg %p171
        %p339 = pneg %p168
        %p340 = pneg %p192
        %p341 = pneg %p189
        %p342 = pneg %p218
        %p343 = pneg %p215
        %s344 = sand.u32 %s205, 1
        %s345 = scalar_lea.sflag [#allocation5], %s344
        %s346 = sand.u32 %s205, 1
        %s347 = smul.addr %s346, 32
        %s348 = scalar_lea.vmem [#allocation9], %s347
        %p349 = scmp.lt.s32.totalorder %s24, 1
        %s350 = scalar_select %p349, %s24, 1
        %s351 = smul.addr %s350, 72
        %s352 = smul.addr %s351, 4
        %s353 = scalar_lea.vmem %s0, %s352
        %v354 = vld [vmem:[%s353] sm:$0xf]
        %v355 = vld [vmem:[%s353 + $0x4] sm:$0xf]
        %v356 = vld [vmem:[%s353 + $0x8] sm:$0xf]
        %v357 = vld [vmem:[%s353 + $0xc] sm:$0xf]
        %v358 = vld [vmem:[%s353 + $0x10] sm:$0xf]
        %v359 = vld [vmem:[%s353 + $0x14] sm:$0xf]
        %v360 = vld [vmem:[%s353 + $0x18] sm:$0xf]
        %v361 = vld [vmem:[%s353 + $0x1c] sm:$0xf]
        %v362 = vld [vmem:[%s353 + $0x20] sm:$0xf]
        %v363 = vld [vmem:[%s353 + $0x24] sm:$0xf]
        %v364 = vld [vmem:[%s353 + $0x28] sm:$0xf]
        %v365 = vld [vmem:[%s353 + $0x2c] sm:$0xf]
        %v366 = vld [vmem:[%s353 + $0x30] sm:$0xf]
        %v367 = vld [vmem:[%s353 + $0x34] sm:$0xf]
        %v368 = vld [vmem:[%s353 + $0x38] sm:$0xf]
        %v369 = vld [vmem:[%s353 + $0x3c] sm:$0xf]
        %v370 = vld [vmem:[%s353 + $0x40] sm:$0xf]
        %v371 = vld [vmem:[%s353 + $0x44] sm:$0xf]
        %v372 = vld [vmem:[%s353 + $0x48] sm:$0xf]
        %v373 = vld [vmem:[%s353 + $0x4c] sm:$0xf]
        %v374 = vld [vmem:[%s353 + $0x50] sm:$0xf]
        %v375 = vld [vmem:[%s353 + $0x54] sm:$0xf]
        %v376 = vld [vmem:[%s353 + $0x58] sm:$0xf]
        %v377 = vld [vmem:[%s353 + $0x5c] sm:$0xf]
        %v378 = vld [vmem:[%s353 + $0x60] sm:$0xf]
        %v379 = vld [vmem:[%s353 + $0x64] sm:$0xf]
        %v380 = vld [vmem:[%s353 + $0x68] sm:$0xf]
        %v381 = vld [vmem:[%s353 + $0x6c] sm:$0xf]
        %v382 = vld [vmem:[%s353 + $0x70] sm:$0xf]
        %v383 = vld [vmem:[%s353 + $0x74] sm:$0xf]
        %v384 = vld [vmem:[%s353 + $0x78] sm:$0xf]
        %v385 = vld [vmem:[%s353 + $0x7c] sm:$0xf]
        %v386 = vld [vmem:[%s353 + $0x80] sm:$0xf]
        %v387 = vld [vmem:[%s353 + $0x84] sm:$0xf]
        %v388 = vld [vmem:[%s353 + $0x88] sm:$0xf]
        %v389 = vld [vmem:[%s353 + $0x8c] sm:$0xf]
        %v390 = vld [vmem:[%s353 + $0x90] sm:$0xf]
        %v391 = vld [vmem:[%s353 + $0x94] sm:$0xf]
        %v392 = vld [vmem:[%s353 + $0x98] sm:$0xf]
        %v393 = vld [vmem:[%s353 + $0x9c] sm:$0xf]
        %v394 = vld [vmem:[%s353 + $0xa0] sm:$0xf]
        %v395 = vld [vmem:[%s353 + $0xa4] sm:$0xf]
        %v396 = vld [vmem:[%s353 + $0xa8] sm:$0xf]
        %v397 = vld [vmem:[%s353 + $0xac] sm:$0xf]
        %v398 = vld [vmem:[%s353 + $0xb0] sm:$0xf]
        %v399 = vld [vmem:[%s353 + $0xb4] sm:$0xf]
        %v400 = vld [vmem:[%s353 + $0xb8] sm:$0xf]
        %v401 = vld [vmem:[%s353 + $0xbc] sm:$0xf]
        %v402 = vld [vmem:[%s353 + $0xc0] sm:$0xf]
        %v403 = vld [vmem:[%s353 + $0xc4] sm:$0xf]
        %v404 = vld [vmem:[%s353 + $0xc8] sm:$0xf]
        %v405 = vld [vmem:[%s353 + $0xcc] sm:$0xf]
        %v406 = vld [vmem:[%s353 + $0xd0] sm:$0xf]
        %v407 = vld [vmem:[%s353 + $0xd4] sm:$0xf]
        %v408 = vld [vmem:[%s353 + $0xd8] sm:$0xf]
        %v409 = vld [vmem:[%s353 + $0xdc] sm:$0xf]
        %v410 = vld [vmem:[%s353 + $0xe0] sm:$0xf]
        %v411 = vld [vmem:[%s353 + $0xe4] sm:$0xf]
        %v412 = vld [vmem:[%s353 + $0xe8] sm:$0xf]
        %v413 = vld [vmem:[%s353 + $0xec] sm:$0xf]
        %v414 = vld [vmem:[%s353 + $0xf0] sm:$0xf]
        %v415 = vld [vmem:[%s353 + $0xf4] sm:$0xf]
        %v416 = vld [vmem:[%s353 + $0xf8] sm:$0xf]
        %v417 = vld [vmem:[%s353 + $0xfc] sm:$0xf]
        %v418 = vld [vmem:[%s353 + $0x100] sm:$0xf]
        %v419 = vld [vmem:[%s353 + $0x104] sm:$0xf]
        %v420 = vld [vmem:[%s353 + $0x108] sm:$0xf]
        %v421 = vld [vmem:[%s353 + $0x10c] sm:$0xf]
        %v422 = vld [vmem:[%s353 + $0x110] sm:$0xf]
        %v423 = vld [vmem:[%s353 + $0x114] sm:$0xf]
        %v424 = vld [vmem:[%s353 + $0x118] sm:$0xf]
        %v425 = vld [vmem:[%s353 + $0x11c] sm:$0xf]
        %v426 = vld [vmem:[#allocation6] sm:$0xf]
        %v427 = vld [vmem:[#allocation6 + $0x4] sm:$0xf]
        %v428 = vld [vmem:[#allocation6 + $0x8] sm:$0xf]
        %v429 = vld [vmem:[#allocation6 + $0xc] sm:$0xf]
        %v430 = vld [vmem:[#allocation6 + $0x10] sm:$0xf]
        %v431 = vld [vmem:[#allocation6 + $0x14] sm:$0xf]
        %v432 = vld [vmem:[#allocation6 + $0x18] sm:$0xf]
        %v433 = vld [vmem:[#allocation6 + $0x1c] sm:$0xf]
        %v434 = vld [vmem:[#allocation6 + $0x20] sm:$0xf]
        %v435 = vld [vmem:[#allocation6 + $0x24] sm:$0xf]
        %v436 = vld [vmem:[#allocation6 + $0x28] sm:$0xf]
        %v437 = vld [vmem:[#allocation6 + $0x2c] sm:$0xf]
        %v438 = vld [vmem:[#allocation6 + $0x30] sm:$0xf]
        %v439 = vld [vmem:[#allocation6 + $0x34] sm:$0xf]
        %v440 = vld [vmem:[#allocation6 + $0x38] sm:$0xf]
        %v441 = vld [vmem:[#allocation6 + $0x3c] sm:$0xf]
        %v442 = vld [vmem:[%s4] sm:$0x1]
        %v444 = vperm.slane %v442, 0
        %v518 = vunpack.c.l.b16 %v354
        %v519 = vunpack.c.l.b16 %v355
        %v520 = vunpack.c.l.b16 %v356
        %v521 = vunpack.c.l.b16 %v357
        %v522 = vunpack.c.l.b16 %v358
        %v523 = vunpack.c.l.b16 %v359
        %v524 = vunpack.c.l.b16 %v360
        %v525 = vunpack.c.l.b16 %v361
        %v526 = vunpack.c.l.b16 %v362
        %v527 = vunpack.c.l.b16 %v363
        %v528 = vunpack.c.l.b16 %v364
        %v529 = vunpack.c.l.b16 %v365
        %v530 = vunpack.c.l.b16 %v366
        %v531 = vunpack.c.l.b16 %v367
        %v532 = vunpack.c.l.b16 %v368
        %v533 = vunpack.c.l.b16 %v369
        %v534 = vunpack.c.l.b16 %v370
        %v535 = vunpack.c.l.b16 %v371
        %v536 = vunpack.c.l.b16 %v372
        %v537 = vunpack.c.l.b16 %v373
        %v538 = vunpack.c.l.b16 %v374
        %v539 = vunpack.c.l.b16 %v375
        %v540 = vunpack.c.l.b16 %v376
        %v541 = vunpack.c.l.b16 %v377
        %v542 = vunpack.c.l.b16 %v378
        %v543 = vunpack.c.l.b16 %v379
        %v544 = vunpack.c.l.b16 %v380
        %v545 = vunpack.c.l.b16 %v381
        %v546 = vunpack.c.l.b16 %v382
        %v547 = vunpack.c.l.b16 %v383
        %v548 = vunpack.c.l.b16 %v384
        %v549 = vunpack.c.l.b16 %v385
        %v550 = vunpack.c.l.b16 %v386
        %v551 = vunpack.c.l.b16 %v387
        %v552 = vunpack.c.l.b16 %v388
        %v553 = vunpack.c.l.b16 %v389
        %v554 = vunpack.c.l.b16 %v390
        %v555 = vunpack.c.l.b16 %v391
        %v556 = vunpack.c.l.b16 %v392
        %v557 = vunpack.c.l.b16 %v393
        %v558 = vunpack.c.l.b16 %v394
        %v559 = vunpack.c.l.b16 %v395
        %v560 = vunpack.c.l.b16 %v396
        %v561 = vunpack.c.l.b16 %v397
        %v562 = vunpack.c.l.b16 %v398
        %v563 = vunpack.c.l.b16 %v399
        %v564 = vunpack.c.l.b16 %v400
        %v565 = vunpack.c.l.b16 %v401
        %v566 = vunpack.c.l.b16 %v402
        %v567 = vunpack.c.l.b16 %v403
        %v568 = vunpack.c.l.b16 %v404
        %v569 = vunpack.c.l.b16 %v405
        %v570 = vunpack.c.l.b16 %v406
        %v571 = vunpack.c.l.b16 %v407
        %v572 = vunpack.c.l.b16 %v408
        %v573 = vunpack.c.l.b16 %v409
        %v574 = vunpack.c.l.b16 %v410
        %v575 = vunpack.c.l.b16 %v411
        %v576 = vunpack.c.l.b16 %v412
        %v577 = vunpack.c.l.b16 %v413
        %v578 = vunpack.c.l.b16 %v414
        %v579 = vunpack.c.l.b16 %v415
        %v580 = vunpack.c.l.b16 %v416
        %v581 = vunpack.c.l.b16 %v417
        %v582 = vunpack.c.l.b16 %v418
        %v583 = vunpack.c.l.b16 %v419
        %v584 = vunpack.c.l.b16 %v420
        %v585 = vunpack.c.l.b16 %v421
        %v586 = vunpack.c.l.b16 %v422
        %v587 = vunpack.c.l.b16 %v423
        %v588 = vunpack.c.l.b16 %v424
        %v589 = vunpack.c.l.b16 %v425
        %v590 = vpack.c.b16 %v519, %v518
        %v591 = vpack.c.b16 %v521, %v520
        %v592 = vpack.c.b16 %v523, %v522
        %v593 = vpack.c.b16 %v525, %v524
        %v594 = vpack.c.b16 %v527, %v526
        %v595 = vpack.c.b16 %v529, %v528
        %v596 = vpack.c.b16 %v531, %v530
        %v597 = vpack.c.b16 %v533, %v532
        %v598 = vpack.c.b16 %v535, %v534
        %v599 = vpack.c.b16 %v537, %v536
        %v600 = vpack.c.b16 %v539, %v538
        %v601 = vpack.c.b16 %v541, %v540
        %v602 = vpack.c.b16 %v543, %v542
        %v603 = vpack.c.b16 %v545, %v544
        %v604 = vpack.c.b16 %v547, %v546
        %v605 = vpack.c.b16 %v549, %v548
        %v606 = vpack.c.b16 %v551, %v550
        %v607 = vpack.c.b16 %v553, %v552
        %v608 = vpack.c.b16 %v555, %v554
        %v609 = vpack.c.b16 %v557, %v556
        %v610 = vpack.c.b16 %v559, %v558
        %v611 = vpack.c.b16 %v561, %v560
        %v612 = vpack.c.b16 %v563, %v562
        %v613 = vpack.c.b16 %v565, %v564
        %v614 = vpack.c.b16 %v567, %v566
        %v615 = vpack.c.b16 %v569, %v568
        %v616 = vpack.c.b16 %v571, %v570
        %v617 = vpack.c.b16 %v573, %v572
        %v618 = vpack.c.b16 %v575, %v574
        %v619 = vpack.c.b16 %v577, %v576
        %v620 = vpack.c.b16 %v579, %v578
        %v621 = vpack.c.b16 %v581, %v580
        %v622 = vpack.c.b16 %v583, %v582
        %v623 = vpack.c.b16 %v585, %v584
        %v624 = vpack.c.b16 %v587, %v586
        %v625 = vpack.c.b16 %v589, %v588
        %v678 = vunpack.c.l.b16 %v426
        %v679 = vunpack.c.l.b16 %v427
        %v680 = vunpack.c.l.b16 %v428
        %v681 = vunpack.c.l.b16 %v429
        %v682 = vunpack.c.l.b16 %v430
        %v683 = vunpack.c.l.b16 %v431
        %v684 = vunpack.c.l.b16 %v432
        %v685 = vunpack.c.l.b16 %v433
        %v686 = vunpack.c.l.b16 %v434
        %v687 = vunpack.c.l.b16 %v435
        %v688 = vunpack.c.l.b16 %v436
        %v689 = vunpack.c.l.b16 %v437
        %v690 = vunpack.c.l.b16 %v438
        %v691 = vunpack.c.l.b16 %v439
        %v692 = vunpack.c.l.b16 %v440
        %v693 = vunpack.c.l.b16 %v441
        %v694 = vpack.c.b16 %v679, %v678
        %v695 = vpack.c.b16 %v681, %v680
        %v696 = vpack.c.b16 %v683, %v682
        %v697 = vpack.c.b16 %v685, %v684
        %v698 = vpack.c.b16 %v687, %v686
        %v699 = vpack.c.b16 %v689, %v688
        %v700 = vpack.c.b16 %v691, %v690
        %v701 = vpack.c.b16 %v693, %v692
        %710 = vmatpush.bf16.msra.mxu0 %v701
        %711 = vmatpush.bf16.msra.mxu0 %v700
        %712 = vmatpush.bf16.msra.mxu0 %v699
        %713 = vmatpush.bf16.msra.mxu0 %v698
        %714 = vmatpush.bf16.msra.mxu0 %v697
        %715 = vmatpush.bf16.msra.mxu0 %v696
        %716 = vmatpush.bf16.msra.mxu0 %v695
        %717 = vmatpush.bf16.msra.mxu0 %v694
        %718 = vmatmul.bf16.gmra.mxu0 %v590
        %v719 = vpop.f32.mrf.mxu0
        %v720 = vadd.f32 %v444, %v719
        %v721 = vpop.f32.mrf.mxu0
        %v722 = vadd.f32 %v444, %v721
        %723 = vmatmul.bf16.gmra.mxu0 %v591
        %v724 = vpop.f32.mrf.mxu0
        %v725 = vadd.f32 %v444, %v724
        %v726 = vpop.f32.mrf.mxu0
        %v727 = vadd.f32 %v444, %v726
        %728 = vmatmul.bf16.gmra.mxu0 %v592
        %v729 = vpop.f32.mrf.mxu0
        %v730 = vadd.f32 %v444, %v729
        %v731 = vpop.f32.mrf.mxu0
        %v732 = vadd.f32 %v444, %v731
        %733 = vmatmul.bf16.gmra.mxu0 %v593
        %v734 = vpop.f32.mrf.mxu0
        %v735 = vadd.f32 %v444, %v734
        %v736 = vpop.f32.mrf.mxu0
        %v737 = vadd.f32 %v444, %v736
        %738 = vmatmul.bf16.gmra.mxu0 %v594
        %v739 = vpop.f32.mrf.mxu0
        %v740 = vadd.f32 %v444, %v739
        %v741 = vpop.f32.mrf.mxu0
        %v742 = vadd.f32 %v444, %v741
        %743 = vmatmul.bf16.gmra.mxu0 %v595
        %v744 = vpop.f32.mrf.mxu0
        %v745 = vadd.f32 %v444, %v744
        %v746 = vpop.f32.mrf.mxu0
        %v747 = vadd.f32 %v444, %v746
        %748 = vmatmul.bf16.gmra.mxu0 %v596
        %v749 = vpop.f32.mrf.mxu0
        %v750 = vadd.f32 %v444, %v749
        %v751 = vpop.f32.mrf.mxu0
        %v752 = vadd.f32 %v444, %v751
        %753 = vmatmul.bf16.gmra.mxu0 %v597
        %v754 = vpop.f32.mrf.mxu0
        %v755 = vadd.f32 %v444, %v754
        %v756 = vpop.f32.mrf.mxu0
        %v757 = vadd.f32 %v444, %v756
        %758 = vmatmul.bf16.gmra.mxu0 %v598
        %v759 = vpop.f32.mrf.mxu0
        %v760 = vadd.f32 %v444, %v759
        %v761 = vpop.f32.mrf.mxu0
        %v762 = vadd.f32 %v444, %v761
        %763 = vmatmul.bf16.gmra.mxu0 %v599
        %v764 = vpop.f32.mrf.mxu0
        %v765 = vadd.f32 %v444, %v764
        %v766 = vpop.f32.mrf.mxu0
        %v767 = vadd.f32 %v444, %v766
        %768 = vmatmul.bf16.gmra.mxu0 %v600
        %v769 = vpop.f32.mrf.mxu0
        %v770 = vadd.f32 %v444, %v769
        %v771 = vpop.f32.mrf.mxu0
        %v772 = vadd.f32 %v444, %v771
        %773 = vmatmul.bf16.gmra.mxu0 %v601
        %v774 = vpop.f32.mrf.mxu0
        %v775 = vadd.f32 %v444, %v774
        %v776 = vpop.f32.mrf.mxu0
        %v777 = vadd.f32 %v444, %v776
        %778 = vmatmul.bf16.gmra.mxu0 %v602
        %v779 = vpop.f32.mrf.mxu0
        %v780 = vadd.f32 %v444, %v779
        %v781 = vpop.f32.mrf.mxu0
        %v782 = vadd.f32 %v444, %v781
        %783 = vmatmul.bf16.gmra.mxu0 %v603
        %v784 = vpop.f32.mrf.mxu0
        %v785 = vadd.f32 %v444, %v784
        %v786 = vpop.f32.mrf.mxu0
        %v787 = vadd.f32 %v444, %v786
        %788 = vmatmul.bf16.gmra.mxu0 %v604
        %v789 = vpop.f32.mrf.mxu0
        %v790 = vadd.f32 %v444, %v789
        %v791 = vpop.f32.mrf.mxu0
        %v792 = vadd.f32 %v444, %v791
        %793 = vmatmul.bf16.gmra.mxu0 %v605
        %v794 = vpop.f32.mrf.mxu0
        %v795 = vadd.f32 %v444, %v794
        %v796 = vpop.f32.mrf.mxu0
        %v797 = vadd.f32 %v444, %v796
        %798 = vmatmul.bf16.gmra.mxu0 %v606
        %v799 = vpop.f32.mrf.mxu0
        %v800 = vadd.f32 %v444, %v799
        %v801 = vpop.f32.mrf.mxu0
        %v802 = vadd.f32 %v444, %v801
        %803 = vmatmul.bf16.gmra.mxu0 %v607
        %v804 = vpop.f32.mrf.mxu0
        %v805 = vadd.f32 %v444, %v804
        %v806 = vpop.f32.mrf.mxu0
        %v807 = vadd.f32 %v444, %v806
        %808 = vmatmul.bf16.gmra.mxu0 %v608
        %v809 = vpop.f32.mrf.mxu0
        %v810 = vadd.f32 %v444, %v809
        %v811 = vpop.f32.mrf.mxu0
        %v812 = vadd.f32 %v444, %v811
        %813 = vmatmul.bf16.gmra.mxu0 %v609
        %v814 = vpop.f32.mrf.mxu0
        %v815 = vadd.f32 %v444, %v814
        %v816 = vpop.f32.mrf.mxu0
        %v817 = vadd.f32 %v444, %v816
        %818 = vmatmul.bf16.gmra.mxu0 %v610
        %v819 = vpop.f32.mrf.mxu0
        %v820 = vadd.f32 %v444, %v819
        %v821 = vpop.f32.mrf.mxu0
        %v822 = vadd.f32 %v444, %v821
        %823 = vmatmul.bf16.gmra.mxu0 %v611
        %v824 = vpop.f32.mrf.mxu0
        %v825 = vadd.f32 %v444, %v824
        %v826 = vpop.f32.mrf.mxu0
        %v827 = vadd.f32 %v444, %v826
        %828 = vmatmul.bf16.gmra.mxu0 %v612
        %v829 = vpop.f32.mrf.mxu0
        %v830 = vadd.f32 %v444, %v829
        %v831 = vpop.f32.mrf.mxu0
        %v832 = vadd.f32 %v444, %v831
        %833 = vmatmul.bf16.gmra.mxu0 %v613
        %v834 = vpop.f32.mrf.mxu0
        %v835 = vadd.f32 %v444, %v834
        %v836 = vpop.f32.mrf.mxu0
        %v837 = vadd.f32 %v444, %v836
        %838 = vmatmul.bf16.gmra.mxu0 %v614
        %v839 = vpop.f32.mrf.mxu0
        %v840 = vadd.f32 %v444, %v839
        %v841 = vpop.f32.mrf.mxu0
        %v842 = vadd.f32 %v444, %v841
        %843 = vmatmul.bf16.gmra.mxu0 %v615
        %v844 = vpop.f32.mrf.mxu0
        %v845 = vadd.f32 %v444, %v844
        %v846 = vpop.f32.mrf.mxu0
        %v847 = vadd.f32 %v444, %v846
        %848 = vmatmul.bf16.gmra.mxu0 %v616
        %v849 = vpop.f32.mrf.mxu0
        %v850 = vadd.f32 %v444, %v849
        %v851 = vpop.f32.mrf.mxu0
        %v852 = vadd.f32 %v444, %v851
        %853 = vmatmul.bf16.gmra.mxu0 %v617
        %v854 = vpop.f32.mrf.mxu0
        %v855 = vadd.f32 %v444, %v854
        %v856 = vpop.f32.mrf.mxu0
        %v857 = vadd.f32 %v444, %v856
        %858 = vmatmul.bf16.gmra.mxu0 %v618
        %v859 = vpop.f32.mrf.mxu0
        %v860 = vadd.f32 %v444, %v859
        %v861 = vpop.f32.mrf.mxu0
        %v862 = vadd.f32 %v444, %v861
        %863 = vmatmul.bf16.gmra.mxu0 %v619
        %v864 = vpop.f32.mrf.mxu0
        %v865 = vadd.f32 %v444, %v864
        %v866 = vpop.f32.mrf.mxu0
        %v867 = vadd.f32 %v444, %v866
        %868 = vmatmul.bf16.gmra.mxu0 %v620
        %v869 = vpop.f32.mrf.mxu0
        %v870 = vadd.f32 %v444, %v869
        %v871 = vpop.f32.mrf.mxu0
        %v872 = vadd.f32 %v444, %v871
        %873 = vmatmul.bf16.gmra.mxu0 %v621
        %v874 = vpop.f32.mrf.mxu0
        %v875 = vadd.f32 %v444, %v874
        %v876 = vpop.f32.mrf.mxu0
        %v877 = vadd.f32 %v444, %v876
        %878 = vmatmul.bf16.gmra.mxu0 %v622
        %v879 = vpop.f32.mrf.mxu0
        %v880 = vadd.f32 %v444, %v879
        %v881 = vpop.f32.mrf.mxu0
        %v882 = vadd.f32 %v444, %v881
        %883 = vmatmul.bf16.gmra.mxu0 %v623
        %v884 = vpop.f32.mrf.mxu0
        %v885 = vadd.f32 %v444, %v884
        %v886 = vpop.f32.mrf.mxu0
        %v887 = vadd.f32 %v444, %v886
        %888 = vmatmul.bf16.gmra.mxu0 %v624
        %v889 = vpop.f32.mrf.mxu0
        %v890 = vadd.f32 %v444, %v889
        %v891 = vpop.f32.mrf.mxu0
        %v892 = vadd.f32 %v444, %v891
        %893 = vmatmul.bf16.gmra.mxu0 %v625
        %v894 = vpop.f32.mrf.mxu0
        %v895 = vadd.f32 %v444, %v894
        %v896 = vpop.f32.mrf.mxu0
        %v897 = vadd.f32 %v444, %v896
        %898 = vdwg.mxu0
        %v899 = vmax.f32 %v720, 0.0
        %v900 = vmax.f32 %v722, 0.0
        %v901 = vmax.f32 %v725, 0.0
        %v902 = vmax.f32 %v727, 0.0
        %v903 = vmax.f32 %v730, 0.0
        %v904 = vmax.f32 %v732, 0.0
        %v905 = vmax.f32 %v735, 0.0
        %v906 = vmax.f32 %v737, 0.0
        %v907 = vmax.f32 %v740, 0.0
        %v908 = vmax.f32 %v742, 0.0
        %v909 = vmax.f32 %v745, 0.0
        %v910 = vmax.f32 %v747, 0.0
        %v911 = vmax.f32 %v750, 0.0
        %v912 = vmax.f32 %v752, 0.0
        %v913 = vmax.f32 %v755, 0.0
        %v914 = vmax.f32 %v757, 0.0
        %v915 = vmax.f32 %v760, 0.0
        %v916 = vmax.f32 %v762, 0.0
        %v917 = vmax.f32 %v765, 0.0
        %v918 = vmax.f32 %v767, 0.0
        %v919 = vmax.f32 %v770, 0.0
        %v920 = vmax.f32 %v772, 0.0
        %v921 = vmax.f32 %v775, 0.0
        %v922 = vmax.f32 %v777, 0.0
        %v923 = vmax.f32 %v780, 0.0
        %v924 = vmax.f32 %v782, 0.0
        %v925 = vmax.f32 %v785, 0.0
        %v926 = vmax.f32 %v787, 0.0
        %v927 = vmax.f32 %v790, 0.0
        %v928 = vmax.f32 %v792, 0.0
        %v929 = vmax.f32 %v795, 0.0
        %v930 = vmax.f32 %v797, 0.0
        %v931 = vmax.f32 %v800, 0.0
        %v932 = vmax.f32 %v802, 0.0
        %v933 = vmax.f32 %v805, 0.0
        %v934 = vmax.f32 %v807, 0.0
        %v935 = vmax.f32 %v810, 0.0
        %v936 = vmax.f32 %v812, 0.0
        %v937 = vmax.f32 %v815, 0.0
        %v938 = vmax.f32 %v817, 0.0
        %v939 = vmax.f32 %v820, 0.0
        %v940 = vmax.f32 %v822, 0.0
        %v941 = vmax.f32 %v825, 0.0
        %v942 = vmax.f32 %v827, 0.0
        %v943 = vmax.f32 %v830, 0.0
        %v944 = vmax.f32 %v832, 0.0
        %v945 = vmax.f32 %v835, 0.0
        %v946 = vmax.f32 %v837, 0.0
        %v947 = vmax.f32 %v840, 0.0
        %v948 = vmax.f32 %v842, 0.0
        %v949 = vmax.f32 %v845, 0.0
        %v950 = vmax.f32 %v847, 0.0
        %v951 = vmax.f32 %v850, 0.0
        %v952 = vmax.f32 %v852, 0.0
        %v953 = vmax.f32 %v855, 0.0
        %v954 = vmax.f32 %v857, 0.0
        %v955 = vmax.f32 %v860, 0.0
        %v956 = vmax.f32 %v862, 0.0
        %v957 = vmax.f32 %v865, 0.0
        %v958 = vmax.f32 %v867, 0.0
        %v959 = vmax.f32 %v870, 0.0
        %v960 = vmax.f32 %v872, 0.0
        %v961 = vmax.f32 %v875, 0.0
        %v962 = vmax.f32 %v877, 0.0
        %v963 = vmax.f32 %v880, 0.0
        %v964 = vmax.f32 %v882, 0.0
        %v965 = vmax.f32 %v885, 0.0
        %v966 = vmax.f32 %v887, 0.0
        %v967 = vmax.f32 %v890, 0.0
        %v968 = vmax.f32 %v892, 0.0
        %v969 = vmax.f32 %v895, 0.0
        %v970 = vmax.f32 %v897, 0.0
        %v971 = vld [vmem:[%s1] sm:$0xff]
        %v972 = vld [vmem:[%s1 + $0x8] sm:$0xff]
        %v973 = vld [vmem:[%s1 + $0x10] sm:$0xff]
        %v974 = vld [vmem:[%s1 + $0x18] sm:$0xff]
        %v975 = vld [vmem:[%s1 + $0x20] sm:$0xff]
        %v976 = vld [vmem:[%s1 + $0x28] sm:$0xff]
        %v977 = vld [vmem:[%s1 + $0x30] sm:$0xff]
        %v978 = vld [vmem:[%s1 + $0x38] sm:$0xff]
        %v979 = vld [vmem:[%s1 + $0x40] sm:$0xff]
        %v980 = vld [vmem:[%s1 + $0x48] sm:$0xff]
        %v981 = vld [vmem:[%s1 + $0x50] sm:$0xff]
        %v982 = vld [vmem:[%s1 + $0x58] sm:$0xff]
        %v983 = vld [vmem:[%s1 + $0x60] sm:$0xff]
        %v984 = vld [vmem:[%s1 + $0x68] sm:$0xff]
        %v985 = vld [vmem:[%s1 + $0x70] sm:$0xff]
        %v986 = vld [vmem:[%s1 + $0x78] sm:$0xff]
        %v987 = vld [vmem:[%s1 + $0x80] sm:$0xff]
        %v988 = vld [vmem:[%s1 + $0x88] sm:$0xff]
        %v989 = vld [vmem:[%s1 + $0x90] sm:$0xff]
        %v990 = vld [vmem:[%s1 + $0x98] sm:$0xff]
        %v991 = vld [vmem:[%s1 + $0xa0] sm:$0xff]
        %v992 = vld [vmem:[%s1 + $0xa8] sm:$0xff]
        %v993 = vld [vmem:[%s1 + $0xb0] sm:$0xff]
        %v994 = vld [vmem:[%s1 + $0xb8] sm:$0xff]
        %v995 = vld [vmem:[%s1 + $0xc0] sm:$0xff]
        %v996 = vld [vmem:[%s1 + $0xc8] sm:$0xff]
        %v997 = vld [vmem:[%s1 + $0xd0] sm:$0xff]
        %v998 = vld [vmem:[%s1 + $0xd8] sm:$0xff]
        %v999 = vld [vmem:[%s1 + $0xe0] sm:$0xff]
        %v1000 = vld [vmem:[%s1 + $0xe8] sm:$0xff]
        %v1001 = vld [vmem:[%s1 + $0xf0] sm:$0xff]
        %v1002 = vld [vmem:[%s1 + $0xf8] sm:$0xff]
        %v1003 = vld [vmem:[%s1 + $0x100] sm:$0xff]
        %v1004 = vld [vmem:[%s1 + $0x108] sm:$0xff]
        %v1005 = vld [vmem:[%s1 + $0x110] sm:$0xff]
        %v1006 = vld [vmem:[%s1 + $0x118] sm:$0xff]
        %v1007 = vld [vmem:[%s1 + $0x120] sm:$0xff]
        %v1008 = vld [vmem:[%s1 + $0x128] sm:$0xff]
        %v1009 = vld [vmem:[%s1 + $0x130] sm:$0xff]
        %v1010 = vld [vmem:[%s1 + $0x138] sm:$0xff]
        %v1011 = vld [vmem:[%s1 + $0x140] sm:$0xff]
        %v1012 = vld [vmem:[%s1 + $0x148] sm:$0xff]
        %v1013 = vld [vmem:[%s1 + $0x150] sm:$0xff]
        %v1014 = vld [vmem:[%s1 + $0x158] sm:$0xff]
        %v1015 = vld [vmem:[%s1 + $0x160] sm:$0xff]
        %v1016 = vld [vmem:[%s1 + $0x168] sm:$0xff]
        %v1017 = vld [vmem:[%s1 + $0x170] sm:$0xff]
        %v1018 = vld [vmem:[%s1 + $0x178] sm:$0xff]
        %v1019 = vld [vmem:[%s1 + $0x180] sm:$0xff]
        %v1020 = vld [vmem:[%s1 + $0x188] sm:$0xff]
        %v1021 = vld [vmem:[%s1 + $0x190] sm:$0xff]
        %v1022 = vld [vmem:[%s1 + $0x198] sm:$0xff]
        %v1023 = vld [vmem:[%s1 + $0x1a0] sm:$0xff]
        %v1024 = vld [vmem:[%s1 + $0x1a8] sm:$0xff]
        %v1025 = vld [vmem:[%s1 + $0x1b0] sm:$0xff]
        %v1026 = vld [vmem:[%s1 + $0x1b8] sm:$0xff]
        %v1027 = vld [vmem:[%s1 + $0x1c0] sm:$0xff]
        %v1028 = vld [vmem:[%s1 + $0x1c8] sm:$0xff]
        %v1029 = vld [vmem:[%s1 + $0x1d0] sm:$0xff]
        %v1030 = vld [vmem:[%s1 + $0x1d8] sm:$0xff]
        %v1031 = vld [vmem:[%s1 + $0x1e0] sm:$0xff]
        %v1032 = vld [vmem:[%s1 + $0x1e8] sm:$0xff]
        %v1033 = vld [vmem:[%s1 + $0x1f0] sm:$0xff]
        %v1034 = vld [vmem:[%s1 + $0x1f8] sm:$0xff]
        %v1035 = vld [vmem:[%s1 + $0x200] sm:$0xff]
        %v1036 = vld [vmem:[%s1 + $0x208] sm:$0xff]
        %v1037 = vld [vmem:[%s1 + $0x210] sm:$0xff]
        %v1038 = vld [vmem:[%s1 + $0x218] sm:$0xff]
        %v1039 = vld [vmem:[%s1 + $0x220] sm:$0xff]
        %v1040 = vld [vmem:[%s1 + $0x228] sm:$0xff]
        %v1041 = vld [vmem:[%s1 + $0x230] sm:$0xff]
        %v1042 = vld [vmem:[%s1 + $0x238] sm:$0xff]
        %1044 = vset.pattern.permute.xlu0 0
        %1045 = vperm.xlu0 %1044, %v971
        %v1046 = vpop.permute.xlu0 %1045
        %1049 = vset.pattern.permute.xlu0 0
        %1050 = vperm.xlu0 %1049, %v972
        %v1051 = vpop.permute.xlu0 %1050
        %1054 = vset.pattern.permute.xlu0 0
        %1055 = vperm.xlu0 %1054, %v973
        %v1056 = vpop.permute.xlu0 %1055
        %1059 = vset.pattern.permute.xlu0 0
        %1060 = vperm.xlu0 %1059, %v974
        %v1061 = vpop.permute.xlu0 %1060
        %1064 = vset.pattern.permute.xlu0 0
        %1065 = vperm.xlu0 %1064, %v975
        %v1066 = vpop.permute.xlu0 %1065
        %1069 = vset.pattern.permute.xlu0 0
        %1070 = vperm.xlu0 %1069, %v976
        %v1071 = vpop.permute.xlu0 %1070
        %1074 = vset.pattern.permute.xlu0 0
        %1075 = vperm.xlu0 %1074, %v977
        %v1076 = vpop.permute.xlu0 %1075
        %1079 = vset.pattern.permute.xlu0 0
        %1080 = vperm.xlu0 %1079, %v978
        %v1081 = vpop.permute.xlu0 %1080
        %1084 = vset.pattern.permute.xlu0 0
        %1085 = vperm.xlu0 %1084, %v979
        %v1086 = vpop.permute.xlu0 %1085
        %1089 = vset.pattern.permute.xlu0 0
        %1090 = vperm.xlu0 %1089, %v980
        %v1091 = vpop.permute.xlu0 %1090
        %1094 = vset.pattern.permute.xlu0 0
        %1095 = vperm.xlu0 %1094, %v981
        %v1096 = vpop.permute.xlu0 %1095
        %1099 = vset.pattern.permute.xlu0 0
        %1100 = vperm.xlu0 %1099, %v982
        %v1101 = vpop.permute.xlu0 %1100
        %1104 = vset.pattern.permute.xlu0 0
        %1105 = vperm.xlu0 %1104, %v983
        %v1106 = vpop.permute.xlu0 %1105
        %1109 = vset.pattern.permute.xlu0 0
        %1110 = vperm.xlu0 %1109, %v984
        %v1111 = vpop.permute.xlu0 %1110
        %1114 = vset.pattern.permute.xlu0 0
        %1115 = vperm.xlu0 %1114, %v985
        %v1116 = vpop.permute.xlu0 %1115
        %1119 = vset.pattern.permute.xlu0 0
        %1120 = vperm.xlu0 %1119, %v986
        %v1121 = vpop.permute.xlu0 %1120
        %1124 = vset.pattern.permute.xlu0 0
        %1125 = vperm.xlu0 %1124, %v987
        %v1126 = vpop.permute.xlu0 %1125
        %1129 = vset.pattern.permute.xlu0 0
        %1130 = vperm.xlu0 %1129, %v988
        %v1131 = vpop.permute.xlu0 %1130
        %1134 = vset.pattern.permute.xlu0 0
        %1135 = vperm.xlu0 %1134, %v989
        %v1136 = vpop.permute.xlu0 %1135
        %1139 = vset.pattern.permute.xlu0 0
        %1140 = vperm.xlu0 %1139, %v990
        %v1141 = vpop.permute.xlu0 %1140
        %1144 = vset.pattern.permute.xlu0 0
        %1145 = vperm.xlu0 %1144, %v991
        %v1146 = vpop.permute.xlu0 %1145
        %1149 = vset.pattern.permute.xlu0 0
        %1150 = vperm.xlu0 %1149, %v992
        %v1151 = vpop.permute.xlu0 %1150
        %1154 = vset.pattern.permute.xlu0 0
        %1155 = vperm.xlu0 %1154, %v993
        %v1156 = vpop.permute.xlu0 %1155
        %1159 = vset.pattern.permute.xlu0 0
        %1160 = vperm.xlu0 %1159, %v994
        %v1161 = vpop.permute.xlu0 %1160
        %1164 = vset.pattern.permute.xlu0 0
        %1165 = vperm.xlu0 %1164, %v995
        %v1166 = vpop.permute.xlu0 %1165
        %1169 = vset.pattern.permute.xlu0 0
        %1170 = vperm.xlu0 %1169, %v996
        %v1171 = vpop.permute.xlu0 %1170
        %1174 = vset.pattern.permute.xlu0 0
        %1175 = vperm.xlu0 %1174, %v997
        %v1176 = vpop.permute.xlu0 %1175
        %1179 = vset.pattern.permute.xlu0 0
        %1180 = vperm.xlu0 %1179, %v998
        %v1181 = vpop.permute.xlu0 %1180
        %1184 = vset.pattern.permute.xlu0 0
        %1185 = vperm.xlu0 %1184, %v999
        %v1186 = vpop.permute.xlu0 %1185
        %1189 = vset.pattern.permute.xlu0 0
        %1190 = vperm.xlu0 %1189, %v1000
        %v1191 = vpop.permute.xlu0 %1190
        %1194 = vset.pattern.permute.xlu0 0
        %1195 = vperm.xlu0 %1194, %v1001
        %v1196 = vpop.permute.xlu0 %1195
        %1199 = vset.pattern.permute.xlu0 0
        %1200 = vperm.xlu0 %1199, %v1002
        %v1201 = vpop.permute.xlu0 %1200
        %1204 = vset.pattern.permute.xlu0 0
        %1205 = vperm.xlu0 %1204, %v1003
        %v1206 = vpop.permute.xlu0 %1205
        %1209 = vset.pattern.permute.xlu0 0
        %1210 = vperm.xlu0 %1209, %v1004
        %v1211 = vpop.permute.xlu0 %1210
        %1214 = vset.pattern.permute.xlu0 0
        %1215 = vperm.xlu0 %1214, %v1005
        %v1216 = vpop.permute.xlu0 %1215
        %1219 = vset.pattern.permute.xlu0 0
        %1220 = vperm.xlu0 %1219, %v1006
        %v1221 = vpop.permute.xlu0 %1220
        %1224 = vset.pattern.permute.xlu0 0
        %1225 = vperm.xlu0 %1224, %v1007
        %v1226 = vpop.permute.xlu0 %1225
        %1229 = vset.pattern.permute.xlu0 0
        %1230 = vperm.xlu0 %1229, %v1008
        %v1231 = vpop.permute.xlu0 %1230
        %1234 = vset.pattern.permute.xlu0 0
        %1235 = vperm.xlu0 %1234, %v1009
        %v1236 = vpop.permute.xlu0 %1235
        %1239 = vset.pattern.permute.xlu0 0
        %1240 = vperm.xlu0 %1239, %v1010
        %v1241 = vpop.permute.xlu0 %1240
        %1244 = vset.pattern.permute.xlu0 0
        %1245 = vperm.xlu0 %1244, %v1011
        %v1246 = vpop.permute.xlu0 %1245
        %1249 = vset.pattern.permute.xlu0 0
        %1250 = vperm.xlu0 %1249, %v1012
        %v1251 = vpop.permute.xlu0 %1250
        %1254 = vset.pattern.permute.xlu0 0
        %1255 = vperm.xlu0 %1254, %v1013
        %v1256 = vpop.permute.xlu0 %1255
        %1259 = vset.pattern.permute.xlu0 0
        %1260 = vperm.xlu0 %1259, %v1014
        %v1261 = vpop.permute.xlu0 %1260
        %1264 = vset.pattern.permute.xlu0 0
        %1265 = vperm.xlu0 %1264, %v1015
        %v1266 = vpop.permute.xlu0 %1265
        %1269 = vset.pattern.permute.xlu0 0
        %1270 = vperm.xlu0 %1269, %v1016
        %v1271 = vpop.permute.xlu0 %1270
        %1274 = vset.pattern.permute.xlu0 0
        %1275 = vperm.xlu0 %1274, %v1017
        %v1276 = vpop.permute.xlu0 %1275
        %1279 = vset.pattern.permute.xlu0 0
        %1280 = vperm.xlu0 %1279, %v1018
        %v1281 = vpop.permute.xlu0 %1280
        %1284 = vset.pattern.permute.xlu0 0
        %1285 = vperm.xlu0 %1284, %v1019
        %v1286 = vpop.permute.xlu0 %1285
        %1289 = vset.pattern.permute.xlu0 0
        %1290 = vperm.xlu0 %1289, %v1020
        %v1291 = vpop.permute.xlu0 %1290
        %1294 = vset.pattern.permute.xlu0 0
        %1295 = vperm.xlu0 %1294, %v1021
        %v1296 = vpop.permute.xlu0 %1295
        %1299 = vset.pattern.permute.xlu0 0
        %1300 = vperm.xlu0 %1299, %v1022
        %v1301 = vpop.permute.xlu0 %1300
        %1304 = vset.pattern.permute.xlu0 0
        %1305 = vperm.xlu0 %1304, %v1023
        %v1306 = vpop.permute.xlu0 %1305
        %1309 = vset.pattern.permute.xlu0 0
        %1310 = vperm.xlu0 %1309, %v1024
        %v1311 = vpop.permute.xlu0 %1310
        %1314 = vset.pattern.permute.xlu0 0
        %1315 = vperm.xlu0 %1314, %v1025
        %v1316 = vpop.permute.xlu0 %1315
        %1319 = vset.pattern.permute.xlu0 0
        %1320 = vperm.xlu0 %1319, %v1026
        %v1321 = vpop.permute.xlu0 %1320
        %1324 = vset.pattern.permute.xlu0 0
        %1325 = vperm.xlu0 %1324, %v1027
        %v1326 = vpop.permute.xlu0 %1325
        %1329 = vset.pattern.permute.xlu0 0
        %1330 = vperm.xlu0 %1329, %v1028
        %v1331 = vpop.permute.xlu0 %1330
        %1334 = vset.pattern.permute.xlu0 0
        %1335 = vperm.xlu0 %1334, %v1029
        %v1336 = vpop.permute.xlu0 %1335
        %1339 = vset.pattern.permute.xlu0 0
        %1340 = vperm.xlu0 %1339, %v1030
        %v1341 = vpop.permute.xlu0 %1340
        %1344 = vset.pattern.permute.xlu0 0
        %1345 = vperm.xlu0 %1344, %v1031
        %v1346 = vpop.permute.xlu0 %1345
        %1349 = vset.pattern.permute.xlu0 0
        %1350 = vperm.xlu0 %1349, %v1032
        %v1351 = vpop.permute.xlu0 %1350
        %1354 = vset.pattern.permute.xlu0 0
        %1355 = vperm.xlu0 %1354, %v1033
        %v1356 = vpop.permute.xlu0 %1355
        %1359 = vset.pattern.permute.xlu0 0
        %1360 = vperm.xlu0 %1359, %v1034
        %v1361 = vpop.permute.xlu0 %1360
        %1364 = vset.pattern.permute.xlu0 0
        %1365 = vperm.xlu0 %1364, %v1035
        %v1366 = vpop.permute.xlu0 %1365
        %1369 = vset.pattern.permute.xlu0 0
        %1370 = vperm.xlu0 %1369, %v1036
        %v1371 = vpop.permute.xlu0 %1370
        %1374 = vset.pattern.permute.xlu0 0
        %1375 = vperm.xlu0 %1374, %v1037
        %v1376 = vpop.permute.xlu0 %1375
        %1379 = vset.pattern.permute.xlu0 0
        %1380 = vperm.xlu0 %1379, %v1038
        %v1381 = vpop.permute.xlu0 %1380
        %1384 = vset.pattern.permute.xlu0 0
        %1385 = vperm.xlu0 %1384, %v1039
        %v1386 = vpop.permute.xlu0 %1385
        %1389 = vset.pattern.permute.xlu0 0
        %1390 = vperm.xlu0 %1389, %v1040
        %v1391 = vpop.permute.xlu0 %1390
        %1394 = vset.pattern.permute.xlu0 0
        %1395 = vperm.xlu0 %1394, %v1041
        %v1396 = vpop.permute.xlu0 %1395
        %1399 = vset.pattern.permute.xlu0 0
        %1400 = vperm.xlu0 %1399, %v1042
        %v1401 = vpop.permute.xlu0 %1400
        %v1403 = vmul.f32 %v899, %v1046
        %v1404 = vmul.f32 %v900, %v1051
        %v1405 = vmul.f32 %v901, %v1056
        %v1406 = vmul.f32 %v902, %v1061
        %v1407 = vmul.f32 %v903, %v1066
        %v1408 = vmul.f32 %v904, %v1071
        %v1409 = vmul.f32 %v905, %v1076
        %v1410 = vmul.f32 %v906, %v1081
        %v1411 = vmul.f32 %v907, %v1086
        %v1412 = vmul.f32 %v908, %v1091
        %v1413 = vmul.f32 %v909, %v1096
        %v1414 = vmul.f32 %v910, %v1101
        %v1415 = vmul.f32 %v911, %v1106
        %v1416 = vmul.f32 %v912, %v1111
        %v1417 = vmul.f32 %v913, %v1116
        %v1418 = vmul.f32 %v914, %v1121
        %v1419 = vmul.f32 %v915, %v1126
        %v1420 = vmul.f32 %v916, %v1131
        %v1421 = vmul.f32 %v917, %v1136
        %v1422 = vmul.f32 %v918, %v1141
        %v1423 = vmul.f32 %v919, %v1146
        %v1424 = vmul.f32 %v920, %v1151
        %v1425 = vmul.f32 %v921, %v1156
        %v1426 = vmul.f32 %v922, %v1161
        %v1427 = vmul.f32 %v923, %v1166
        %v1428 = vmul.f32 %v924, %v1171
        %v1429 = vmul.f32 %v925, %v1176
        %v1430 = vmul.f32 %v926, %v1181
        %v1431 = vmul.f32 %v927, %v1186
        %v1432 = vmul.f32 %v928, %v1191
        %v1433 = vmul.f32 %v929, %v1196
        %v1434 = vmul.f32 %v930, %v1201
        %v1435 = vmul.f32 %v931, %v1206
        %v1436 = vmul.f32 %v932, %v1211
        %v1437 = vmul.f32 %v933, %v1216
        %v1438 = vmul.f32 %v934, %v1221
        %v1439 = vmul.f32 %v935, %v1226
        %v1440 = vmul.f32 %v936, %v1231
        %v1441 = vmul.f32 %v937, %v1236
        %v1442 = vmul.f32 %v938, %v1241
        %v1443 = vmul.f32 %v939, %v1246
        %v1444 = vmul.f32 %v940, %v1251
        %v1445 = vmul.f32 %v941, %v1256
        %v1446 = vmul.f32 %v942, %v1261
        %v1447 = vmul.f32 %v943, %v1266
        %v1448 = vmul.f32 %v944, %v1271
        %v1449 = vmul.f32 %v945, %v1276
        %v1450 = vmul.f32 %v946, %v1281
        %v1451 = vmul.f32 %v947, %v1286
        %v1452 = vmul.f32 %v948, %v1291
        %v1453 = vmul.f32 %v949, %v1296
        %v1454 = vmul.f32 %v950, %v1301
        %v1455 = vmul.f32 %v951, %v1306
        %v1456 = vmul.f32 %v952, %v1311
        %v1457 = vmul.f32 %v953, %v1316
        %v1458 = vmul.f32 %v954, %v1321
        %v1459 = vmul.f32 %v955, %v1326
        %v1460 = vmul.f32 %v956, %v1331
        %v1461 = vmul.f32 %v957, %v1336
        %v1462 = vmul.f32 %v958, %v1341
        %v1463 = vmul.f32 %v959, %v1346
        %v1464 = vmul.f32 %v960, %v1351
        %v1465 = vmul.f32 %v961, %v1356
        %v1466 = vmul.f32 %v962, %v1361
        %v1467 = vmul.f32 %v963, %v1366
        %v1468 = vmul.f32 %v964, %v1371
        %v1469 = vmul.f32 %v965, %v1376
        %v1470 = vmul.f32 %v966, %v1381
        %v1471 = vmul.f32 %v967, %v1386
        %v1472 = vmul.f32 %v968, %v1391
        %v1473 = vmul.f32 %v969, %v1396
        %v1474 = vmul.f32 %v970, %v1401
        %v1475 = vpack.c.bf16 %v1403, %v1403
        %v1476 = vpack.c.bf16 %v1404, %v1404
        %v1477 = vpack.c.bf16 %v1405, %v1405
        %v1478 = vpack.c.bf16 %v1406, %v1406
        %v1479 = vpack.c.bf16 %v1407, %v1407
        %v1480 = vpack.c.bf16 %v1408, %v1408
        %v1481 = vpack.c.bf16 %v1409, %v1409
        %v1482 = vpack.c.bf16 %v1410, %v1410
        %v1483 = vpack.c.bf16 %v1411, %v1411
        %v1484 = vpack.c.bf16 %v1412, %v1412
        %v1485 = vpack.c.bf16 %v1413, %v1413
        %v1486 = vpack.c.bf16 %v1414, %v1414
        %v1487 = vpack.c.bf16 %v1415, %v1415
        %v1488 = vpack.c.bf16 %v1416, %v1416
        %v1489 = vpack.c.bf16 %v1417, %v1417
        %v1490 = vpack.c.bf16 %v1418, %v1418
        %v1491 = vpack.c.bf16 %v1419, %v1419
        %v1492 = vpack.c.bf16 %v1420, %v1420
        %v1493 = vpack.c.bf16 %v1421, %v1421
        %v1494 = vpack.c.bf16 %v1422, %v1422
        %v1495 = vpack.c.bf16 %v1423, %v1423
        %v1496 = vpack.c.bf16 %v1424, %v1424
        %v1497 = vpack.c.bf16 %v1425, %v1425
        %v1498 = vpack.c.bf16 %v1426, %v1426
        %v1499 = vpack.c.bf16 %v1427, %v1427
        %v1500 = vpack.c.bf16 %v1428, %v1428
        %v1501 = vpack.c.bf16 %v1429, %v1429
        %v1502 = vpack.c.bf16 %v1430, %v1430
        %v1503 = vpack.c.bf16 %v1431, %v1431
        %v1504 = vpack.c.bf16 %v1432, %v1432
        %v1505 = vpack.c.bf16 %v1433, %v1433
        %v1506 = vpack.c.bf16 %v1434, %v1434
        %v1507 = vpack.c.bf16 %v1435, %v1435
        %v1508 = vpack.c.bf16 %v1436, %v1436
        %v1509 = vpack.c.bf16 %v1437, %v1437
        %v1510 = vpack.c.bf16 %v1438, %v1438
        %v1511 = vpack.c.bf16 %v1439, %v1439
        %v1512 = vpack.c.bf16 %v1440, %v1440
        %v1513 = vpack.c.bf16 %v1441, %v1441
        %v1514 = vpack.c.bf16 %v1442, %v1442
        %v1515 = vpack.c.bf16 %v1443, %v1443
        %v1516 = vpack.c.bf16 %v1444, %v1444
        %v1517 = vpack.c.bf16 %v1445, %v1445
        %v1518 = vpack.c.bf16 %v1446, %v1446
        %v1519 = vpack.c.bf16 %v1447, %v1447
        %v1520 = vpack.c.bf16 %v1448, %v1448
        %v1521 = vpack.c.bf16 %v1449, %v1449
        %v1522 = vpack.c.bf16 %v1450, %v1450
        %v1523 = vpack.c.bf16 %v1451, %v1451
        %v1524 = vpack.c.bf16 %v1452, %v1452
        %v1525 = vpack.c.bf16 %v1453, %v1453
        %v1526 = vpack.c.bf16 %v1454, %v1454
        %v1527 = vpack.c.bf16 %v1455, %v1455
        %v1528 = vpack.c.bf16 %v1456, %v1456
        %v1529 = vpack.c.bf16 %v1457, %v1457
        %v1530 = vpack.c.bf16 %v1458, %v1458
        %v1531 = vpack.c.bf16 %v1459, %v1459
        %v1532 = vpack.c.bf16 %v1460, %v1460
        %v1533 = vpack.c.bf16 %v1461, %v1461
        %v1534 = vpack.c.bf16 %v1462, %v1462
        %v1535 = vpack.c.bf16 %v1463, %v1463
        %v1536 = vpack.c.bf16 %v1464, %v1464
        %v1537 = vpack.c.bf16 %v1465, %v1465
        %v1538 = vpack.c.bf16 %v1466, %v1466
        %v1539 = vpack.c.bf16 %v1467, %v1467
        %v1540 = vpack.c.bf16 %v1468, %v1468
        %v1541 = vpack.c.bf16 %v1469, %v1469
        %v1542 = vpack.c.bf16 %v1470, %v1470
        %v1543 = vpack.c.bf16 %v1471, %v1471
        %v1544 = vpack.c.bf16 %v1472, %v1472
        %v1545 = vpack.c.bf16 %v1473, %v1473
        %v1546 = vpack.c.bf16 %v1474, %v1474
        %1547 = vst [vmem:[#allocation2] sm:$0xf] %v1475
        %1548 = vst [vmem:[#allocation2 + $0x4] sm:$0xf] %v1476
        %1549 = vst [vmem:[#allocation2 + $0x8] sm:$0xf] %v1477
        %1550 = vst [vmem:[#allocation2 + $0xc] sm:$0xf] %v1478
        %1551 = vst [vmem:[#allocation2 + $0x10] sm:$0xf] %v1479
        %1552 = vst [vmem:[#allocation2 + $0x14] sm:$0xf] %v1480
        %1553 = vst [vmem:[#allocation2 + $0x18] sm:$0xf] %v1481
        %1554 = vst [vmem:[#allocation2 + $0x1c] sm:$0xf] %v1482
        %1555 = vst [vmem:[#allocation2 + $0x20] sm:$0xf] %v1483
        %1556 = vst [vmem:[#allocation2 + $0x24] sm:$0xf] %v1484
        %1557 = vst [vmem:[#allocation2 + $0x28] sm:$0xf] %v1485
        %1558 = vst [vmem:[#allocation2 + $0x2c] sm:$0xf] %v1486
        %1559 = vst [vmem:[#allocation2 + $0x30] sm:$0xf] %v1487
        %1560 = vst [vmem:[#allocation2 + $0x34] sm:$0xf] %v1488
        %1561 = vst [vmem:[#allocation2 + $0x38] sm:$0xf] %v1489
        %1562 = vst [vmem:[#allocation2 + $0x3c] sm:$0xf] %v1490
        %1563 = vst [vmem:[#allocation2 + $0x40] sm:$0xf] %v1491
        %1564 = vst [vmem:[#allocation2 + $0x44] sm:$0xf] %v1492
        %1565 = vst [vmem:[#allocation2 + $0x48] sm:$0xf] %v1493
        %1566 = vst [vmem:[#allocation2 + $0x4c] sm:$0xf] %v1494
        %1567 = vst [vmem:[#allocation2 + $0x50] sm:$0xf] %v1495
        %1568 = vst [vmem:[#allocation2 + $0x54] sm:$0xf] %v1496
        %1569 = vst [vmem:[#allocation2 + $0x58] sm:$0xf] %v1497
        %1570 = vst [vmem:[#allocation2 + $0x5c] sm:$0xf] %v1498
        %1571 = vst [vmem:[#allocation2 + $0x60] sm:$0xf] %v1499
        %1572 = vst [vmem:[#allocation2 + $0x64] sm:$0xf] %v1500
        %1573 = vst [vmem:[#allocation2 + $0x68] sm:$0xf] %v1501
        %1574 = vst [vmem:[#allocation2 + $0x6c] sm:$0xf] %v1502
        %1575 = vst [vmem:[#allocation2 + $0x70] sm:$0xf] %v1503
        %1576 = vst [vmem:[#allocation2 + $0x74] sm:$0xf] %v1504
        %1577 = vst [vmem:[#allocation2 + $0x78] sm:$0xf] %v1505
        %1578 = vst [vmem:[#allocation2 + $0x7c] sm:$0xf] %v1506
        %1579 = vst [vmem:[#allocation2 + $0x80] sm:$0xf] %v1507
        %1580 = vst [vmem:[#allocation2 + $0x84] sm:$0xf] %v1508
        %1581 = vst [vmem:[#allocation2 + $0x88] sm:$0xf] %v1509
        %1582 = vst [vmem:[#allocation2 + $0x8c] sm:$0xf] %v1510
        %1583 = vst [vmem:[#allocation2 + $0x90] sm:$0xf] %v1511
        %1584 = vst [vmem:[#allocation2 + $0x94] sm:$0xf] %v1512
        %1585 = vst [vmem:[#allocation2 + $0x98] sm:$0xf] %v1513
        %1586 = vst [vmem:[#allocation2 + $0x9c] sm:$0xf] %v1514
        %1587 = vst [vmem:[#allocation2 + $0xa0] sm:$0xf] %v1515
        %1588 = vst [vmem:[#allocation2 + $0xa4] sm:$0xf] %v1516
        %1589 = vst [vmem:[#allocation2 + $0xa8] sm:$0xf] %v1517
        %1590 = vst [vmem:[#allocation2 + $0xac] sm:$0xf] %v1518
        %1591 = vst [vmem:[#allocation2 + $0xb0] sm:$0xf] %v1519
        %1592 = vst [vmem:[#allocation2 + $0xb4] sm:$0xf] %v1520
        %1593 = vst [vmem:[#allocation2 + $0xb8] sm:$0xf] %v1521
        %1594 = vst [vmem:[#allocation2 + $0xbc] sm:$0xf] %v1522
        %1595 = vst [vmem:[#allocation2 + $0xc0] sm:$0xf] %v1523
        %1596 = vst [vmem:[#allocation2 + $0xc4] sm:$0xf] %v1524
        %1597 = vst [vmem:[#allocation2 + $0xc8] sm:$0xf] %v1525
        %1598 = vst [vmem:[#allocation2 + $0xcc] sm:$0xf] %v1526
        %1599 = vst [vmem:[#allocation2 + $0xd0] sm:$0xf] %v1527
        %1600 = vst [vmem:[#allocation2 + $0xd4] sm:$0xf] %v1528
        %1601 = vst [vmem:[#allocation2 + $0xd8] sm:$0xf] %v1529
        %1602 = vst [vmem:[#allocation2 + $0xdc] sm:$0xf] %v1530
        %1603 = vst [vmem:[#allocation2 + $0xe0] sm:$0xf] %v1531
        %1604 = vst [vmem:[#allocation2 + $0xe4] sm:$0xf] %v1532
        %1605 = vst [vmem:[#allocation2 + $0xe8] sm:$0xf] %v1533
        %1606 = vst [vmem:[#allocation2 + $0xec] sm:$0xf] %v1534
        %1607 = vst [vmem:[#allocation2 + $0xf0] sm:$0xf] %v1535
        %1608 = vst [vmem:[#allocation2 + $0xf4] sm:$0xf] %v1536
        %1609 = vst [vmem:[#allocation2 + $0xf8] sm:$0xf] %v1537
        %1610 = vst [vmem:[#allocation2 + $0xfc] sm:$0xf] %v1538
        %1611 = vst [vmem:[#allocation2 + $0x100] sm:$0xf] %v1539
        %1612 = vst [vmem:[#allocation2 + $0x104] sm:$0xf] %v1540
        %1613 = vst [vmem:[#allocation2 + $0x108] sm:$0xf] %v1541
        %1614 = vst [vmem:[#allocation2 + $0x10c] sm:$0xf] %v1542
        %1615 = vst [vmem:[#allocation2 + $0x110] sm:$0xf] %v1543
        %1616 = vst [vmem:[#allocation2 + $0x114] sm:$0xf] %v1544
        %1617 = vst [vmem:[#allocation2 + $0x118] sm:$0xf] %v1545
        %1618 = vst [vmem:[#allocation2 + $0x11c] sm:$0xf] %v1546
        %v1619 = vld [vmem:[#allocation2] sm:$0xf]
        %v1620 = vld [vmem:[#allocation2 + $0x8] sm:$0xf]
        %v1621 = vld [vmem:[#allocation2 + $0x10] sm:$0xf]
        %v1622 = vld [vmem:[#allocation2 + $0x18] sm:$0xf]
        %v1623 = vld [vmem:[#allocation2 + $0x20] sm:$0xf]
        %v1624 = vld [vmem:[#allocation2 + $0x28] sm:$0xf]
        %v1625 = vld [vmem:[#allocation2 + $0x30] sm:$0xf]
        %v1626 = vld [vmem:[#allocation2 + $0x38] sm:$0xf]
        %v1627 = vunpack.c.l.bf16 %v1619
        %v1628 = vunpack.c.l.bf16 %v1620
        %v1629 = vunpack.c.l.bf16 %v1621
        %v1630 = vunpack.c.l.bf16 %v1622
        %v1631 = vunpack.c.l.bf16 %v1623
        %v1632 = vunpack.c.l.bf16 %v1624
        %v1633 = vunpack.c.l.bf16 %v1625
        %v1634 = vunpack.c.l.bf16 %v1626
        %v1635 = vld [vmem:[%s5] sm:$0x1]
        %v1637 = vperm.slane %v1635, 0
        %v1639 = vmul.f32 %v1627, %v1637
        %v1640 = vmul.f32 %v1628, %v1637
        %v1641 = vmul.f32 %v1629, %v1637
        %v1642 = vmul.f32 %v1630, %v1637
        %v1643 = vmul.f32 %v1631, %v1637
        %v1644 = vmul.f32 %v1632, %v1637
        %v1645 = vmul.f32 %v1633, %v1637
        %v1646 = vmul.f32 %v1634, %v1637
        %v1647 = vadd.f32 %v1639, 0.0
        %v1648 = vadd.f32 %v1640, 0.0
        %v1649 = vadd.f32 %v1641, 0.0
        %v1650 = vadd.f32 %v1642, 0.0
        %v1651 = vadd.f32 %v1643, 0.0
        %v1652 = vadd.f32 %v1644, 0.0
        %v1653 = vadd.f32 %v1645, 0.0
        %v1654 = vadd.f32 %v1646, 0.0
        %s1655 = scalar_lea.vmem [#allocation2], 72
        %v1656 = vld [vmem:[%s1655] sm:$0xf]
        %v1657 = vld [vmem:[%s1655 + $0x8] sm:$0xf]
        %v1658 = vld [vmem:[%s1655 + $0x10] sm:$0xf]
        %v1659 = vld [vmem:[%s1655 + $0x18] sm:$0xf]
        %v1660 = vld [vmem:[%s1655 + $0x20] sm:$0xf]
        %v1661 = vld [vmem:[%s1655 + $0x28] sm:$0xf]
        %v1662 = vld [vmem:[%s1655 + $0x30] sm:$0xf]
        %v1663 = vld [vmem:[%s1655 + $0x38] sm:$0xf]
        %v1664 = vunpack.c.l.bf16 %v1656
        %v1665 = vunpack.c.l.bf16 %v1657
        %v1666 = vunpack.c.l.bf16 %v1658
        %v1667 = vunpack.c.l.bf16 %v1659
        %v1668 = vunpack.c.l.bf16 %v1660
        %v1669 = vunpack.c.l.bf16 %v1661
        %v1670 = vunpack.c.l.bf16 %v1662
        %v1671 = vunpack.c.l.bf16 %v1663
        %s1672 = scalar_lea.vmem %s5, 1
        %v1673 = vld [vmem:[%s1672] sm:$0x1]
        %v1675 = vperm.slane %v1673, 0
        %v1677 = vmul.f32 %v1664, %v1675
        %v1678 = vmul.f32 %v1665, %v1675
        %v1679 = vmul.f32 %v1666, %v1675
        %v1680 = vmul.f32 %v1667, %v1675
        %v1681 = vmul.f32 %v1668, %v1675
        %v1682 = vmul.f32 %v1669, %v1675
        %v1683 = vmul.f32 %v1670, %v1675
        %v1684 = vmul.f32 %v1671, %v1675
        %v1685 = vadd.f32 %v1647, %v1677
        %v1686 = vadd.f32 %v1648, %v1678
        %v1687 = vadd.f32 %v1649, %v1679
        %v1688 = vadd.f32 %v1650, %v1680
        %v1689 = vadd.f32 %v1651, %v1681
        %v1690 = vadd.f32 %v1652, %v1682
        %v1691 = vadd.f32 %v1653, %v1683
        %v1692 = vadd.f32 %v1654, %v1684
        %v1693 = vld [vmem:[#allocation2 + $0x4] sm:$0x1]
        %v1694 = vld [vmem:[#allocation2 + $0xc] sm:$0x1]
        %v1695 = vld [vmem:[#allocation2 + $0x14] sm:$0x1]
        %v1696 = vld [vmem:[#allocation2 + $0x1c] sm:$0x1]
        %v1697 = vld [vmem:[#allocation2 + $0x24] sm:$0x1]
        %v1698 = vld [vmem:[#allocation2 + $0x2c] sm:$0x1]
        %v1699 = vld [vmem:[#allocation2 + $0x34] sm:$0x1]
        %v1700 = vld [vmem:[#allocation2 + $0x3c] sm:$0x1]
        %v1701 = vunpack.c.l.bf16 %v1693
        %v1702 = vunpack.c.l.bf16 %v1694
        %v1703 = vunpack.c.l.bf16 %v1695
        %v1704 = vunpack.c.l.bf16 %v1696
        %v1705 = vunpack.c.l.bf16 %v1697
        %v1706 = vunpack.c.l.bf16 %v1698
        %v1707 = vunpack.c.l.bf16 %v1699
        %v1708 = vunpack.c.l.bf16 %v1700
        %s1709 = scalar_lea.vmem %s5, 2
        %v1710 = vld [vmem:[%s1709] sm:$0x1]
        %v1712 = vperm.slane %v1710, 0
        %v1714 = vmul.f32 %v1627, %v1712
        %v1715 = vmul.f32 %v1701, %v1712
        %v1716 = vmul.f32 %v1628, %v1712
        %v1717 = vmul.f32 %v1702, %v1712
        %v1718 = vmul.f32 %v1629, %v1712
        %v1719 = vmul.f32 %v1703, %v1712
        %v1720 = vmul.f32 %v1630, %v1712
        %v1721 = vmul.f32 %v1704, %v1712
        %v1722 = vmul.f32 %v1631, %v1712
        %v1723 = vmul.f32 %v1705, %v1712
        %v1724 = vmul.f32 %v1632, %v1712
        %v1725 = vmul.f32 %v1706, %v1712
        %v1726 = vmul.f32 %v1633, %v1712
        %v1727 = vmul.f32 %v1707, %v1712
        %v1728 = vmul.f32 %v1634, %v1712
        %v1729 = vmul.f32 %v1708, %v1712
        %vm1746 = vcmask 1046528
        %v1747 = vrot.slane %v1714, 1
        %v1748 = vrot.slane %v1715, 1
        %v1749 = vsel %vm1746, %v1747, %v1748
        %v1750 = vrot.slane %v1716, 1
        %v1751 = vrot.slane %v1717, 1
        %v1752 = vsel %vm1746, %v1750, %v1751
        %v1753 = vrot.slane %v1718, 1
        %v1754 = vrot.slane %v1719, 1
        %v1755 = vsel %vm1746, %v1753, %v1754
        %v1756 = vrot.slane %v1720, 1
        %v1757 = vrot.slane %v1721, 1
        %v1758 = vsel %vm1746, %v1756, %v1757
        %v1759 = vrot.slane %v1722, 1
        %v1760 = vrot.slane %v1723, 1
        %v1761 = vsel %vm1746, %v1759, %v1760
        %v1762 = vrot.slane %v1724, 1
        %v1763 = vrot.slane %v1725, 1
        %v1764 = vsel %vm1746, %v1762, %v1763
        %v1765 = vrot.slane %v1726, 1
        %v1766 = vrot.slane %v1727, 1
        %v1767 = vsel %vm1746, %v1765, %v1766
        %v1768 = vrot.slane %v1728, 1
        %v1769 = vrot.slane %v1729, 1
        %v1770 = vsel %vm1746, %v1768, %v1769
        %v1779 = vadd.f32 %v1685, %v1749
        %v1780 = vadd.f32 %v1686, %v1752
        %v1781 = vadd.f32 %v1687, %v1755
        %v1782 = vadd.f32 %v1688, %v1758
        %v1783 = vadd.f32 %v1689, %v1761
        %v1784 = vadd.f32 %v1690, %v1764
        %v1785 = vadd.f32 %v1691, %v1767
        %v1786 = vadd.f32 %v1692, %v1770
        %s1787 = scalar_lea.vmem [#allocation2], 144
        %v1788 = vld [vmem:[%s1787] sm:$0xf]
        %v1789 = vld [vmem:[%s1787 + $0x8] sm:$0xf]
        %v1790 = vld [vmem:[%s1787 + $0x10] sm:$0xf]
        %v1791 = vld [vmem:[%s1787 + $0x18] sm:$0xf]
        %v1792 = vld [vmem:[%s1787 + $0x20] sm:$0xf]
        %v1793 = vld [vmem:[%s1787 + $0x28] sm:$0xf]
        %v1794 = vld [vmem:[%s1787 + $0x30] sm:$0xf]
        %v1795 = vld [vmem:[%s1787 + $0x38] sm:$0xf]
        %v1796 = vunpack.c.l.bf16 %v1788
        %v1797 = vunpack.c.l.bf16 %v1789
        %v1798 = vunpack.c.l.bf16 %v1790
        %v1799 = vunpack.c.l.bf16 %v1791
        %v1800 = vunpack.c.l.bf16 %v1792
        %v1801 = vunpack.c.l.bf16 %v1793
        %v1802 = vunpack.c.l.bf16 %v1794
        %v1803 = vunpack.c.l.bf16 %v1795
        %s1804 = scalar_lea.vmem %s5, 3
        %v1805 = vld [vmem:[%s1804] sm:$0x1]
        %v1807 = vperm.slane %v1805, 0
        %v1809 = vmul.f32 %v1796, %v1807
        %v1810 = vmul.f32 %v1797, %v1807
        %v1811 = vmul.f32 %v1798, %v1807
        %v1812 = vmul.f32 %v1799, %v1807
        %v1813 = vmul.f32 %v1800, %v1807
        %v1814 = vmul.f32 %v1801, %v1807
        %v1815 = vmul.f32 %v1802, %v1807
        %v1816 = vmul.f32 %v1803, %v1807
        %v1817 = vadd.f32 %v1779, %v1809
        %v1818 = vadd.f32 %v1780, %v1810
        %v1819 = vadd.f32 %v1781, %v1811
        %v1820 = vadd.f32 %v1782, %v1812
        %v1821 = vadd.f32 %v1783, %v1813
        %v1822 = vadd.f32 %v1784, %v1814
        %v1823 = vadd.f32 %v1785, %v1815
        %v1824 = vadd.f32 %v1786, %v1816
        %s1825 = scalar_lea.vmem [#allocation2], 216
        %v1826 = vld [vmem:[%s1825] sm:$0xf]
        %v1827 = vld [vmem:[%s1825 + $0x8] sm:$0xf]
        %v1828 = vld [vmem:[%s1825 + $0x10] sm:$0xf]
        %v1829 = vld [vmem:[%s1825 + $0x18] sm:$0xf]
        %v1830 = vld [vmem:[%s1825 + $0x20] sm:$0xf]
        %v1831 = vld [vmem:[%s1825 + $0x28] sm:$0xf]
        %v1832 = vld [vmem:[%s1825 + $0x30] sm:$0xf]
        %v1833 = vld [vmem:[%s1825 + $0x38] sm:$0xf]
        %v1834 = vunpack.c.l.bf16 %v1826
        %v1835 = vunpack.c.l.bf16 %v1827
        %v1836 = vunpack.c.l.bf16 %v1828
        %v1837 = vunpack.c.l.bf16 %v1829
        %v1838 = vunpack.c.l.bf16 %v1830
        %v1839 = vunpack.c.l.bf16 %v1831
        %v1840 = vunpack.c.l.bf16 %v1832
        %v1841 = vunpack.c.l.bf16 %v1833
        %s1842 = scalar_lea.vmem %s5, 4
        %v1843 = vld [vmem:[%s1842] sm:$0x1]
        %v1845 = vperm.slane %v1843, 0
        %v1847 = vmul.f32 %v1834, %v1845
        %v1848 = vmul.f32 %v1835, %v1845
        %v1849 = vmul.f32 %v1836, %v1845
        %v1850 = vmul.f32 %v1837, %v1845
        %v1851 = vmul.f32 %v1838, %v1845
        %v1852 = vmul.f32 %v1839, %v1845
        %v1853 = vmul.f32 %v1840, %v1845
        %v1854 = vmul.f32 %v1841, %v1845
        %v1855 = vadd.f32 %v1817, %v1847
        %v1856 = vadd.f32 %v1818, %v1848
        %v1857 = vadd.f32 %v1819, %v1849
        %v1858 = vadd.f32 %v1820, %v1850
        %v1859 = vadd.f32 %v1821, %v1851
        %v1860 = vadd.f32 %v1822, %v1852
        %v1861 = vadd.f32 %v1823, %v1853
        %v1862 = vadd.f32 %v1824, %v1854
        %v1863 = vld [vmem:[%s1787 + $0x4] sm:$0x1]
        %v1864 = vld [vmem:[%s1787 + $0xc] sm:$0x1]
        %v1865 = vld [vmem:[%s1787 + $0x14] sm:$0x1]
        %v1866 = vld [vmem:[%s1787 + $0x1c] sm:$0x1]
        %v1867 = vld [vmem:[%s1787 + $0x24] sm:$0x1]
        %v1868 = vld [vmem:[%s1787 + $0x2c] sm:$0x1]
        %v1869 = vld [vmem:[%s1787 + $0x34] sm:$0x1]
        %v1870 = vld [vmem:[%s1787 + $0x3c] sm:$0x1]
        %v1871 = vunpack.c.l.bf16 %v1863
        %v1872 = vunpack.c.l.bf16 %v1864
        %v1873 = vunpack.c.l.bf16 %v1865
        %v1874 = vunpack.c.l.bf16 %v1866
        %v1875 = vunpack.c.l.bf16 %v1867
        %v1876 = vunpack.c.l.bf16 %v1868
        %v1877 = vunpack.c.l.bf16 %v1869
        %v1878 = vunpack.c.l.bf16 %v1870
        %s1879 = scalar_lea.vmem %s5, 5
        %v1880 = vld [vmem:[%s1879] sm:$0x1]
        %v1882 = vperm.slane %v1880, 0
        %v1884 = vmul.f32 %v1796, %v1882
        %v1885 = vmul.f32 %v1871, %v1882
        %v1886 = vmul.f32 %v1797, %v1882
        %v1887 = vmul.f32 %v1872, %v1882
        %v1888 = vmul.f32 %v1798, %v1882
        %v1889 = vmul.f32 %v1873, %v1882
        %v1890 = vmul.f32 %v1799, %v1882
        %v1891 = vmul.f32 %v1874, %v1882
        %v1892 = vmul.f32 %v1800, %v1882
        %v1893 = vmul.f32 %v1875, %v1882
        %v1894 = vmul.f32 %v1801, %v1882
        %v1895 = vmul.f32 %v1876, %v1882
        %v1896 = vmul.f32 %v1802, %v1882
        %v1897 = vmul.f32 %v1877, %v1882
        %v1898 = vmul.f32 %v1803, %v1882
        %v1899 = vmul.f32 %v1878, %v1882
        %v1916 = vrot.slane %v1884, 1
        %v1917 = vrot.slane %v1885, 1
        %v1918 = vsel %vm1746, %v1916, %v1917
        %v1919 = vrot.slane %v1886, 1
        %v1920 = vrot.slane %v1887, 1
        %v1921 = vsel %vm1746, %v1919, %v1920
        %v1922 = vrot.slane %v1888, 1
        %v1923 = vrot.slane %v1889, 1
        %v1924 = vsel %vm1746, %v1922, %v1923
        %v1925 = vrot.slane %v1890, 1
        %v1926 = vrot.slane %v1891, 1
        %v1927 = vsel %vm1746, %v1925, %v1926
        %v1928 = vrot.slane %v1892, 1
        %v1929 = vrot.slane %v1893, 1
        %v1930 = vsel %vm1746, %v1928, %v1929
        %v1931 = vrot.slane %v1894, 1
        %v1932 = vrot.slane %v1895, 1
        %v1933 = vsel %vm1746, %v1931, %v1932
        %v1934 = vrot.slane %v1896, 1
        %v1935 = vrot.slane %v1897, 1
        %v1936 = vsel %vm1746, %v1934, %v1935
        %v1937 = vrot.slane %v1898, 1
        %v1938 = vrot.slane %v1899, 1
        %v1939 = vsel %vm1746, %v1937, %v1938
        %v1948 = vadd.f32 %v1855, %v1918
        %v1949 = vadd.f32 %v1856, %v1921
        %v1950 = vadd.f32 %v1857, %v1924
        %v1951 = vadd.f32 %v1858, %v1927
        %v1952 = vadd.f32 %v1859, %v1930
        %v1953 = vadd.f32 %v1860, %v1933
        %v1954 = vadd.f32 %v1861, %v1936
        %v1955 = vadd.f32 %v1862, %v1939
        %s1956 = scalar_lea.vmem [#allocation2], 8
        %v1957 = vld [vmem:[%s1956] sm:$0xf]
        %v1958 = vld [vmem:[%s1956 + $0x8] sm:$0xf]
        %v1959 = vld [vmem:[%s1956 + $0x10] sm:$0xf]
        %v1960 = vld [vmem:[%s1956 + $0x18] sm:$0xf]
        %v1961 = vld [vmem:[%s1956 + $0x20] sm:$0xf]
        %v1962 = vld [vmem:[%s1956 + $0x28] sm:$0xf]
        %v1963 = vld [vmem:[%s1956 + $0x30] sm:$0xf]
        %v1964 = vld [vmem:[%s1956 + $0x38] sm:$0xf]
        %v1965 = vunpack.c.l.bf16 %v1957
        %v1966 = vunpack.c.l.bf16 %v1958
        %v1967 = vunpack.c.l.bf16 %v1959
        %v1968 = vunpack.c.l.bf16 %v1960
        %v1969 = vunpack.c.l.bf16 %v1961
        %v1970 = vunpack.c.l.bf16 %v1962
        %v1971 = vunpack.c.l.bf16 %v1963
        %v1972 = vunpack.c.l.bf16 %v1964
        %s1973 = scalar_lea.vmem %s5, 6
        %v1974 = vld [vmem:[%s1973] sm:$0x1]
        %v1976 = vperm.slane %v1974, 0
        %v1978 = vmul.f32 %v1965, %v1976
        %v1979 = vmul.f32 %v1966, %v1976
        %v1980 = vmul.f32 %v1967, %v1976
        %v1981 = vmul.f32 %v1968, %v1976
        %v1982 = vmul.f32 %v1969, %v1976
        %v1983 = vmul.f32 %v1970, %v1976
        %v1984 = vmul.f32 %v1971, %v1976
        %v1985 = vmul.f32 %v1972, %v1976
        %v1986 = vadd.f32 %v1948, %v1978
        %v1987 = vadd.f32 %v1949, %v1979
        %v1988 = vadd.f32 %v1950, %v1980
        %v1989 = vadd.f32 %v1951, %v1981
        %v1990 = vadd.f32 %v1952, %v1982
        %v1991 = vadd.f32 %v1953, %v1983
        %v1992 = vadd.f32 %v1954, %v1984
        %v1993 = vadd.f32 %v1955, %v1985
        %s1994 = scalar_lea.vmem [#allocation2], 80
        %v1995 = vld [vmem:[%s1994] sm:$0xf]
        %v1996 = vld [vmem:[%s1994 + $0x8] sm:$0xf]
        %v1997 = vld [vmem:[%s1994 + $0x10] sm:$0xf]
        %v1998 = vld [vmem:[%s1994 + $0x18] sm:$0xf]
        %v1999 = vld [vmem:[%s1994 + $0x20] sm:$0xf]
        %v2000 = vld [vmem:[%s1994 + $0x28] sm:$0xf]
        %v2001 = vld [vmem:[%s1994 + $0x30] sm:$0xf]
        %v2002 = vld [vmem:[%s1994 + $0x38] sm:$0xf]
        %v2003 = vunpack.c.l.bf16 %v1995
        %v2004 = vunpack.c.l.bf16 %v1996
        %v2005 = vunpack.c.l.bf16 %v1997
        %v2006 = vunpack.c.l.bf16 %v1998
        %v2007 = vunpack.c.l.bf16 %v1999
        %v2008 = vunpack.c.l.bf16 %v2000
        %v2009 = vunpack.c.l.bf16 %v2001
        %v2010 = vunpack.c.l.bf16 %v2002
        %s2011 = scalar_lea.vmem %s5, 7
        %v2012 = vld [vmem:[%s2011] sm:$0x1]
        %v2014 = vperm.slane %v2012, 0
        %v2016 = vmul.f32 %v2003, %v2014
        %v2017 = vmul.f32 %v2004, %v2014
        %v2018 = vmul.f32 %v2005, %v2014
        %v2019 = vmul.f32 %v2006, %v2014
        %v2020 = vmul.f32 %v2007, %v2014
        %v2021 = vmul.f32 %v2008, %v2014
        %v2022 = vmul.f32 %v2009, %v2014
        %v2023 = vmul.f32 %v2010, %v2014
        %v2024 = vadd.f32 %v1986, %v2016
        %v2025 = vadd.f32 %v1987, %v2017
        %v2026 = vadd.f32 %v1988, %v2018
        %v2027 = vadd.f32 %v1989, %v2019
        %v2028 = vadd.f32 %v1990, %v2020
        %v2029 = vadd.f32 %v1991, %v2021
        %v2030 = vadd.f32 %v1992, %v2022
        %v2031 = vadd.f32 %v1993, %v2023
        %v2032 = vld [vmem:[%s1956 + $0x4] sm:$0x1]
        %v2033 = vld [vmem:[%s1956 + $0xc] sm:$0x1]
        %v2034 = vld [vmem:[%s1956 + $0x14] sm:$0x1]
        %v2035 = vld [vmem:[%s1956 + $0x1c] sm:$0x1]
        %v2036 = vld [vmem:[%s1956 + $0x24] sm:$0x1]
        %v2037 = vld [vmem:[%s1956 + $0x2c] sm:$0x1]
        %v2038 = vld [vmem:[%s1956 + $0x34] sm:$0x1]
        %v2039 = vld [vmem:[%s1956 + $0x3c] sm:$0x1]
        %v2040 = vunpack.c.l.bf16 %v2032
        %v2041 = vunpack.c.l.bf16 %v2033
        %v2042 = vunpack.c.l.bf16 %v2034
        %v2043 = vunpack.c.l.bf16 %v2035
        %v2044 = vunpack.c.l.bf16 %v2036
        %v2045 = vunpack.c.l.bf16 %v2037
        %v2046 = vunpack.c.l.bf16 %v2038
        %v2047 = vunpack.c.l.bf16 %v2039
        %s2048 = scalar_lea.vmem %s5, 8
        %v2049 = vld [vmem:[%s2048] sm:$0x1]
        %v2051 = vperm.slane %v2049, 0
        %v2053 = vmul.f32 %v1965, %v2051
        %v2054 = vmul.f32 %v2040, %v2051
        %v2055 = vmul.f32 %v1966, %v2051
        %v2056 = vmul.f32 %v2041, %v2051
        %v2057 = vmul.f32 %v1967, %v2051
        %v2058 = vmul.f32 %v2042, %v2051
        %v2059 = vmul.f32 %v1968, %v2051
        %v2060 = vmul.f32 %v2043, %v2051
        %v2061 = vmul.f32 %v1969, %v2051
        %v2062 = vmul.f32 %v2044, %v2051
        %v2063 = vmul.f32 %v1970, %v2051
        %v2064 = vmul.f32 %v2045, %v2051
        %v2065 = vmul.f32 %v1971, %v2051
        %v2066 = vmul.f32 %v2046, %v2051
        %v2067 = vmul.f32 %v1972, %v2051
        %v2068 = vmul.f32 %v2047, %v2051
        %v2085 = vrot.slane %v2053, 1
        %v2086 = vrot.slane %v2054, 1
        %v2087 = vsel %vm1746, %v2085, %v2086
        %v2088 = vrot.slane %v2055, 1
        %v2089 = vrot.slane %v2056, 1
        %v2090 = vsel %vm1746, %v2088, %v2089
        %v2091 = vrot.slane %v2057, 1
        %v2092 = vrot.slane %v2058, 1
        %v2093 = vsel %vm1746, %v2091, %v2092
        %v2094 = vrot.slane %v2059, 1
        %v2095 = vrot.slane %v2060, 1
        %v2096 = vsel %vm1746, %v2094, %v2095
        %v2097 = vrot.slane %v2061, 1
        %v2098 = vrot.slane %v2062, 1
        %v2099 = vsel %vm1746, %v2097, %v2098
        %v2100 = vrot.slane %v2063, 1
        %v2101 = vrot.slane %v2064, 1
        %v2102 = vsel %vm1746, %v2100, %v2101
        %v2103 = vrot.slane %v2065, 1
        %v2104 = vrot.slane %v2066, 1
        %v2105 = vsel %vm1746, %v2103, %v2104
        %v2106 = vrot.slane %v2067, 1
        %v2107 = vrot.slane %v2068, 1
        %v2108 = vsel %vm1746, %v2106, %v2107
        %v2117 = vadd.f32 %v2024, %v2087
        %v2118 = vadd.f32 %v2025, %v2090
        %v2119 = vadd.f32 %v2026, %v2093
        %v2120 = vadd.f32 %v2027, %v2096
        %v2121 = vadd.f32 %v2028, %v2099
        %v2122 = vadd.f32 %v2029, %v2102
        %v2123 = vadd.f32 %v2030, %v2105
        %v2124 = vadd.f32 %v2031, %v2108
        %v2125 = vpack.c.bf16 %v2117, %v2117
        %v2126 = vpack.c.bf16 %v2118, %v2118
        %v2127 = vpack.c.bf16 %v2119, %v2119
        %v2128 = vpack.c.bf16 %v2120, %v2120
        %v2129 = vpack.c.bf16 %v2121, %v2121
        %v2130 = vpack.c.bf16 %v2122, %v2122
        %v2131 = vpack.c.bf16 %v2123, %v2123
        %v2132 = vpack.c.bf16 %v2124, %v2124
        %v2133 = vld [vmem:[%s353] sm:$0xf]
        %v2134 = vld [vmem:[%s353 + $0x8] sm:$0xf]
        %v2135 = vld [vmem:[%s353 + $0x10] sm:$0xf]
        %v2136 = vld [vmem:[%s353 + $0x18] sm:$0xf]
        %v2137 = vld [vmem:[%s353 + $0x20] sm:$0xf]
        %v2138 = vld [vmem:[%s353 + $0x28] sm:$0xf]
        %v2139 = vld [vmem:[%s353 + $0x30] sm:$0xf]
        %v2140 = vld [vmem:[%s353 + $0x38] sm:$0xf]
        %s2141 = scalar_lea.vmem %s353, 72
        %v2142 = vld [vmem:[%s2141] sm:$0xf]
        %v2143 = vld [vmem:[%s2141 + $0x8] sm:$0xf]
        %v2144 = vld [vmem:[%s2141 + $0x10] sm:$0xf]
        %v2145 = vld [vmem:[%s2141 + $0x18] sm:$0xf]
        %v2146 = vld [vmem:[%s2141 + $0x20] sm:$0xf]
        %v2147 = vld [vmem:[%s2141 + $0x28] sm:$0xf]
        %v2148 = vld [vmem:[%s2141 + $0x30] sm:$0xf]
        %v2149 = vld [vmem:[%s2141 + $0x38] sm:$0xf]
        %v2150 = vld [vmem:[%s353 + $0x4] sm:$0x1]
        %v2151 = vld [vmem:[%s353 + $0xc] sm:$0x1]
        %v2152 = vld [vmem:[%s353 + $0x14] sm:$0x1]
        %v2153 = vld [vmem:[%s353 + $0x1c] sm:$0x1]
        %v2154 = vld [vmem:[%s353 + $0x24] sm:$0x1]
        %v2155 = vld [vmem:[%s353 + $0x2c] sm:$0x1]
        %v2156 = vld [vmem:[%s353 + $0x34] sm:$0x1]
        %v2157 = vld [vmem:[%s353 + $0x3c] sm:$0x1]
        %vm2158 = vsmask.f32 3328
        %vm2159 = vsmask.f32 7440
        %vm2160 = vmor %vm2158, %vm2159
        %v2162 = vshrl.u32 %v2133, 16
        %v2164 = vrot.slane %v2162, 4
        %v2165 = vshll.u32 %v2133, 16
        %v2167 = vrot.slane %v2165, 5
        %v2168 = vor.u32 %v2164, %v2167
        %v2169 = vrot.slane %v2168, 4
        %v2171 = vshll.u32 %v2150, 16
        %v2173 = vrot.slane %v2171, 5
        %v2174 = vsel %vm2160, %v2169, %v2173
        %v2176 = vshrl.u32 %v2134, 16
        %v2178 = vrot.slane %v2176, 4
        %v2179 = vshll.u32 %v2134, 16
        %v2181 = vrot.slane %v2179, 5
        %v2182 = vor.u32 %v2178, %v2181
        %v2183 = vrot.slane %v2182, 4
        %v2185 = vshll.u32 %v2151, 16
        %v2187 = vrot.slane %v2185, 5
        %v2188 = vsel %vm2160, %v2183, %v2187
        %v2190 = vshrl.u32 %v2135, 16
        %v2192 = vrot.slane %v2190, 4
        %v2193 = vshll.u32 %v2135, 16
        %v2195 = vrot.slane %v2193, 5
        %v2196 = vor.u32 %v2192, %v2195
        %v2197 = vrot.slane %v2196, 4
        %v2199 = vshll.u32 %v2152, 16
        %v2201 = vrot.slane %v2199, 5
        %v2202 = vsel %vm2160, %v2197, %v2201
        %v2204 = vshrl.u32 %v2136, 16
        %v2206 = vrot.slane %v2204, 4
        %v2207 = vshll.u32 %v2136, 16
        %v2209 = vrot.slane %v2207, 5
        %v2210 = vor.u32 %v2206, %v2209
        %v2211 = vrot.slane %v2210, 4
        %v2213 = vshll.u32 %v2153, 16
        %v2215 = vrot.slane %v2213, 5
        %v2216 = vsel %vm2160, %v2211, %v2215
        %v2218 = vshrl.u32 %v2137, 16
        %v2220 = vrot.slane %v2218, 4
        %v2221 = vshll.u32 %v2137, 16
        %v2223 = vrot.slane %v2221, 5
        %v2224 = vor.u32 %v2220, %v2223
        %v2225 = vrot.slane %v2224, 4
        %v2227 = vshll.u32 %v2154, 16
        %v2229 = vrot.slane %v2227, 5
        %v2230 = vsel %vm2160, %v2225, %v2229
        %v2232 = vshrl.u32 %v2138, 16
        %v2234 = vrot.slane %v2232, 4
        %v2235 = vshll.u32 %v2138, 16
        %v2237 = vrot.slane %v2235, 5
        %v2238 = vor.u32 %v2234, %v2237
        %v2239 = vrot.slane %v2238, 4
        %v2241 = vshll.u32 %v2155, 16
        %v2243 = vrot.slane %v2241, 5
        %v2244 = vsel %vm2160, %v2239, %v2243
        %v2246 = vshrl.u32 %v2139, 16
        %v2248 = vrot.slane %v2246, 4
        %v2249 = vshll.u32 %v2139, 16
        %v2251 = vrot.slane %v2249, 5
        %v2252 = vor.u32 %v2248, %v2251
        %v2253 = vrot.slane %v2252, 4
        %v2255 = vshll.u32 %v2156, 16
        %v2257 = vrot.slane %v2255, 5
        %v2258 = vsel %vm2160, %v2253, %v2257
        %v2260 = vshrl.u32 %v2140, 16
        %v2262 = vrot.slane %v2260, 4
        %v2263 = vshll.u32 %v2140, 16
        %v2265 = vrot.slane %v2263, 5
        %v2266 = vor.u32 %v2262, %v2265
        %v2267 = vrot.slane %v2266, 4
        %v2269 = vshll.u32 %v2157, 16
        %v2271 = vrot.slane %v2269, 5
        %v2272 = vsel %vm2160, %v2267, %v2271
        %s2273 = scalar_lea.vmem %s353, 144
        %v2274 = vld [vmem:[%s2273] sm:$0xf]
        %v2275 = vld [vmem:[%s2273 + $0x8] sm:$0xf]
        %v2276 = vld [vmem:[%s2273 + $0x10] sm:$0xf]
        %v2277 = vld [vmem:[%s2273 + $0x18] sm:$0xf]
        %v2278 = vld [vmem:[%s2273 + $0x20] sm:$0xf]
        %v2279 = vld [vmem:[%s2273 + $0x28] sm:$0xf]
        %v2280 = vld [vmem:[%s2273 + $0x30] sm:$0xf]
        %v2281 = vld [vmem:[%s2273 + $0x38] sm:$0xf]
        %s2282 = scalar_lea.vmem %s353, 216
        %v2283 = vld [vmem:[%s2282] sm:$0xf]
        %v2284 = vld [vmem:[%s2282 + $0x8] sm:$0xf]
        %v2285 = vld [vmem:[%s2282 + $0x10] sm:$0xf]
        %v2286 = vld [vmem:[%s2282 + $0x18] sm:$0xf]
        %v2287 = vld [vmem:[%s2282 + $0x20] sm:$0xf]
        %v2288 = vld [vmem:[%s2282 + $0x28] sm:$0xf]
        %v2289 = vld [vmem:[%s2282 + $0x30] sm:$0xf]
        %v2290 = vld [vmem:[%s2282 + $0x38] sm:$0xf]
        %v2291 = vld [vmem:[%s2273 + $0x4] sm:$0x1]
        %v2292 = vld [vmem:[%s2273 + $0xc] sm:$0x1]
        %v2293 = vld [vmem:[%s2273 + $0x14] sm:$0x1]
        %v2294 = vld [vmem:[%s2273 + $0x1c] sm:$0x1]
        %v2295 = vld [vmem:[%s2273 + $0x24] sm:$0x1]
        %v2296 = vld [vmem:[%s2273 + $0x2c] sm:$0x1]
        %v2297 = vld [vmem:[%s2273 + $0x34] sm:$0x1]
        %v2298 = vld [vmem:[%s2273 + $0x3c] sm:$0x1]
        %v2300 = vshrl.u32 %v2274, 16
        %v2302 = vrot.slane %v2300, 4
        %v2303 = vshll.u32 %v2274, 16
        %v2305 = vrot.slane %v2303, 5
        %v2306 = vor.u32 %v2302, %v2305
        %v2307 = vrot.slane %v2306, 4
        %v2309 = vshll.u32 %v2291, 16
        %v2311 = vrot.slane %v2309, 5
        %v2312 = vsel %vm2160, %v2307, %v2311
        %v2314 = vshrl.u32 %v2275, 16
        %v2316 = vrot.slane %v2314, 4
        %v2317 = vshll.u32 %v2275, 16
        %v2319 = vrot.slane %v2317, 5
        %v2320 = vor.u32 %v2316, %v2319
        %v2321 = vrot.slane %v2320, 4
        %v2323 = vshll.u32 %v2292, 16
        %v2325 = vrot.slane %v2323, 5
        %v2326 = vsel %vm2160, %v2321, %v2325
        %v2328 = vshrl.u32 %v2276, 16
        %v2330 = vrot.slane %v2328, 4
        %v2331 = vshll.u32 %v2276, 16
        %v2333 = vrot.slane %v2331, 5
        %v2334 = vor.u32 %v2330, %v2333
        %v2335 = vrot.slane %v2334, 4
        %v2337 = vshll.u32 %v2293, 16
        %v2339 = vrot.slane %v2337, 5
        %v2340 = vsel %vm2160, %v2335, %v2339
        %v2342 = vshrl.u32 %v2277, 16
        %v2344 = vrot.slane %v2342, 4
        %v2345 = vshll.u32 %v2277, 16
        %v2347 = vrot.slane %v2345, 5
        %v2348 = vor.u32 %v2344, %v2347
        %v2349 = vrot.slane %v2348, 4
        %v2351 = vshll.u32 %v2294, 16
        %v2353 = vrot.slane %v2351, 5
        %v2354 = vsel %vm2160, %v2349, %v2353
        %v2356 = vshrl.u32 %v2278, 16
        %v2358 = vrot.slane %v2356, 4
        %v2359 = vshll.u32 %v2278, 16
        %v2361 = vrot.slane %v2359, 5
        %v2362 = vor.u32 %v2358, %v2361
        %v2363 = vrot.slane %v2362, 4
        %v2365 = vshll.u32 %v2295, 16
        %v2367 = vrot.slane %v2365, 5
        %v2368 = vsel %vm2160, %v2363, %v2367
        %v2370 = vshrl.u32 %v2279, 16
        %v2372 = vrot.slane %v2370, 4
        %v2373 = vshll.u32 %v2279, 16
        %v2375 = vrot.slane %v2373, 5
        %v2376 = vor.u32 %v2372, %v2375
        %v2377 = vrot.slane %v2376, 4
        %v2379 = vshll.u32 %v2296, 16
        %v2381 = vrot.slane %v2379, 5
        %v2382 = vsel %vm2160, %v2377, %v2381
        %v2384 = vshrl.u32 %v2280, 16
        %v2386 = vrot.slane %v2384, 4
        %v2387 = vshll.u32 %v2280, 16
        %v2389 = vrot.slane %v2387, 5
        %v2390 = vor.u32 %v2386, %v2389
        %v2391 = vrot.slane %v2390, 4
        %v2393 = vshll.u32 %v2297, 16
        %v2395 = vrot.slane %v2393, 5
        %v2396 = vsel %vm2160, %v2391, %v2395
        %v2398 = vshrl.u32 %v2281, 16
        %v2400 = vrot.slane %v2398, 4
        %v2401 = vshll.u32 %v2281, 16
        %v2403 = vrot.slane %v2401, 5
        %v2404 = vor.u32 %v2400, %v2403
        %v2405 = vrot.slane %v2404, 4
        %v2407 = vshll.u32 %v2298, 16
        %v2409 = vrot.slane %v2407, 5
        %v2410 = vsel %vm2160, %v2405, %v2409
        %s2411 = scalar_lea.vmem %s353, 8
        %v2412 = vld [vmem:[%s2411] sm:$0xf]
        %v2413 = vld [vmem:[%s2411 + $0x8] sm:$0xf]
        %v2414 = vld [vmem:[%s2411 + $0x10] sm:$0xf]
        %v2415 = vld [vmem:[%s2411 + $0x18] sm:$0xf]
        %v2416 = vld [vmem:[%s2411 + $0x20] sm:$0xf]
        %v2417 = vld [vmem:[%s2411 + $0x28] sm:$0xf]
        %v2418 = vld [vmem:[%s2411 + $0x30] sm:$0xf]
        %v2419 = vld [vmem:[%s2411 + $0x38] sm:$0xf]
        %s2420 = scalar_lea.vmem %s353, 80
        %v2421 = vld [vmem:[%s2420] sm:$0xf]
        %v2422 = vld [vmem:[%s2420 + $0x8] sm:$0xf]
        %v2423 = vld [vmem:[%s2420 + $0x10] sm:$0xf]
        %v2424 = vld [vmem:[%s2420 + $0x18] sm:$0xf]
        %v2425 = vld [vmem:[%s2420 + $0x20] sm:$0xf]
        %v2426 = vld [vmem:[%s2420 + $0x28] sm:$0xf]
        %v2427 = vld [vmem:[%s2420 + $0x30] sm:$0xf]
        %v2428 = vld [vmem:[%s2420 + $0x38] sm:$0xf]
        %v2429 = vld [vmem:[%s2411 + $0x4] sm:$0x1]
        %v2430 = vld [vmem:[%s2411 + $0xc] sm:$0x1]
        %v2431 = vld [vmem:[%s2411 + $0x14] sm:$0x1]
        %v2432 = vld [vmem:[%s2411 + $0x1c] sm:$0x1]
        %v2433 = vld [vmem:[%s2411 + $0x24] sm:$0x1]
        %v2434 = vld [vmem:[%s2411 + $0x2c] sm:$0x1]
        %v2435 = vld [vmem:[%s2411 + $0x34] sm:$0x1]
        %v2436 = vld [vmem:[%s2411 + $0x3c] sm:$0x1]
        %v2438 = vshrl.u32 %v2412, 16
        %v2440 = vrot.slane %v2438, 4
        %v2441 = vshll.u32 %v2412, 16
        %v2443 = vrot.slane %v2441, 5
        %v2444 = vor.u32 %v2440, %v2443
        %v2445 = vrot.slane %v2444, 4
        %v2447 = vshll.u32 %v2429, 16
        %v2449 = vrot.slane %v2447, 5
        %v2450 = vsel %vm2160, %v2445, %v2449
        %v2452 = vshrl.u32 %v2413, 16
        %v2454 = vrot.slane %v2452, 4
        %v2455 = vshll.u32 %v2413, 16
        %v2457 = vrot.slane %v2455, 5
        %v2458 = vor.u32 %v2454, %v2457
        %v2459 = vrot.slane %v2458, 4
        %v2461 = vshll.u32 %v2430, 16
        %v2463 = vrot.slane %v2461, 5
        %v2464 = vsel %vm2160, %v2459, %v2463
        %v2466 = vshrl.u32 %v2414, 16
        %v2468 = vrot.slane %v2466, 4
        %v2469 = vshll.u32 %v2414, 16
        %v2471 = vrot.slane %v2469, 5
        %v2472 = vor.u32 %v2468, %v2471
        %v2473 = vrot.slane %v2472, 4
        %v2475 = vshll.u32 %v2431, 16
        %v2477 = vrot.slane %v2475, 5
        %v2478 = vsel %vm2160, %v2473, %v2477
        %v2480 = vshrl.u32 %v2415, 16
        %v2482 = vrot.slane %v2480, 4
        %v2483 = vshll.u32 %v2415, 16
        %v2485 = vrot.slane %v2483, 5
        %v2486 = vor.u32 %v2482, %v2485
        %v2487 = vrot.slane %v2486, 4
        %v2489 = vshll.u32 %v2432, 16
        %v2491 = vrot.slane %v2489, 5
        %v2492 = vsel %vm2160, %v2487, %v2491
        %v2494 = vshrl.u32 %v2416, 16
        %v2496 = vrot.slane %v2494, 4
        %v2497 = vshll.u32 %v2416, 16
        %v2499 = vrot.slane %v2497, 5
        %v2500 = vor.u32 %v2496, %v2499
        %v2501 = vrot.slane %v2500, 4
        %v2503 = vshll.u32 %v2433, 16
        %v2505 = vrot.slane %v2503, 5
        %v2506 = vsel %vm2160, %v2501, %v2505
        %v2508 = vshrl.u32 %v2417, 16
        %v2510 = vrot.slane %v2508, 4
        %v2511 = vshll.u32 %v2417, 16
        %v2513 = vrot.slane %v2511, 5
        %v2514 = vor.u32 %v2510, %v2513
        %v2515 = vrot.slane %v2514, 4
        %v2517 = vshll.u32 %v2434, 16
        %v2519 = vrot.slane %v2517, 5
        %v2520 = vsel %vm2160, %v2515, %v2519
        %v2522 = vshrl.u32 %v2418, 16
        %v2524 = vrot.slane %v2522, 4
        %v2525 = vshll.u32 %v2418, 16
        %v2527 = vrot.slane %v2525, 5
        %v2528 = vor.u32 %v2524, %v2527
        %v2529 = vrot.slane %v2528, 4
        %v2531 = vshll.u32 %v2435, 16
        %v2533 = vrot.slane %v2531, 5
        %v2534 = vsel %vm2160, %v2529, %v2533
        %v2536 = vshrl.u32 %v2419, 16
        %v2538 = vrot.slane %v2536, 4
        %v2539 = vshll.u32 %v2419, 16
        %v2541 = vrot.slane %v2539, 5
        %v2542 = vor.u32 %v2538, %v2541
        %v2543 = vrot.slane %v2542, 4
        %v2545 = vshll.u32 %v2436, 16
        %v2547 = vrot.slane %v2545, 5
        %v2548 = vsel %vm2160, %v2543, %v2547
        %v2557 = vunpack.c.l.b16 %v2133
        %v2558 = vunpack.c.l.b16 %v2134
        %v2559 = vunpack.c.l.b16 %v2135
        %v2560 = vunpack.c.l.b16 %v2136
        %v2561 = vunpack.c.l.b16 %v2137
        %v2562 = vunpack.c.l.b16 %v2138
        %v2563 = vunpack.c.l.b16 %v2139
        %v2564 = vunpack.c.l.b16 %v2140
        %v2565 = vpack.c.b16 %v2558, %v2557
        %v2566 = vpack.c.b16 %v2560, %v2559
        %v2567 = vpack.c.b16 %v2562, %v2561
        %v2568 = vpack.c.b16 %v2564, %v2563
        %v2581 = vunpack.c.l.b16 %v2142
        %v2582 = vunpack.c.l.b16 %v2143
        %v2583 = vunpack.c.l.b16 %v2144
        %v2584 = vunpack.c.l.b16 %v2145
        %v2585 = vunpack.c.l.b16 %v2146
        %v2586 = vunpack.c.l.b16 %v2147
        %v2587 = vunpack.c.l.b16 %v2148
        %v2588 = vunpack.c.l.b16 %v2149
        %v2589 = vpack.c.b16 %v2582, %v2581
        %v2590 = vpack.c.b16 %v2584, %v2583
        %v2591 = vpack.c.b16 %v2586, %v2585
        %v2592 = vpack.c.b16 %v2588, %v2587
        %v2597 = vunpack.c.l.b16 %v2174
        %v2598 = vunpack.c.l.b16 %v2188
        %v2599 = vunpack.c.l.b16 %v2202
        %v2600 = vunpack.c.l.b16 %v2216
        %v2601 = vunpack.c.l.b16 %v2230
        %v2602 = vunpack.c.l.b16 %v2244
        %v2603 = vunpack.c.l.b16 %v2258
        %v2604 = vunpack.c.l.b16 %v2272
        %v2605 = vpack.c.b16 %v2598, %v2597
        %v2606 = vpack.c.b16 %v2600, %v2599
        %v2607 = vpack.c.b16 %v2602, %v2601
        %v2608 = vpack.c.b16 %v2604, %v2603
        %v2621 = vunpack.c.l.b16 %v2274
        %v2622 = vunpack.c.l.b16 %v2275
        %v2623 = vunpack.c.l.b16 %v2276
        %v2624 = vunpack.c.l.b16 %v2277
        %v2625 = vunpack.c.l.b16 %v2278
        %v2626 = vunpack.c.l.b16 %v2279
        %v2627 = vunpack.c.l.b16 %v2280
        %v2628 = vunpack.c.l.b16 %v2281
        %v2629 = vpack.c.b16 %v2622, %v2621
        %v2630 = vpack.c.b16 %v2624, %v2623
        %v2631 = vpack.c.b16 %v2626, %v2625
        %v2632 = vpack.c.b16 %v2628, %v2627
        %v2645 = vunpack.c.l.b16 %v2283
        %v2646 = vunpack.c.l.b16 %v2284
        %v2647 = vunpack.c.l.b16 %v2285
        %v2648 = vunpack.c.l.b16 %v2286
        %v2649 = vunpack.c.l.b16 %v2287
        %v2650 = vunpack.c.l.b16 %v2288
        %v2651 = vunpack.c.l.b16 %v2289
        %v2652 = vunpack.c.l.b16 %v2290
        %v2653 = vpack.c.b16 %v2646, %v2645
        %v2654 = vpack.c.b16 %v2648, %v2647
        %v2655 = vpack.c.b16 %v2650, %v2649
        %v2656 = vpack.c.b16 %v2652, %v2651
        %v2661 = vunpack.c.l.b16 %v2312
        %v2662 = vunpack.c.l.b16 %v2326
        %v2663 = vunpack.c.l.b16 %v2340
        %v2664 = vunpack.c.l.b16 %v2354
        %v2665 = vunpack.c.l.b16 %v2368
        %v2666 = vunpack.c.l.b16 %v2382
        %v2667 = vunpack.c.l.b16 %v2396
        %v2668 = vunpack.c.l.b16 %v2410
        %v2669 = vpack.c.b16 %v2662, %v2661
        %v2670 = vpack.c.b16 %v2664, %v2663
        %v2671 = vpack.c.b16 %v2666, %v2665
        %v2672 = vpack.c.b16 %v2668, %v2667
        %v2685 = vunpack.c.l.b16 %v2412
        %v2686 = vunpack.c.l.b16 %v2413
        %v2687 = vunpack.c.l.b16 %v2414
        %v2688 = vunpack.c.l.b16 %v2415
        %v2689 = vunpack.c.l.b16 %v2416
        %v2690 = vunpack.c.l.b16 %v2417
        %v2691 = vunpack.c.l.b16 %v2418
        %v2692 = vunpack.c.l.b16 %v2419
        %v2693 = vpack.c.b16 %v2686, %v2685
        %v2694 = vpack.c.b16 %v2688, %v2687
        %v2695 = vpack.c.b16 %v2690, %v2689
        %v2696 = vpack.c.b16 %v2692, %v2691
        %v2709 = vunpack.c.l.b16 %v2421
        %v2710 = vunpack.c.l.b16 %v2422
        %v2711 = vunpack.c.l.b16 %v2423
        %v2712 = vunpack.c.l.b16 %v2424
        %v2713 = vunpack.c.l.b16 %v2425
        %v2714 = vunpack.c.l.b16 %v2426
        %v2715 = vunpack.c.l.b16 %v2427
        %v2716 = vunpack.c.l.b16 %v2428
        %v2717 = vpack.c.b16 %v2710, %v2709
        %v2718 = vpack.c.b16 %v2712, %v2711
        %v2719 = vpack.c.b16 %v2714, %v2713
        %v2720 = vpack.c.b16 %v2716, %v2715
        %v2725 = vunpack.c.l.b16 %v2450
        %v2726 = vunpack.c.l.b16 %v2464
        %v2727 = vunpack.c.l.b16 %v2478
        %v2728 = vunpack.c.l.b16 %v2492
        %v2729 = vunpack.c.l.b16 %v2506
        %v2730 = vunpack.c.l.b16 %v2520
        %v2731 = vunpack.c.l.b16 %v2534
        %v2732 = vunpack.c.l.b16 %v2548
        %v2733 = vpack.c.b16 %v2726, %v2725
        %v2734 = vpack.c.b16 %v2728, %v2727
        %v2735 = vpack.c.b16 %v2730, %v2729
        %v2736 = vpack.c.b16 %v2732, %v2731
        %v2741 = vld [vmem:[#allocation3] sm:$0xf]
        %v2742 = vld [vmem:[#allocation3 + $0x4] sm:$0xf]
        %v2743 = vld [vmem:[#allocation3 + $0x8] sm:$0xf]
        %v2744 = vld [vmem:[#allocation3 + $0xc] sm:$0xf]
        %v2745 = vld [vmem:[#allocation3 + $0x10] sm:$0xf]
        %v2746 = vld [vmem:[#allocation3 + $0x14] sm:$0xf]
        %v2747 = vld [vmem:[#allocation3 + $0x18] sm:$0xf]
        %v2748 = vld [vmem:[#allocation3 + $0x1c] sm:$0xf]
        %v2749 = vld [vmem:[#allocation3 + $0x20] sm:$0xf]
        %v2750 = vld [vmem:[#allocation3 + $0x24] sm:$0xf]
        %v2751 = vld [vmem:[#allocation3 + $0x28] sm:$0xf]
        %v2752 = vld [vmem:[#allocation3 + $0x2c] sm:$0xf]
        %v2753 = vld [vmem:[#allocation3 + $0x30] sm:$0xf]
        %v2754 = vld [vmem:[#allocation3 + $0x34] sm:$0xf]
        %v2755 = vld [vmem:[#allocation3 + $0x38] sm:$0xf]
        %v2756 = vld [vmem:[#allocation3 + $0x3c] sm:$0xf]
        %v2757 = vld [vmem:[#allocation3 + $0x40] sm:$0xf]
        %v2758 = vld [vmem:[#allocation3 + $0x44] sm:$0xf]
        %v2759 = vld [vmem:[#allocation3 + $0x48] sm:$0xf]
        %v2760 = vld [vmem:[#allocation3 + $0x4c] sm:$0xf]
        %v2761 = vld [vmem:[#allocation3 + $0x50] sm:$0xf]
        %v2762 = vld [vmem:[#allocation3 + $0x54] sm:$0xf]
        %v2763 = vld [vmem:[#allocation3 + $0x58] sm:$0xf]
        %v2764 = vld [vmem:[#allocation3 + $0x5c] sm:$0xf]
        %v2765 = vld [vmem:[#allocation3 + $0x60] sm:$0xf]
        %v2766 = vld [vmem:[#allocation3 + $0x64] sm:$0xf]
        %v2767 = vld [vmem:[#allocation3 + $0x68] sm:$0xf]
        %v2768 = vld [vmem:[#allocation3 + $0x6c] sm:$0xf]
        %v2769 = vld [vmem:[#allocation3 + $0x70] sm:$0xf]
        %v2770 = vld [vmem:[#allocation3 + $0x74] sm:$0xf]
        %v2771 = vld [vmem:[#allocation3 + $0x78] sm:$0xf]
        %v2772 = vld [vmem:[#allocation3 + $0x7c] sm:$0xf]
        %v2773 = vld [vmem:[#allocation3 + $0x80] sm:$0xf]
        %v2774 = vld [vmem:[#allocation3 + $0x84] sm:$0xf]
        %v2775 = vld [vmem:[#allocation3 + $0x88] sm:$0xf]
        %v2776 = vld [vmem:[#allocation3 + $0x8c] sm:$0xf]
        %v2777 = vld [vmem:[#allocation3 + $0x90] sm:$0xf]
        %v2778 = vld [vmem:[#allocation3 + $0x94] sm:$0xf]
        %v2779 = vld [vmem:[#allocation3 + $0x98] sm:$0xf]
        %v2780 = vld [vmem:[#allocation3 + $0x9c] sm:$0xf]
        %v2781 = vld [vmem:[#allocation3 + $0xa0] sm:$0xf]
        %v2782 = vld [vmem:[#allocation3 + $0xa4] sm:$0xf]
        %v2783 = vld [vmem:[#allocation3 + $0xa8] sm:$0xf]
        %v2784 = vld [vmem:[#allocation3 + $0xac] sm:$0xf]
        %v2785 = vld [vmem:[#allocation3 + $0xb0] sm:$0xf]
        %v2786 = vld [vmem:[#allocation3 + $0xb4] sm:$0xf]
        %v2787 = vld [vmem:[#allocation3 + $0xb8] sm:$0xf]
        %v2788 = vld [vmem:[#allocation3 + $0xbc] sm:$0xf]
        %v2789 = vld [vmem:[#allocation3 + $0xc0] sm:$0xf]
        %v2790 = vld [vmem:[#allocation3 + $0xc4] sm:$0xf]
        %v2791 = vld [vmem:[#allocation3 + $0xc8] sm:$0xf]
        %v2792 = vld [vmem:[#allocation3 + $0xcc] sm:$0xf]
        %v2793 = vld [vmem:[#allocation3 + $0xd0] sm:$0xf]
        %v2794 = vld [vmem:[#allocation3 + $0xd4] sm:$0xf]
        %v2795 = vld [vmem:[#allocation3 + $0xd8] sm:$0xf]
        %v2796 = vld [vmem:[#allocation3 + $0xdc] sm:$0xf]
        %v2797 = vld [vmem:[#allocation3 + $0xe0] sm:$0xf]
        %v2798 = vld [vmem:[#allocation3 + $0xe4] sm:$0xf]
        %v2799 = vld [vmem:[#allocation3 + $0xe8] sm:$0xf]
        %v2800 = vld [vmem:[#allocation3 + $0xec] sm:$0xf]
        %v2801 = vld [vmem:[#allocation3 + $0xf0] sm:$0xf]
        %v2802 = vld [vmem:[#allocation3 + $0xf4] sm:$0xf]
        %v2803 = vld [vmem:[#allocation3 + $0xf8] sm:$0xf]
        %v2804 = vld [vmem:[#allocation3 + $0xfc] sm:$0xf]
        %v2805 = vld [vmem:[#allocation3 + $0x100] sm:$0xf]
        %v2806 = vld [vmem:[#allocation3 + $0x104] sm:$0xf]
        %v2807 = vld [vmem:[#allocation3 + $0x108] sm:$0xf]
        %v2808 = vld [vmem:[#allocation3 + $0x10c] sm:$0xf]
        %v2809 = vld [vmem:[#allocation3 + $0x110] sm:$0xf]
        %v2810 = vld [vmem:[#allocation3 + $0x114] sm:$0xf]
        %v2811 = vld [vmem:[#allocation3 + $0x118] sm:$0xf]
        %v2812 = vld [vmem:[#allocation3 + $0x11c] sm:$0xf]
        %v2813 = vld [vmem:[#allocation3 + $0x120] sm:$0xf]
        %v2814 = vld [vmem:[#allocation3 + $0x124] sm:$0xf]
        %v2815 = vld [vmem:[#allocation3 + $0x128] sm:$0xf]
        %v2816 = vld [vmem:[#allocation3 + $0x12c] sm:$0xf]
        %v2817 = vld [vmem:[#allocation3 + $0x130] sm:$0xf]
        %v2818 = vld [vmem:[#allocation3 + $0x134] sm:$0xf]
        %v2819 = vld [vmem:[#allocation3 + $0x138] sm:$0xf]
        %v2820 = vld [vmem:[#allocation3 + $0x13c] sm:$0xf]
        %v2821 = vld [vmem:[#allocation3 + $0x140] sm:$0xf]
        %v2822 = vld [vmem:[#allocation3 + $0x144] sm:$0xf]
        %v2823 = vld [vmem:[#allocation3 + $0x148] sm:$0xf]
        %v2824 = vld [vmem:[#allocation3 + $0x14c] sm:$0xf]
        %v2825 = vld [vmem:[#allocation3 + $0x150] sm:$0xf]
        %v2826 = vld [vmem:[#allocation3 + $0x154] sm:$0xf]
        %v2827 = vld [vmem:[#allocation3 + $0x158] sm:$0xf]
        %v2828 = vld [vmem:[#allocation3 + $0x15c] sm:$0xf]
        %v2829 = vld [vmem:[#allocation3 + $0x160] sm:$0xf]
        %v2830 = vld [vmem:[#allocation3 + $0x164] sm:$0xf]
        %v2831 = vld [vmem:[#allocation3 + $0x168] sm:$0xf]
        %v2832 = vld [vmem:[#allocation3 + $0x16c] sm:$0xf]
        %v2833 = vld [vmem:[#allocation3 + $0x170] sm:$0xf]
        %v2834 = vld [vmem:[#allocation3 + $0x174] sm:$0xf]
        %v2835 = vld [vmem:[#allocation3 + $0x178] sm:$0xf]
        %v2836 = vld [vmem:[#allocation3 + $0x17c] sm:$0xf]
        %v2837 = vld [vmem:[#allocation3 + $0x180] sm:$0xf]
        %v2838 = vld [vmem:[#allocation3 + $0x184] sm:$0xf]
        %v2839 = vld [vmem:[#allocation3 + $0x188] sm:$0xf]
        %v2840 = vld [vmem:[#allocation3 + $0x18c] sm:$0xf]
        %v2841 = vld [vmem:[#allocation3 + $0x190] sm:$0xf]
        %v2842 = vld [vmem:[#allocation3 + $0x194] sm:$0xf]
        %v2843 = vld [vmem:[#allocation3 + $0x198] sm:$0xf]
        %v2844 = vld [vmem:[#allocation3 + $0x19c] sm:$0xf]
        %v2845 = vld [vmem:[#allocation3 + $0x1a0] sm:$0xf]
        %v2846 = vld [vmem:[#allocation3 + $0x1a4] sm:$0xf]
        %v2847 = vld [vmem:[#allocation3 + $0x1a8] sm:$0xf]
        %v2848 = vld [vmem:[#allocation3 + $0x1ac] sm:$0xf]
        %v2849 = vld [vmem:[#allocation3 + $0x1b0] sm:$0xf]
        %v2850 = vld [vmem:[#allocation3 + $0x1b4] sm:$0xf]
        %v2851 = vld [vmem:[#allocation3 + $0x1b8] sm:$0xf]
        %v2852 = vld [vmem:[#allocation3 + $0x1bc] sm:$0xf]
        %v2853 = vld [vmem:[#allocation3 + $0x1c0] sm:$0xf]
        %v2854 = vld [vmem:[#allocation3 + $0x1c4] sm:$0xf]
        %v2855 = vld [vmem:[#allocation3 + $0x1c8] sm:$0xf]
        %v2856 = vld [vmem:[#allocation3 + $0x1cc] sm:$0xf]
        %v2857 = vld [vmem:[#allocation3 + $0x1d0] sm:$0xf]
        %v2858 = vld [vmem:[#allocation3 + $0x1d4] sm:$0xf]
        %v2859 = vld [vmem:[#allocation3 + $0x1d8] sm:$0xf]
        %v2860 = vld [vmem:[#allocation3 + $0x1dc] sm:$0xf]
        %v2861 = vld [vmem:[#allocation3 + $0x1e0] sm:$0xf]
        %v2862 = vld [vmem:[#allocation3 + $0x1e4] sm:$0xf]
        %v2863 = vld [vmem:[#allocation3 + $0x1e8] sm:$0xf]
        %v2864 = vld [vmem:[#allocation3 + $0x1ec] sm:$0xf]
        %v2865 = vld [vmem:[#allocation3 + $0x1f0] sm:$0xf]
        %v2866 = vld [vmem:[#allocation3 + $0x1f4] sm:$0xf]
        %v2867 = vld [vmem:[#allocation3 + $0x1f8] sm:$0xf]
        %v2868 = vld [vmem:[#allocation3 + $0x1fc] sm:$0xf]
        %v2869 = vld [vmem:[#allocation3 + $0x200] sm:$0xf]
        %v2870 = vld [vmem:[#allocation3 + $0x204] sm:$0xf]
        %v2871 = vld [vmem:[#allocation3 + $0x208] sm:$0xf]
        %v2872 = vld [vmem:[#allocation3 + $0x20c] sm:$0xf]
        %v2873 = vld [vmem:[#allocation3 + $0x210] sm:$0xf]
        %v2874 = vld [vmem:[#allocation3 + $0x214] sm:$0xf]
        %v2875 = vld [vmem:[#allocation3 + $0x218] sm:$0xf]
        %v2876 = vld [vmem:[#allocation3 + $0x21c] sm:$0xf]
        %v2877 = vld [vmem:[#allocation3 + $0x220] sm:$0xf]
        %v2878 = vld [vmem:[#allocation3 + $0x224] sm:$0xf]
        %v2879 = vld [vmem:[#allocation3 + $0x228] sm:$0xf]
        %v2880 = vld [vmem:[#allocation3 + $0x22c] sm:$0xf]
        %v2881 = vld [vmem:[#allocation3 + $0x230] sm:$0xf]
        %v2882 = vld [vmem:[#allocation3 + $0x234] sm:$0xf]
        %v2883 = vld [vmem:[#allocation3 + $0x238] sm:$0xf]
        %v2884 = vld [vmem:[#allocation3 + $0x23c] sm:$0xf]
        %v3029 = vunpack.c.l.b16 %v2741
        %v3030 = vunpack.c.l.b16 %v2742
        %v3031 = vunpack.c.l.b16 %v2743
        %v3032 = vunpack.c.l.b16 %v2744
        %v3033 = vunpack.c.l.b16 %v2745
        %v3034 = vunpack.c.l.b16 %v2746
        %v3035 = vunpack.c.l.b16 %v2747
        %v3036 = vunpack.c.l.b16 %v2748
        %v3037 = vunpack.c.l.b16 %v2749
        %v3038 = vunpack.c.l.b16 %v2750
        %v3039 = vunpack.c.l.b16 %v2751
        %v3040 = vunpack.c.l.b16 %v2752
        %v3041 = vunpack.c.l.b16 %v2753
        %v3042 = vunpack.c.l.b16 %v2754
        %v3043 = vunpack.c.l.b16 %v2755
        %v3044 = vunpack.c.l.b16 %v2756
        %v3045 = vunpack.c.l.b16 %v2757
        %v3046 = vunpack.c.l.b16 %v2758
        %v3047 = vunpack.c.l.b16 %v2759
        %v3048 = vunpack.c.l.b16 %v2760
        %v3049 = vunpack.c.l.b16 %v2761
        %v3050 = vunpack.c.l.b16 %v2762
        %v3051 = vunpack.c.l.b16 %v2763
        %v3052 = vunpack.c.l.b16 %v2764
        %v3053 = vunpack.c.l.b16 %v2765
        %v3054 = vunpack.c.l.b16 %v2766
        %v3055 = vunpack.c.l.b16 %v2767
        %v3056 = vunpack.c.l.b16 %v2768
        %v3057 = vunpack.c.l.b16 %v2769
        %v3058 = vunpack.c.l.b16 %v2770
        %v3059 = vunpack.c.l.b16 %v2771
        %v3060 = vunpack.c.l.b16 %v2772
        %v3061 = vunpack.c.l.b16 %v2773
        %v3062 = vunpack.c.l.b16 %v2774
        %v3063 = vunpack.c.l.b16 %v2775
        %v3064 = vunpack.c.l.b16 %v2776
        %v3065 = vunpack.c.l.b16 %v2777
        %v3066 = vunpack.c.l.b16 %v2778
        %v3067 = vunpack.c.l.b16 %v2779
        %v3068 = vunpack.c.l.b16 %v2780
        %v3069 = vunpack.c.l.b16 %v2781
        %v3070 = vunpack.c.l.b16 %v2782
        %v3071 = vunpack.c.l.b16 %v2783
        %v3072 = vunpack.c.l.b16 %v2784
        %v3073 = vunpack.c.l.b16 %v2785
        %v3074 = vunpack.c.l.b16 %v2786
        %v3075 = vunpack.c.l.b16 %v2787
        %v3076 = vunpack.c.l.b16 %v2788
        %v3077 = vunpack.c.l.b16 %v2789
        %v3078 = vunpack.c.l.b16 %v2790
        %v3079 = vunpack.c.l.b16 %v2791
        %v3080 = vunpack.c.l.b16 %v2792
        %v3081 = vunpack.c.l.b16 %v2793
        %v3082 = vunpack.c.l.b16 %v2794
        %v3083 = vunpack.c.l.b16 %v2795
        %v3084 = vunpack.c.l.b16 %v2796
        %v3085 = vunpack.c.l.b16 %v2797
        %v3086 = vunpack.c.l.b16 %v2798
        %v3087 = vunpack.c.l.b16 %v2799
        %v3088 = vunpack.c.l.b16 %v2800
        %v3089 = vunpack.c.l.b16 %v2801
        %v3090 = vunpack.c.l.b16 %v2802
        %v3091 = vunpack.c.l.b16 %v2803
        %v3092 = vunpack.c.l.b16 %v2804
        %v3093 = vunpack.c.l.b16 %v2805
        %v3094 = vunpack.c.l.b16 %v2806
        %v3095 = vunpack.c.l.b16 %v2807
        %v3096 = vunpack.c.l.b16 %v2808
        %v3097 = vunpack.c.l.b16 %v2809
        %v3098 = vunpack.c.l.b16 %v2810
        %v3099 = vunpack.c.l.b16 %v2811
        %v3100 = vunpack.c.l.b16 %v2812
        %v3101 = vunpack.c.l.b16 %v2813
        %v3102 = vunpack.c.l.b16 %v2814
        %v3103 = vunpack.c.l.b16 %v2815
        %v3104 = vunpack.c.l.b16 %v2816
        %v3105 = vunpack.c.l.b16 %v2817
        %v3106 = vunpack.c.l.b16 %v2818
        %v3107 = vunpack.c.l.b16 %v2819
        %v3108 = vunpack.c.l.b16 %v2820
        %v3109 = vunpack.c.l.b16 %v2821
        %v3110 = vunpack.c.l.b16 %v2822
        %v3111 = vunpack.c.l.b16 %v2823
        %v3112 = vunpack.c.l.b16 %v2824
        %v3113 = vunpack.c.l.b16 %v2825
        %v3114 = vunpack.c.l.b16 %v2826
        %v3115 = vunpack.c.l.b16 %v2827
        %v3116 = vunpack.c.l.b16 %v2828
        %v3117 = vunpack.c.l.b16 %v2829
        %v3118 = vunpack.c.l.b16 %v2830
        %v3119 = vunpack.c.l.b16 %v2831
        %v3120 = vunpack.c.l.b16 %v2832
        %v3121 = vunpack.c.l.b16 %v2833
        %v3122 = vunpack.c.l.b16 %v2834
        %v3123 = vunpack.c.l.b16 %v2835
        %v3124 = vunpack.c.l.b16 %v2836
        %v3125 = vunpack.c.l.b16 %v2837
        %v3126 = vunpack.c.l.b16 %v2838
        %v3127 = vunpack.c.l.b16 %v2839
        %v3128 = vunpack.c.l.b16 %v2840
        %v3129 = vunpack.c.l.b16 %v2841
        %v3130 = vunpack.c.l.b16 %v2842
        %v3131 = vunpack.c.l.b16 %v2843
        %v3132 = vunpack.c.l.b16 %v2844
        %v3133 = vunpack.c.l.b16 %v2845
        %v3134 = vunpack.c.l.b16 %v2846
        %v3135 = vunpack.c.l.b16 %v2847
        %v3136 = vunpack.c.l.b16 %v2848
        %v3137 = vunpack.c.l.b16 %v2849
        %v3138 = vunpack.c.l.b16 %v2850
        %v3139 = vunpack.c.l.b16 %v2851
        %v3140 = vunpack.c.l.b16 %v2852
        %v3141 = vunpack.c.l.b16 %v2853
        %v3142 = vunpack.c.l.b16 %v2854
        %v3143 = vunpack.c.l.b16 %v2855
        %v3144 = vunpack.c.l.b16 %v2856
        %v3145 = vunpack.c.l.b16 %v2857
        %v3146 = vunpack.c.l.b16 %v2858
        %v3147 = vunpack.c.l.b16 %v2859
        %v3148 = vunpack.c.l.b16 %v2860
        %v3149 = vunpack.c.l.b16 %v2861
        %v3150 = vunpack.c.l.b16 %v2862
        %v3151 = vunpack.c.l.b16 %v2863
        %v3152 = vunpack.c.l.b16 %v2864
        %v3153 = vunpack.c.l.b16 %v2865
        %v3154 = vunpack.c.l.b16 %v2866
        %v3155 = vunpack.c.l.b16 %v2867
        %v3156 = vunpack.c.l.b16 %v2868
        %v3157 = vunpack.c.l.b16 %v2869
        %v3158 = vunpack.c.l.b16 %v2870
        %v3159 = vunpack.c.l.b16 %v2871
        %v3160 = vunpack.c.l.b16 %v2872
        %v3161 = vunpack.c.l.b16 %v2873
        %v3162 = vunpack.c.l.b16 %v2874
        %v3163 = vunpack.c.l.b16 %v2875
        %v3164 = vunpack.c.l.b16 %v2876
        %v3165 = vunpack.c.l.b16 %v2877
        %v3166 = vunpack.c.l.b16 %v2878
        %v3167 = vunpack.c.l.b16 %v2879
        %v3168 = vunpack.c.l.b16 %v2880
        %v3169 = vunpack.c.l.b16 %v2881
        %v3170 = vunpack.c.l.b16 %v2882
        %v3171 = vunpack.c.l.b16 %v2883
        %v3172 = vunpack.c.l.b16 %v2884
        %v3173 = vpack.c.b16 %v3030, %v3029
        %v3174 = vpack.c.b16 %v3032, %v3031
        %v3175 = vpack.c.b16 %v3034, %v3033
        %v3176 = vpack.c.b16 %v3036, %v3035
        %v3177 = vpack.c.b16 %v3038, %v3037
        %v3178 = vpack.c.b16 %v3040, %v3039
        %v3179 = vpack.c.b16 %v3042, %v3041
        %v3180 = vpack.c.b16 %v3044, %v3043
        %v3181 = vpack.c.b16 %v3046, %v3045
        %v3182 = vpack.c.b16 %v3048, %v3047
        %v3183 = vpack.c.b16 %v3050, %v3049
        %v3184 = vpack.c.b16 %v3052, %v3051
        %v3185 = vpack.c.b16 %v3054, %v3053
        %v3186 = vpack.c.b16 %v3056, %v3055
        %v3187 = vpack.c.b16 %v3058, %v3057
        %v3188 = vpack.c.b16 %v3060, %v3059
        %v3189 = vpack.c.b16 %v3062, %v3061
        %v3190 = vpack.c.b16 %v3064, %v3063
        %v3191 = vpack.c.b16 %v3066, %v3065
        %v3192 = vpack.c.b16 %v3068, %v3067
        %v3193 = vpack.c.b16 %v3070, %v3069
        %v3194 = vpack.c.b16 %v3072, %v3071
        %v3195 = vpack.c.b16 %v3074, %v3073
        %v3196 = vpack.c.b16 %v3076, %v3075
        %v3197 = vpack.c.b16 %v3078, %v3077
        %v3198 = vpack.c.b16 %v3080, %v3079
        %v3199 = vpack.c.b16 %v3082, %v3081
        %v3200 = vpack.c.b16 %v3084, %v3083
        %v3201 = vpack.c.b16 %v3086, %v3085
        %v3202 = vpack.c.b16 %v3088, %v3087
        %v3203 = vpack.c.b16 %v3090, %v3089
        %v3204 = vpack.c.b16 %v3092, %v3091
        %v3205 = vpack.c.b16 %v3094, %v3093
        %v3206 = vpack.c.b16 %v3096, %v3095
        %v3207 = vpack.c.b16 %v3098, %v3097
        %v3208 = vpack.c.b16 %v3100, %v3099
        %v3209 = vpack.c.b16 %v3102, %v3101
        %v3210 = vpack.c.b16 %v3104, %v3103
        %v3211 = vpack.c.b16 %v3106, %v3105
        %v3212 = vpack.c.b16 %v3108, %v3107
        %v3213 = vpack.c.b16 %v3110, %v3109
        %v3214 = vpack.c.b16 %v3112, %v3111
        %v3215 = vpack.c.b16 %v3114, %v3113
        %v3216 = vpack.c.b16 %v3116, %v3115
        %v3217 = vpack.c.b16 %v3118, %v3117
        %v3218 = vpack.c.b16 %v3120, %v3119
        %v3219 = vpack.c.b16 %v3122, %v3121
        %v3220 = vpack.c.b16 %v3124, %v3123
        %v3221 = vpack.c.b16 %v3126, %v3125
        %v3222 = vpack.c.b16 %v3128, %v3127
        %v3223 = vpack.c.b16 %v3130, %v3129
        %v3224 = vpack.c.b16 %v3132, %v3131
        %v3225 = vpack.c.b16 %v3134, %v3133
        %v3226 = vpack.c.b16 %v3136, %v3135
        %v3227 = vpack.c.b16 %v3138, %v3137
        %v3228 = vpack.c.b16 %v3140, %v3139
        %v3229 = vpack.c.b16 %v3142, %v3141
        %v3230 = vpack.c.b16 %v3144, %v3143
        %v3231 = vpack.c.b16 %v3146, %v3145
        %v3232 = vpack.c.b16 %v3148, %v3147
        %v3233 = vpack.c.b16 %v3150, %v3149
        %v3234 = vpack.c.b16 %v3152, %v3151
        %v3235 = vpack.c.b16 %v3154, %v3153
        %v3236 = vpack.c.b16 %v3156, %v3155
        %v3237 = vpack.c.b16 %v3158, %v3157
        %v3238 = vpack.c.b16 %v3160, %v3159
        %v3239 = vpack.c.b16 %v3162, %v3161
        %v3240 = vpack.c.b16 %v3164, %v3163
        %v3241 = vpack.c.b16 %v3166, %v3165
        %v3242 = vpack.c.b16 %v3168, %v3167
        %v3243 = vpack.c.b16 %v3170, %v3169
        %v3244 = vpack.c.b16 %v3172, %v3171
        %3317 = vmatpush.bf16.msra.mxu0 %v3180
        %3318 = vmatpush.bf16.msra.mxu0 %v3179
        %3319 = vmatpush.bf16.msra.mxu0 %v3178
        %3320 = vmatpush.bf16.msra.mxu0 %v3177
        %3321 = vmatpush.bf16.msra.mxu0 %v3176
        %3322 = vmatpush.bf16.msra.mxu0 %v3175
        %3323 = vmatpush.bf16.msra.mxu0 %v3174
        %3324 = vmatpush.bf16.msra.mxu0 %v3173
        %3325 = vmatmul.bf16.gmra.mxu0 %v2565
        %v3326 = vpop.f32.mrf.mxu0
        %v3327 = vadd.f32 0.0, %v3326
        %v3328 = vpop.f32.mrf.mxu0
        %v3329 = vadd.f32 0.0, %v3328
        %3330 = vmatmul.bf16.gmra.mxu0 %v2566
        %v3331 = vpop.f32.mrf.mxu0
        %v3332 = vadd.f32 0.0, %v3331
        %v3333 = vpop.f32.mrf.mxu0
        %v3334 = vadd.f32 0.0, %v3333
        %3335 = vmatmul.bf16.gmra.mxu0 %v2567
        %v3336 = vpop.f32.mrf.mxu0
        %v3337 = vadd.f32 0.0, %v3336
        %v3338 = vpop.f32.mrf.mxu0
        %v3339 = vadd.f32 0.0, %v3338
        %3340 = vmatmul.bf16.gmra.mxu0 %v2568
        %v3341 = vpop.f32.mrf.mxu0
        %v3342 = vadd.f32 0.0, %v3341
        %v3343 = vpop.f32.mrf.mxu0
        %v3344 = vadd.f32 0.0, %v3343
        %3345 = vdwg.mxu0
        %3346 = vmatpush.bf16.msra.mxu0 %v3188
        %3347 = vmatpush.bf16.msra.mxu0 %v3187
        %3348 = vmatpush.bf16.msra.mxu0 %v3186
        %3349 = vmatpush.bf16.msra.mxu0 %v3185
        %3350 = vmatpush.bf16.msra.mxu0 %v3184
        %3351 = vmatpush.bf16.msra.mxu0 %v3183
        %3352 = vmatpush.bf16.msra.mxu0 %v3182
        %3353 = vmatpush.bf16.msra.mxu0 %v3181
        %3354 = vmatmul.bf16.gmra.mxu0 %v2589
        %v3355 = vpop.f32.mrf.mxu0
        %v3356 = vadd.f32 %v3327, %v3355
        %v3357 = vpop.f32.mrf.mxu0
        %v3358 = vadd.f32 %v3329, %v3357
        %3359 = vmatmul.bf16.gmra.mxu0 %v2590
        %v3360 = vpop.f32.mrf.mxu0
        %v3361 = vadd.f32 %v3332, %v3360
        %v3362 = vpop.f32.mrf.mxu0
        %v3363 = vadd.f32 %v3334, %v3362
        %3364 = vmatmul.bf16.gmra.mxu0 %v2591
        %v3365 = vpop.f32.mrf.mxu0
        %v3366 = vadd.f32 %v3337, %v3365
        %v3367 = vpop.f32.mrf.mxu0
        %v3368 = vadd.f32 %v3339, %v3367
        %3369 = vmatmul.bf16.gmra.mxu0 %v2592
        %v3370 = vpop.f32.mrf.mxu0
        %v3371 = vadd.f32 %v3342, %v3370
        %v3372 = vpop.f32.mrf.mxu0
        %v3373 = vadd.f32 %v3344, %v3372
        %3374 = vdwg.mxu0
        %3375 = vmatpush.bf16.msra.mxu0 %v3196
        %3376 = vmatpush.bf16.msra.mxu0 %v3195
        %3377 = vmatpush.bf16.msra.mxu0 %v3194
        %3378 = vmatpush.bf16.msra.mxu0 %v3193
        %3379 = vmatpush.bf16.msra.mxu0 %v3192
        %3380 = vmatpush.bf16.msra.mxu0 %v3191
        %3381 = vmatpush.bf16.msra.mxu0 %v3190
        %3382 = vmatpush.bf16.msra.mxu0 %v3189
        %3383 = vmatmul.bf16.gmra.mxu0 %v2605
        %v3384 = vpop.f32.mrf.mxu0
        %v3385 = vadd.f32 %v3356, %v3384
        %v3386 = vpop.f32.mrf.mxu0
        %v3387 = vadd.f32 %v3358, %v3386
        %3388 = vmatmul.bf16.gmra.mxu0 %v2606
        %v3389 = vpop.f32.mrf.mxu0
        %v3390 = vadd.f32 %v3361, %v3389
        %v3391 = vpop.f32.mrf.mxu0
        %v3392 = vadd.f32 %v3363, %v3391
        %3393 = vmatmul.bf16.gmra.mxu0 %v2607
        %v3394 = vpop.f32.mrf.mxu0
        %v3395 = vadd.f32 %v3366, %v3394
        %v3396 = vpop.f32.mrf.mxu0
        %v3397 = vadd.f32 %v3368, %v3396
        %3398 = vmatmul.bf16.gmra.mxu0 %v2608
        %v3399 = vpop.f32.mrf.mxu0
        %v3400 = vadd.f32 %v3371, %v3399
        %v3401 = vpop.f32.mrf.mxu0
        %v3402 = vadd.f32 %v3373, %v3401
        %3403 = vdwg.mxu0
        %3404 = vmatpush.bf16.msra.mxu0 %v3204
        %3405 = vmatpush.bf16.msra.mxu0 %v3203
        %3406 = vmatpush.bf16.msra.mxu0 %v3202
        %3407 = vmatpush.bf16.msra.mxu0 %v3201
        %3408 = vmatpush.bf16.msra.mxu0 %v3200
        %3409 = vmatpush.bf16.msra.mxu0 %v3199
        %3410 = vmatpush.bf16.msra.mxu0 %v3198
        %3411 = vmatpush.bf16.msra.mxu0 %v3197
        %3412 = vmatmul.bf16.gmra.mxu0 %v2629
        %v3413 = vpop.f32.mrf.mxu0
        %v3414 = vadd.f32 %v3385, %v3413
        %v3415 = vpop.f32.mrf.mxu0
        %v3416 = vadd.f32 %v3387, %v3415
        %3417 = vmatmul.bf16.gmra.mxu0 %v2630
        %v3418 = vpop.f32.mrf.mxu0
        %v3419 = vadd.f32 %v3390, %v3418
        %v3420 = vpop.f32.mrf.mxu0
        %v3421 = vadd.f32 %v3392, %v3420
        %3422 = vmatmul.bf16.gmra.mxu0 %v2631
        %v3423 = vpop.f32.mrf.mxu0
        %v3424 = vadd.f32 %v3395, %v3423
        %v3425 = vpop.f32.mrf.mxu0
        %v3426 = vadd.f32 %v3397, %v3425
        %3427 = vmatmul.bf16.gmra.mxu0 %v2632
        %v3428 = vpop.f32.mrf.mxu0
        %v3429 = vadd.f32 %v3400, %v3428
        %v3430 = vpop.f32.mrf.mxu0
        %v3431 = vadd.f32 %v3402, %v3430
        %3432 = vdwg.mxu0
        %3433 = vmatpush.bf16.msra.mxu0 %v3212
        %3434 = vmatpush.bf16.msra.mxu0 %v3211
        %3435 = vmatpush.bf16.msra.mxu0 %v3210
        %3436 = vmatpush.bf16.msra.mxu0 %v3209
        %3437 = vmatpush.bf16.msra.mxu0 %v3208
        %3438 = vmatpush.bf16.msra.mxu0 %v3207
        %3439 = vmatpush.bf16.msra.mxu0 %v3206
        %3440 = vmatpush.bf16.msra.mxu0 %v3205
        %3441 = vmatmul.bf16.gmra.mxu0 %v2653
        %v3442 = vpop.f32.mrf.mxu0
        %v3443 = vadd.f32 %v3414, %v3442
        %v3444 = vpop.f32.mrf.mxu0
        %v3445 = vadd.f32 %v3416, %v3444
        %3446 = vmatmul.bf16.gmra.mxu0 %v2654
        %v3447 = vpop.f32.mrf.mxu0
        %v3448 = vadd.f32 %v3419, %v3447
        %v3449 = vpop.f32.mrf.mxu0
        %v3450 = vadd.f32 %v3421, %v3449
        %3451 = vmatmul.bf16.gmra.mxu0 %v2655
        %v3452 = vpop.f32.mrf.mxu0
        %v3453 = vadd.f32 %v3424, %v3452
        %v3454 = vpop.f32.mrf.mxu0
        %v3455 = vadd.f32 %v3426, %v3454
        %3456 = vmatmul.bf16.gmra.mxu0 %v2656
        %v3457 = vpop.f32.mrf.mxu0
        %v3458 = vadd.f32 %v3429, %v3457
        %v3459 = vpop.f32.mrf.mxu0
        %v3460 = vadd.f32 %v3431, %v3459
        %3461 = vdwg.mxu0
        %3462 = vmatpush.bf16.msra.mxu0 %v3220
        %3463 = vmatpush.bf16.msra.mxu0 %v3219
        %3464 = vmatpush.bf16.msra.mxu0 %v3218
        %3465 = vmatpush.bf16.msra.mxu0 %v3217
        %3466 = vmatpush.bf16.msra.mxu0 %v3216
        %3467 = vmatpush.bf16.msra.mxu0 %v3215
        %3468 = vmatpush.bf16.msra.mxu0 %v3214
        %3469 = vmatpush.bf16.msra.mxu0 %v3213
        %3470 = vmatmul.bf16.gmra.mxu0 %v2669
        %v3471 = vpop.f32.mrf.mxu0
        %v3472 = vadd.f32 %v3443, %v3471
        %v3473 = vpop.f32.mrf.mxu0
        %v3474 = vadd.f32 %v3445, %v3473
        %3475 = vmatmul.bf16.gmra.mxu0 %v2670
        %v3476 = vpop.f32.mrf.mxu0
        %v3477 = vadd.f32 %v3448, %v3476
        %v3478 = vpop.f32.mrf.mxu0
        %v3479 = vadd.f32 %v3450, %v3478
        %3480 = vmatmul.bf16.gmra.mxu0 %v2671
        %v3481 = vpop.f32.mrf.mxu0
        %v3482 = vadd.f32 %v3453, %v3481
        %v3483 = vpop.f32.mrf.mxu0
        %v3484 = vadd.f32 %v3455, %v3483
        %3485 = vmatmul.bf16.gmra.mxu0 %v2672
        %v3486 = vpop.f32.mrf.mxu0
        %v3487 = vadd.f32 %v3458, %v3486
        %v3488 = vpop.f32.mrf.mxu0
        %v3489 = vadd.f32 %v3460, %v3488
        %3490 = vdwg.mxu0
        %3491 = vmatpush.bf16.msra.mxu0 %v3228
        %3492 = vmatpush.bf16.msra.mxu0 %v3227
        %3493 = vmatpush.bf16.msra.mxu0 %v3226
        %3494 = vmatpush.bf16.msra.mxu0 %v3225
        %3495 = vmatpush.bf16.msra.mxu0 %v3224
        %3496 = vmatpush.bf16.msra.mxu0 %v3223
        %3497 = vmatpush.bf16.msra.mxu0 %v3222
        %3498 = vmatpush.bf16.msra.mxu0 %v3221
        %3499 = vmatmul.bf16.gmra.mxu0 %v2693
        %v3500 = vpop.f32.mrf.mxu0
        %v3501 = vadd.f32 %v3472, %v3500
        %v3502 = vpop.f32.mrf.mxu0
        %v3503 = vadd.f32 %v3474, %v3502
        %3504 = vmatmul.bf16.gmra.mxu0 %v2694
        %v3505 = vpop.f32.mrf.mxu0
        %v3506 = vadd.f32 %v3477, %v3505
        %v3507 = vpop.f32.mrf.mxu0
        %v3508 = vadd.f32 %v3479, %v3507
        %3509 = vmatmul.bf16.gmra.mxu0 %v2695
        %v3510 = vpop.f32.mrf.mxu0
        %v3511 = vadd.f32 %v3482, %v3510
        %v3512 = vpop.f32.mrf.mxu0
        %v3513 = vadd.f32 %v3484, %v3512
        %3514 = vmatmul.bf16.gmra.mxu0 %v2696
        %v3515 = vpop.f32.mrf.mxu0
        %v3516 = vadd.f32 %v3487, %v3515
        %v3517 = vpop.f32.mrf.mxu0
        %v3518 = vadd.f32 %v3489, %v3517
        %3519 = vdwg.mxu0
        %3520 = vmatpush.bf16.msra.mxu0 %v3236
        %3521 = vmatpush.bf16.msra.mxu0 %v3235
        %3522 = vmatpush.bf16.msra.mxu0 %v3234
        %3523 = vmatpush.bf16.msra.mxu0 %v3233
        %3524 = vmatpush.bf16.msra.mxu0 %v3232
        %3525 = vmatpush.bf16.msra.mxu0 %v3231
        %3526 = vmatpush.bf16.msra.mxu0 %v3230
        %3527 = vmatpush.bf16.msra.mxu0 %v3229
        %3528 = vmatmul.bf16.gmra.mxu0 %v2717
        %v3529 = vpop.f32.mrf.mxu0
        %v3530 = vadd.f32 %v3501, %v3529
        %v3531 = vpop.f32.mrf.mxu0
        %v3532 = vadd.f32 %v3503, %v3531
        %3533 = vmatmul.bf16.gmra.mxu0 %v2718
        %v3534 = vpop.f32.mrf.mxu0
        %v3535 = vadd.f32 %v3506, %v3534
        %v3536 = vpop.f32.mrf.mxu0
        %v3537 = vadd.f32 %v3508, %v3536
        %3538 = vmatmul.bf16.gmra.mxu0 %v2719
        %v3539 = vpop.f32.mrf.mxu0
        %v3540 = vadd.f32 %v3511, %v3539
        %v3541 = vpop.f32.mrf.mxu0
        %v3542 = vadd.f32 %v3513, %v3541
        %3543 = vmatmul.bf16.gmra.mxu0 %v2720
        %v3544 = vpop.f32.mrf.mxu0
        %v3545 = vadd.f32 %v3516, %v3544
        %v3546 = vpop.f32.mrf.mxu0
        %v3547 = vadd.f32 %v3518, %v3546
        %3548 = vdwg.mxu0
        %3549 = vmatpush.bf16.msra.mxu0 %v3244
        %3550 = vmatpush.bf16.msra.mxu0 %v3243
        %3551 = vmatpush.bf16.msra.mxu0 %v3242
        %3552 = vmatpush.bf16.msra.mxu0 %v3241
        %3553 = vmatpush.bf16.msra.mxu0 %v3240
        %3554 = vmatpush.bf16.msra.mxu0 %v3239
        %3555 = vmatpush.bf16.msra.mxu0 %v3238
        %3556 = vmatpush.bf16.msra.mxu0 %v3237
        %3557 = vmatmul.bf16.gmra.mxu0 %v2733
        %v3558 = vpop.f32.mrf.mxu0
        %v3559 = vadd.f32 %v3530, %v3558
        %v3560 = vpop.f32.mrf.mxu0
        %v3561 = vadd.f32 %v3532, %v3560
        %3562 = vmatmul.bf16.gmra.mxu0 %v2734
        %v3563 = vpop.f32.mrf.mxu0
        %v3564 = vadd.f32 %v3535, %v3563
        %v3565 = vpop.f32.mrf.mxu0
        %v3566 = vadd.f32 %v3537, %v3565
        %3567 = vmatmul.bf16.gmra.mxu0 %v2735
        %v3568 = vpop.f32.mrf.mxu0
        %v3569 = vadd.f32 %v3540, %v3568
        %v3570 = vpop.f32.mrf.mxu0
        %v3571 = vadd.f32 %v3542, %v3570
        %3572 = vmatmul.bf16.gmra.mxu0 %v2736
        %v3573 = vpop.f32.mrf.mxu0
        %v3574 = vadd.f32 %v3545, %v3573
        %v3575 = vpop.f32.mrf.mxu0
        %v3576 = vadd.f32 %v3547, %v3575
        %3577 = vdwg.mxu0
        %v3578 = vpack.c.bf16 %v3559, %v3559
        %v3579 = vpack.c.bf16 %v3561, %v3561
        %v3580 = vpack.c.bf16 %v3564, %v3564
        %v3581 = vpack.c.bf16 %v3566, %v3566
        %v3582 = vpack.c.bf16 %v3569, %v3569
        %v3583 = vpack.c.bf16 %v3571, %v3571
        %v3584 = vpack.c.bf16 %v3574, %v3574
        %v3585 = vpack.c.bf16 %v3576, %v3576
        %v3594 = vunpack.c.l.b16 %v3578
        %v3595 = vunpack.c.l.b16 %v3579
        %v3596 = vunpack.c.l.b16 %v3580
        %v3597 = vunpack.c.l.b16 %v3581
        %v3598 = vunpack.c.l.b16 %v3582
        %v3599 = vunpack.c.l.b16 %v3583
        %v3600 = vunpack.c.l.b16 %v3584
        %v3601 = vunpack.c.l.b16 %v3585
        %v3602 = vpack.c.b16 %v3595, %v3594
        %v3603 = vpack.c.b16 %v3597, %v3596
        %v3604 = vpack.c.b16 %v3599, %v3598
        %v3605 = vpack.c.b16 %v3601, %v3600
        %v3618 = vunpack.c.l.b16 %v2125
        %v3619 = vunpack.c.l.b16 %v2126
        %v3620 = vunpack.c.l.b16 %v2127
        %v3621 = vunpack.c.l.b16 %v2128
        %v3622 = vunpack.c.l.b16 %v2129
        %v3623 = vunpack.c.l.b16 %v2130
        %v3624 = vunpack.c.l.b16 %v2131
        %v3625 = vunpack.c.l.b16 %v2132
        %v3626 = vpack.c.b16 %v3619, %v3618
        %v3627 = vpack.c.b16 %v3621, %v3620
        %v3628 = vpack.c.b16 %v3623, %v3622
        %v3629 = vpack.c.b16 %v3625, %v3624
        %v3634 = vld [vmem:[#allocation8] sm:$0xf]
        %v3635 = vld [vmem:[#allocation8 + $0x4] sm:$0xf]
        %v3636 = vld [vmem:[#allocation8 + $0x8] sm:$0xf]
        %v3637 = vld [vmem:[#allocation8 + $0xc] sm:$0xf]
        %v3638 = vld [vmem:[#allocation8 + $0x10] sm:$0xf]
        %v3639 = vld [vmem:[#allocation8 + $0x14] sm:$0xf]
        %v3640 = vld [vmem:[#allocation8 + $0x18] sm:$0xf]
        %v3641 = vld [vmem:[#allocation8 + $0x1c] sm:$0xf]
        %v3642 = vld [vmem:[#allocation8 + $0x20] sm:$0xf]
        %v3643 = vld [vmem:[#allocation8 + $0x24] sm:$0xf]
        %v3644 = vld [vmem:[#allocation8 + $0x28] sm:$0xf]
        %v3645 = vld [vmem:[#allocation8 + $0x2c] sm:$0xf]
        %v3646 = vld [vmem:[#allocation8 + $0x30] sm:$0xf]
        %v3647 = vld [vmem:[#allocation8 + $0x34] sm:$0xf]
        %v3648 = vld [vmem:[#allocation8 + $0x38] sm:$0xf]
        %v3649 = vld [vmem:[#allocation8 + $0x3c] sm:$0xf]
        %v3650 = vld [vmem:[#allocation8 + $0x40] sm:$0xf]
        %v3651 = vld [vmem:[#allocation8 + $0x44] sm:$0xf]
        %v3652 = vld [vmem:[#allocation8 + $0x48] sm:$0xf]
        %v3653 = vld [vmem:[#allocation8 + $0x4c] sm:$0xf]
        %v3654 = vld [vmem:[#allocation8 + $0x50] sm:$0xf]
        %v3655 = vld [vmem:[#allocation8 + $0x54] sm:$0xf]
        %v3656 = vld [vmem:[#allocation8 + $0x58] sm:$0xf]
        %v3657 = vld [vmem:[#allocation8 + $0x5c] sm:$0xf]
        %v3658 = vld [vmem:[#allocation8 + $0x60] sm:$0xf]
        %v3659 = vld [vmem:[#allocation8 + $0x64] sm:$0xf]
        %v3660 = vld [vmem:[#allocation8 + $0x68] sm:$0xf]
        %v3661 = vld [vmem:[#allocation8 + $0x6c] sm:$0xf]
        %v3662 = vld [vmem:[#allocation8 + $0x70] sm:$0xf]
        %v3663 = vld [vmem:[#allocation8 + $0x74] sm:$0xf]
        %v3664 = vld [vmem:[#allocation8 + $0x78] sm:$0xf]
        %v3665 = vld [vmem:[#allocation8 + $0x7c] sm:$0xf]
        %v3666 = vld [vmem:[%s7] sm:$0x1]
        %v3668 = vperm.slane %v3666, 0
        %v3702 = vunpack.c.l.b16 %v3634
        %v3703 = vunpack.c.l.b16 %v3635
        %v3704 = vunpack.c.l.b16 %v3636
        %v3705 = vunpack.c.l.b16 %v3637
        %v3706 = vunpack.c.l.b16 %v3638
        %v3707 = vunpack.c.l.b16 %v3639
        %v3708 = vunpack.c.l.b16 %v3640
        %v3709 = vunpack.c.l.b16 %v3641
        %v3710 = vunpack.c.l.b16 %v3642
        %v3711 = vunpack.c.l.b16 %v3643
        %v3712 = vunpack.c.l.b16 %v3644
        %v3713 = vunpack.c.l.b16 %v3645
        %v3714 = vunpack.c.l.b16 %v3646
        %v3715 = vunpack.c.l.b16 %v3647
        %v3716 = vunpack.c.l.b16 %v3648
        %v3717 = vunpack.c.l.b16 %v3649
        %v3718 = vunpack.c.l.b16 %v3650
        %v3719 = vunpack.c.l.b16 %v3651
        %v3720 = vunpack.c.l.b16 %v3652
        %v3721 = vunpack.c.l.b16 %v3653
        %v3722 = vunpack.c.l.b16 %v3654
        %v3723 = vunpack.c.l.b16 %v3655
        %v3724 = vunpack.c.l.b16 %v3656
        %v3725 = vunpack.c.l.b16 %v3657
        %v3726 = vunpack.c.l.b16 %v3658
        %v3727 = vunpack.c.l.b16 %v3659
        %v3728 = vunpack.c.l.b16 %v3660
        %v3729 = vunpack.c.l.b16 %v3661
        %v3730 = vunpack.c.l.b16 %v3662
        %v3731 = vunpack.c.l.b16 %v3663
        %v3732 = vunpack.c.l.b16 %v3664
        %v3733 = vunpack.c.l.b16 %v3665
        %v3734 = vpack.c.b16 %v3703, %v3702
        %v3735 = vpack.c.b16 %v3705, %v3704
        %v3736 = vpack.c.b16 %v3707, %v3706
        %v3737 = vpack.c.b16 %v3709, %v3708
        %v3738 = vpack.c.b16 %v3711, %v3710
        %v3739 = vpack.c.b16 %v3713, %v3712
        %v3740 = vpack.c.b16 %v3715, %v3714
        %v3741 = vpack.c.b16 %v3717, %v3716
        %v3742 = vpack.c.b16 %v3719, %v3718
        %v3743 = vpack.c.b16 %v3721, %v3720
        %v3744 = vpack.c.b16 %v3723, %v3722
        %v3745 = vpack.c.b16 %v3725, %v3724
        %v3746 = vpack.c.b16 %v3727, %v3726
        %v3747 = vpack.c.b16 %v3729, %v3728
        %v3748 = vpack.c.b16 %v3731, %v3730
        %v3749 = vpack.c.b16 %v3733, %v3732
        %3766 = vmatpush.bf16.msra.mxu0 %v3741
        %3767 = vmatpush.bf16.msra.mxu0 %v3740
        %3768 = vmatpush.bf16.msra.mxu0 %v3739
        %3769 = vmatpush.bf16.msra.mxu0 %v3738
        %3770 = vmatpush.bf16.msra.mxu0 %v3737
        %3771 = vmatpush.bf16.msra.mxu0 %v3736
        %3772 = vmatpush.bf16.msra.mxu0 %v3735
        %3773 = vmatpush.bf16.msra.mxu0 %v3734
        %3774 = vmatmul.bf16.gmra.mxu0 %v3602
        %v3775 = vpop.f32.mrf.mxu0
        %v3776 = vadd.f32 %v3668, %v3775
        %v3777 = vpop.f32.mrf.mxu0
        %v3778 = vadd.f32 %v3668, %v3777
        %3779 = vmatmul.bf16.gmra.mxu0 %v3603
        %v3780 = vpop.f32.mrf.mxu0
        %v3781 = vadd.f32 %v3668, %v3780
        %v3782 = vpop.f32.mrf.mxu0
        %v3783 = vadd.f32 %v3668, %v3782
        %3784 = vmatmul.bf16.gmra.mxu0 %v3604
        %v3785 = vpop.f32.mrf.mxu0
        %v3786 = vadd.f32 %v3668, %v3785
        %v3787 = vpop.f32.mrf.mxu0
        %v3788 = vadd.f32 %v3668, %v3787
        %3789 = vmatmul.bf16.gmra.mxu0 %v3605
        %v3790 = vpop.f32.mrf.mxu0
        %v3791 = vadd.f32 %v3668, %v3790
        %v3792 = vpop.f32.mrf.mxu0
        %v3793 = vadd.f32 %v3668, %v3792
        %3794 = vdwg.mxu0
        %3795 = vmatpush.bf16.msra.mxu0 %v3749
        %3796 = vmatpush.bf16.msra.mxu0 %v3748
        %3797 = vmatpush.bf16.msra.mxu0 %v3747
        %3798 = vmatpush.bf16.msra.mxu0 %v3746
        %3799 = vmatpush.bf16.msra.mxu0 %v3745
        %3800 = vmatpush.bf16.msra.mxu0 %v3744
        %3801 = vmatpush.bf16.msra.mxu0 %v3743
        %3802 = vmatpush.bf16.msra.mxu0 %v3742
        %3803 = vmatmul.bf16.gmra.mxu0 %v3626
        %v3804 = vpop.f32.mrf.mxu0
        %v3805 = vadd.f32 %v3776, %v3804
        %v3806 = vpop.f32.mrf.mxu0
        %v3807 = vadd.f32 %v3778, %v3806
        %3808 = vmatmul.bf16.gmra.mxu0 %v3627
        %v3809 = vpop.f32.mrf.mxu0
        %v3810 = vadd.f32 %v3781, %v3809
        %v3811 = vpop.f32.mrf.mxu0
        %v3812 = vadd.f32 %v3783, %v3811
        %3813 = vmatmul.bf16.gmra.mxu0 %v3628
        %v3814 = vpop.f32.mrf.mxu0
        %v3815 = vadd.f32 %v3786, %v3814
        %v3816 = vpop.f32.mrf.mxu0
        %v3817 = vadd.f32 %v3788, %v3816
        %3818 = vmatmul.bf16.gmra.mxu0 %v3629
        %v3819 = vpop.f32.mrf.mxu0
        %v3820 = vadd.f32 %v3791, %v3819
        %v3821 = vpop.f32.mrf.mxu0
        %v3822 = vadd.f32 %v3793, %v3821
        %3823 = vdwg.mxu0
        %v3824 = vmax.f32 %v3805, 0.0
        %v3825 = vmax.f32 %v3807, 0.0
        %v3826 = vmax.f32 %v3810, 0.0
        %v3827 = vmax.f32 %v3812, 0.0
        %v3828 = vmax.f32 %v3815, 0.0
        %v3829 = vmax.f32 %v3817, 0.0
        %v3830 = vmax.f32 %v3820, 0.0
        %v3831 = vmax.f32 %v3822, 0.0
        %v3832 = vpack.c.bf16 %v3824, %v3824
        %v3833 = vpack.c.bf16 %v3825, %v3825
        %v3834 = vpack.c.bf16 %v3826, %v3826
        %v3835 = vpack.c.bf16 %v3827, %v3827
        %v3836 = vpack.c.bf16 %v3828, %v3828
        %v3837 = vpack.c.bf16 %v3829, %v3829
        %v3838 = vpack.c.bf16 %v3830, %v3830
        %v3839 = vpack.c.bf16 %v3831, %v3831
        %3840 = vst [vmem:[%s348] sm:$0xf] %v3832
        %3841 = vst [vmem:[%s348 + $0x4] sm:$0xf] %v3833
        %3842 = vst [vmem:[%s348 + $0x8] sm:$0xf] %v3834
        %3843 = vst [vmem:[%s348 + $0xc] sm:$0xf] %v3835
        %3844 = vst [vmem:[%s348 + $0x10] sm:$0xf] %v3836
        %3845 = vst [vmem:[%s348 + $0x14] sm:$0xf] %v3837
        %3846 = vst [vmem:[%s348 + $0x18] sm:$0xf] %v3838
        %3847 = vst [vmem:[%s348 + $0x1c] sm:$0xf] %v3839
        %s3848 = sand.u32 %s205, 1
        %s3849 = scalar_lea.sflag [#allocation5], %s3848
        %s3850 = sand.u32 %s205, 1
        %s3851 = smul.addr %s3850, 32
        %s3852 = scalar_lea.vmem [#allocation9], %s3851
        // Predicated region
        $region65: #{tpu_custom_call.1} parent=51 // pred_check
          %p3853 = pneg %p215
        $region66: #{tpu_custom_call.1} parent=51 // pred_check_branch
          %3855 = sbr.rel (%p3853) target = $region68
        $region67: #{tpu_custom_call.1} parent=51 // pred_region
          %3857 = vsyncadd %s3849, 0
          %s3858 = smul.addr %s24, 8
          %s3859 = smul.addr %s3858, 4
          %s3860 = scalar_lea.hbm %s8, %s3859
          %s3861 = sshll.u32 %s3852, 4
          %s3862 = int_to_ptr.vmem [resolvable:$true] %s3861
          %s3863 = sshll.u32 %s3860, 4
          %s3864 = int_to_ptr.hbm [resolvable:$true] %s3863
          %3869 = dma.vmem_to_hbm [thread:$0]  %s3862, 512, %s3864, %s3849, 64, 64, 4
        $region68: #{tpu_custom_call.1} parent=51 // pred_fallthru
          _
      $region52: #{tpu_custom_call.1} parent=5 // pred_fallthru
        _
      %p3870 = scmp.le.s32.totalorder 2, %s19
      // Predicated region
      $region69: #{tpu_custom_call.1} parent=5 // pred_check
        %p3871 = pneg %p3870
      $region70: #{tpu_custom_call.1} parent=5 // pred_check_branch
        %3873 = sbr.rel (%p3871) target = $region72
      $region71: #{tpu_custom_call.1} parent=5 // pred_region
        %s3874 = ssub.s32 %s19, 2
        // Predicated region
        $region73: #{tpu_custom_call.1} parent=71 // pred_check
          %p3875 = pneg %p221
        $region74: #{tpu_custom_call.1} parent=71 // pred_check_branch
          %3877 = sbr.rel (%p3875) target = $region76
        $region75: #{tpu_custom_call.1} parent=71 // pred_region
          %s3878 = sand.u32 %s206, 1
          %s3879 = scalar_lea.sflag [#allocation5], %s3878
          %s3880 = sand.u32 %s206, 1
          %s3881 = smul.addr %s3880, 32
          %s3882 = scalar_lea.vmem [#allocation9], %s3881
          %3884 = dma.done %s3879, 512
        $region76: #{tpu_custom_call.1} parent=71 // pred_fallthru
          _
      $region72: #{tpu_custom_call.1} parent=5 // pred_fallthru
        _
    $region6: #{tpu_custom_call.1} parent=1 // loop_footer
      %s23 = sadd.s32 1, %s19
    $region7: #{tpu_custom_call.1} parent=1 // loop_footer_branch
      %18 = sbr.rel target = $region3
    $region8: #{tpu_custom_call.1} parent=1 // loop_exit
      _
    %3885 = vsyncpa [#allocation4], 1
    %s3886 = scalar_lea.sflag [#allocation4], 1
    %3887 = vsyncpa %s3886, 1
    %3888 = vsyncpa [#allocation7], 1
    %3889 = vsyncpa [#allocation5], 1
    %s3890 = scalar_lea.sflag [#allocation5], 1
    %3891 = vsyncpa %s3890, 1

</llo_original>
